<compile_context>
chip_gen: v7x
topology: tpu7x:2x2x1
jax: 0.10.0
libtpu: 0.0.40
codegen_flags: <defaults>
</compile_context>

<pallas_src>
import functools
import math

import jax
import jax.numpy as jnp
from jax.experimental import pallas as pl
from jax.experimental.pallas import tpu as pltpu

# ----------------------------- config (small) -------------------------------
VOCAB = 64
D_MODEL = 32          # "hidden_size" (768 in the reference; scaled down)
N_HEADS = 4
D_KV = 8
D_FF = 64
N_LAYERS = 1          # encoder layers == decoder layers == 1
NUM_BUCKETS = 32
MAX_DIST = 128
EPS = 1e-6
PAD_ID = 0
DEC_START = 0
IGNORE = -100
NEG_INF = -1e9
INNER = N_HEADS * D_KV
VMEM_LIMIT = 32 * 1024 * 1024


# --------------------------- in-kernel helpers -------------------------------
def _rmsnorm(x, w):
    """T5 LayerNorm: no mean subtraction, no bias."""
    var = jnp.mean(x * x, axis=-1, keepdims=True)
    return x * jax.lax.rsqrt(var + EPS) * w


def _heads_attention(q, k, v, head_bias, add_bias):
    """Multi-head attention core.

    q: (Tq, INNER) bf16;  k, v: (Tk, INNER) bf16
    head_bias: (H, Tq, Tk) f32 additive bias (rel-pos) or None
    add_bias:  broadcastable (.., Tk) f32 additive bias (padding / causal)
    Returns the concatenated per-head context (Tq, INNER) in bf16 so the caller
    can run a SINGLE O-projection matmul with contraction depth INNER.
    """
    ctxs = []
    for hh in range(N_HEADS):           # small static unroll (H=4 toy scale)
        qh = q[:, hh * D_KV:(hh + 1) * D_KV]
        kh = k[:, hh * D_KV:(hh + 1) * D_KV]
        vh = v[:, hh * D_KV:(hh + 1) * D_KV]
        # T5 does NOT scale scores by 1/sqrt(d).
        s = jax.lax.dot_general(qh, kh, (((1,), (1,)), ((), ())),
                                preferred_element_type=jnp.float32)   # (Tq, Tk)
        if head_bias is not None:
            s = s + head_bias[hh]
        s = s + add_bias
        m = jnp.max(s, axis=-1, keepdims=True)
        e = jnp.exp(s - m)
        p = e * pl.reciprocal(jnp.sum(e, axis=-1, keepdims=True), approx=True)
        ctxs.append(jnp.dot(p.astype(jnp.bfloat16), vh,
                            preferred_element_type=jnp.float32))      # (Tq, D_KV)
    return jnp.concatenate(ctxs, axis=-1).astype(jnp.bfloat16)        # (Tq, INNER)


# ----------------------------- Pallas kernels -------------------------------
def _encoder_layer_kernel(x_ref, ln1_ref, wqkv_ref, wo_attn_ref, bias_ref,
                          mask_ref, ln2_ref, wi_ref, wo_ref, final_ln_ref,
                          o_ref, *, apply_final_ln):
    """One full encoder layer (self-attn block + FFN block), one batch element.
    When `apply_final_ln` (last layer) the encoder-final RMSNorm is fused here,
    so the decoder never re-normalizes the encoder output."""
    x = x_ref[0]                                                      # (T, D) f32

    # ---- self-attention block ----
    h = _rmsnorm(x, ln1_ref[...]).astype(jnp.bfloat16)
    qkv = jnp.dot(h, wqkv_ref[...],
                  preferred_element_type=jnp.float32).astype(jnp.bfloat16)
    q, k, v = qkv[:, :INNER], qkv[:, INNER:2 * INNER], qkv[:, 2 * INNER:]
    mask_bias = (1.0 - mask_ref[0]) * NEG_INF                         # (1, T)
    ctx = _heads_attention(q, k, v, bias_ref[...], mask_bias)         # (T, INNER)
    x = x + jnp.dot(ctx, wo_attn_ref[...], preferred_element_type=jnp.float32)

    # ---- FFN block (T5 DenseReluDense) ----
    h = _rmsnorm(x, ln2_ref[...]).astype(jnp.bfloat16)
    h = jnp.dot(h, wi_ref[...], preferred_element_type=jnp.float32)
    h = jnp.maximum(h, 0.0).astype(jnp.bfloat16)
    x = x + jnp.dot(h, wo_ref[...], preferred_element_type=jnp.float32)

    if apply_final_ln:
        x = _rmsnorm(x, final_ln_ref[...])
    o_ref[0] = x


def _decoder_layer_kernel(x_ref, enc_ref, ln1_ref, wqkv_ref, wo_sa_ref, bias_ref,
                          ln2_ref, wq_ref, wkv_ref, wo_ca_ref, enc_mask_ref,
                          ln3_ref, wi_ref, wo_ref, o_ref):
    """One full decoder layer (causal self-attn + cross-attn + FFN), one batch
    element.  `enc_ref` is the (already final-normalized) encoder output."""
    x = x_ref[0]                                                      # (Td, D) f32
    Td = x.shape[0]

    # ---- causal self-attention (rel-pos bias + in-kernel causal mask) ----
    h = _rmsnorm(x, ln1_ref[...]).astype(jnp.bfloat16)
    qkv = jnp.dot(h, wqkv_ref[...],
                  preferred_element_type=jnp.float32).astype(jnp.bfloat16)
    q, k, v = qkv[:, :INNER], qkv[:, INNER:2 * INNER], qkv[:, 2 * INNER:]
    row = jax.lax.broadcasted_iota(jnp.int32, (Td, Td), 0)
    col = jax.lax.broadcasted_iota(jnp.int32, (Td, Td), 1)
    causal_bias = jnp.where(col <= row, 0.0, NEG_INF)                 # (Td, Td) f32
    ctx = _heads_attention(q, k, v, bias_ref[...], causal_bias)
    x = x + jnp.dot(ctx, wo_sa_ref[...], preferred_element_type=jnp.float32)

    # ---- cross-attention (no positional bias) ----
    h = _rmsnorm(x, ln2_ref[...]).astype(jnp.bfloat16)
    q = jnp.dot(h, wq_ref[...],
                preferred_element_type=jnp.float32).astype(jnp.bfloat16)
    kv = jnp.dot(enc_ref[0].astype(jnp.bfloat16), wkv_ref[...],
                 preferred_element_type=jnp.float32).astype(jnp.bfloat16)
    k2, v2 = kv[:, :INNER], kv[:, INNER:]
    enc_mask_bias = (1.0 - enc_mask_ref[0]) * NEG_INF                 # (1, Te)
    ctx = _heads_attention(q, k2, v2, None, enc_mask_bias)
    x = x + jnp.dot(ctx, wo_ca_ref[...], preferred_element_type=jnp.float32)

    # ---- FFN block ----
    h = _rmsnorm(x, ln3_ref[...]).astype(jnp.bfloat16)
    h = jnp.dot(h, wi_ref[...], preferred_element_type=jnp.float32)
    h = jnp.maximum(h, 0.0).astype(jnp.bfloat16)
    x = x + jnp.dot(h, wo_ref[...], preferred_element_type=jnp.float32)

    o_ref[0] = x


def _lmhead_ce_kernel(x_ref, ln_ref, emb_ref, lab_ref, logits_ref, sum_ref, cnt_ref):
    """Decoder final RMSNorm -> d_model**-0.5 scale -> tied LM head (bf16 table,
    contracted over its last axis, no transpose) -> cross-entropy.  Loss sum /
    valid-count accumulate into resident (1,1) outputs across the batch grid.

    TODO(synk): tile the vocab axis with an online logsumexp for prod vocab sizes
    (v7x 64 MiB VMEM) and emit bf16 logits (or loss only)."""
    b = pl.program_id(0)

    @pl.when(b == 0)
    def _():
        sum_ref[...] = jnp.zeros_like(sum_ref)
        cnt_ref[...] = jnp.zeros_like(cnt_ref)

    x = x_ref[0]                                                      # (Td, D) f32
    h = _rmsnorm(x, ln_ref[...])
    h = (h * (D_MODEL ** -0.5)).astype(jnp.bfloat16)
    logits = jax.lax.dot_general(h, emb_ref[...], (((1,), (1,)), ((), ())),
                                 preferred_element_type=jnp.float32)  # (Td, V)
    logits_ref[0] = logits

    labels = lab_ref[0]                                               # (Td, 1) i32
    m = jnp.max(logits, axis=-1, keepdims=True)
    lse = jnp.log(jnp.sum(jnp.exp(logits - m), axis=-1, keepdims=True)) + m
    col = jax.lax.broadcasted_iota(jnp.int32, logits.shape, 1)
    onehot = (col == labels).astype(jnp.float32)
    picked = jnp.sum(onehot * logits, axis=-1, keepdims=True)
    nll = lse - picked                                                # (Td, 1)
    valid = (labels != IGNORE).astype(jnp.float32)
    sum_ref[...] += jnp.sum(nll * valid)
    cnt_ref[...] += jnp.sum(valid)


# ----------------------------- kernel wrappers -------------------------------
def _cparams(sem):
    return pltpu.CompilerParams(dimension_semantics=sem,
                                vmem_limit_bytes=VMEM_LIMIT)


def encoder_layer(x, layer, bias, mask, final_ln, apply_final_ln):
    B, T, D = x.shape
    kernel = functools.partial(_encoder_layer_kernel, apply_final_ln=apply_final_ln)
    return pl.pallas_call(
        kernel,
        out_shape=jax.ShapeDtypeStruct((B, T, D), jnp.float32),
        grid=(B,),
        in_specs=[pl.BlockSpec((1, T, D), lambda b: (b, 0, 0)),
                  pl.BlockSpec((1, D), lambda b: (0, 0)),
                  pl.BlockSpec((D, 3 * INNER), lambda b: (0, 0)),
                  pl.BlockSpec((INNER, D), lambda b: (0, 0)),
                  pl.BlockSpec((N_HEADS, T, T), lambda b: (0, 0, 0)),
                  pl.BlockSpec((1, 1, T), lambda b: (b, 0, 0)),
                  pl.BlockSpec((1, D), lambda b: (0, 0)),
                  pl.BlockSpec((D, D_FF), lambda b: (0, 0)),
                  pl.BlockSpec((D_FF, D), lambda b: (0, 0)),
                  pl.BlockSpec((1, D), lambda b: (0, 0))],
        out_specs=pl.BlockSpec((1, T, D), lambda b: (b, 0, 0)),
        compiler_params=_cparams(("parallel",)),
    )(x, layer['ln1'], layer['wqkv'], layer['wo_attn'], bias, mask,
      layer['ln2'], layer['wi'], layer['wo'], final_ln)


def decoder_layer(x, enc, layer, bias, enc_mask):
    B, Td, D = x.shape
    Te = enc.shape[1]
    return pl.pallas_call(
        _decoder_layer_kernel,
        out_shape=jax.ShapeDtypeStruct((B, Td, D), jnp.float32),
        grid=(B,),
        in_specs=[pl.BlockSpec((1, Td, D), lambda b: (b, 0, 0)),
                  pl.BlockSpec((1, Te, D), lambda b: (b, 0, 0)),
                  pl.BlockSpec((1, D), lambda b: (0, 0)),
                  pl.BlockSpec((D, 3 * INNER), lambda b: (0, 0)),
                  pl.BlockSpec((INNER, D), lambda b: (0, 0)),
                  pl.BlockSpec((N_HEADS, Td, Td), lambda b: (0, 0, 0)),
                  pl.BlockSpec((1, D), lambda b: (0, 0)),
                  pl.BlockSpec((D, INNER), lambda b: (0, 0)),
                  pl.BlockSpec((D, 2 * INNER), lambda b: (0, 0)),
                  pl.BlockSpec((INNER, D), lambda b: (0, 0)),
                  pl.BlockSpec((1, 1, Te), lambda b: (b, 0, 0)),
                  pl.BlockSpec((1, D), lambda b: (0, 0)),
                  pl.BlockSpec((D, D_FF), lambda b: (0, 0)),
                  pl.BlockSpec((D_FF, D), lambda b: (0, 0))],
        out_specs=pl.BlockSpec((1, Td, D), lambda b: (b, 0, 0)),
        compiler_params=_cparams(("parallel",)),
    )(x, enc, layer['ln1'], layer['wqkv'], layer['wo_sa'], bias,
      layer['ln2'], layer['wq_ca'], layer['wkv_ca'], layer['wo_ca'], enc_mask,
      layer['ln3'], layer['wi'], layer['wo'])


def lm_head_and_loss(params, dec_hidden, labels):
    B, Td, D = dec_hidden.shape
    V = params['shared_bf16'].shape[0]
    labels3 = labels.reshape(B, Td, 1).astype(jnp.int32)
    logits, s, c = pl.pallas_call(
        _lmhead_ce_kernel,
        out_shape=(jax.ShapeDtypeStruct((B, Td, V), jnp.float32),
                   jax.ShapeDtypeStruct((1, 1), jnp.float32),
                   jax.ShapeDtypeStruct((1, 1), jnp.float32)),
        grid=(B,),
        in_specs=[pl.BlockSpec((1, Td, D), lambda b: (b, 0, 0)),
                  pl.BlockSpec((1, D), lambda b: (0, 0)),
                  pl.BlockSpec((V, D), lambda b: (0, 0)),
                  pl.BlockSpec((1, Td, 1), lambda b: (b, 0, 0))],
        out_specs=(pl.BlockSpec((1, Td, V), lambda b: (b, 0, 0)),
                   pl.BlockSpec((1, 1), lambda b: (0, 0)),
                   pl.BlockSpec((1, 1), lambda b: (0, 0))),
        compiler_params=_cparams(("arbitrary",)),
    )(dec_hidden, params['dec_final_ln'], params['shared_bf16'], labels3)
    # PyTorch CrossEntropyLoss(ignore_index=-100, 'mean'); guard 0/0 if all ignored.
    loss = s[0, 0] / jnp.maximum(c[0, 0], 1.0)
    return logits, loss


# --------------------------- JAX glue (T5 wiring) ----------------------------
def _relative_position_bucket(rel_pos, bidirectional):
    num_buckets = NUM_BUCKETS
    ret = jnp.zeros_like(rel_pos)
    if bidirectional:
        num_buckets //= 2
        ret = ret + (rel_pos > 0).astype(jnp.int32) * num_buckets
        rel_pos = jnp.abs(rel_pos)
    else:
        rel_pos = -jnp.minimum(rel_pos, 0)
    max_exact = num_buckets // 2
    is_small = rel_pos < max_exact
    large = max_exact + (
        jnp.log(jnp.maximum(rel_pos, 1).astype(jnp.float32) / max_exact)
        / math.log(MAX_DIST / max_exact) * (num_buckets - max_exact)
    ).astype(jnp.int32)
    large = jnp.minimum(large, num_buckets - 1)
    return ret + jnp.where(is_small, rel_pos, large)


def compute_position_bias(rel_emb, q_len, k_len, bidirectional):
    ctx = jnp.arange(q_len)[:, None]
    mem = jnp.arange(k_len)[None, :]
    buckets = _relative_position_bucket(mem - ctx, bidirectional)
    bias = rel_emb[buckets]                       # (q, k, H)
    return jnp.transpose(bias, (2, 0, 1))         # (H, q, k)


def encode(params, input_ids, attention_mask):
    B, T = input_ids.shape
    x = params['shared'][input_ids]
    mask = attention_mask.astype(jnp.float32).reshape(B, 1, T)
    bias = compute_position_bias(params['enc_rel'], T, T, bidirectional=True)  # (H,T,T)
    n = len(params['enc_layers'])
    for li, layer in enumerate(params['enc_layers']):
        x = encoder_layer(x, layer, bias, mask, params['enc_final_ln'],
                          apply_final_ln=(li == n - 1))
    return x      # already final-RMSNorm'ed (fused into the last layer)


def decode(params, dec_ids, enc_out, enc_mask):
    B, Td = dec_ids.shape
    Te = enc_out.shape[1]
    x = params['shared'][dec_ids]
    # rel-pos bias only; causal mask is generated in-kernel via iota compare.
    self_bias = compute_position_bias(params['dec_rel'], Td, Td, bidirectional=False)
    cross_mask = enc_mask.astype(jnp.float32).reshape(B, 1, Te)
    for layer in params['dec_layers']:
        x = decoder_layer(x, enc_out, layer, self_bias, cross_mask)
    # NOTE: decoder final RMSNorm is fused into the LM-head/CE kernel.
    return x


def shift_right(labels):
    B = labels.shape[0]
    start = jnp.full((B, 1), DEC_START, dtype=labels.dtype)
    shifted = jnp.concatenate([start, labels[:, :-1]], axis=1)
    return jnp.where(shifted == IGNORE, PAD_ID, shifted)


def joint_t5_forward(params, input_ids, attention_mask, labels,
                     neg_samples=None, label_length=None, neg_length=None):
    # neg_samples / label_length / neg_length are unused: ranking_loss == 0 in the
    # reference forward, and the ranker Linear is never applied there.
    enc_out = encode(params, input_ids, attention_mask)
    dec_ids = shift_right(labels)
    dec_hidden = decode(params, dec_ids, enc_out, attention_mask)
    logits, generation_loss = lm_head_and_loss(params, dec_hidden, labels)
    ranking_loss = 0.0
    return {'logits': logits, 'loss': generation_loss + ranking_loss}


# ------------------------------ parameter init -------------------------------
def init_params(key):
    keys = iter(jax.random.split(key, 100))

    def dense(din, dout, scale=0.02, dtype=jnp.float32):
        return (jax.random.normal(next(keys), (din, dout), jnp.float32) * scale).astype(dtype)

    def ln():
        return jnp.ones((1, D_MODEL), jnp.float32)

    def enc_layer():
        return {'ln1': ln(),
                'wqkv': dense(D_MODEL, 3 * INNER, dtype=jnp.bfloat16),   # packed Q|K|V
                'wo_attn': dense(INNER, D_MODEL, dtype=jnp.bfloat16),
                'ln2': ln(),
                'wi': dense(D_MODEL, D_FF, dtype=jnp.bfloat16),
                'wo': dense(D_FF, D_MODEL, dtype=jnp.bfloat16)}

    def dec_layer():
        return {'ln1': ln(),
                'wqkv': dense(D_MODEL, 3 * INNER, dtype=jnp.bfloat16),
                'wo_sa': dense(INNER, D_MODEL, dtype=jnp.bfloat16),
                'ln2': ln(),
                'wq_ca': dense(D_MODEL, INNER, dtype=jnp.bfloat16),
                'wkv_ca': dense(D_MODEL, 2 * INNER, dtype=jnp.bfloat16),  # packed K|V
                'wo_ca': dense(INNER, D_MODEL, dtype=jnp.bfloat16),
                'ln3': ln(),
                'wi': dense(D_MODEL, D_FF, dtype=jnp.bfloat16),
                'wo': dense(D_FF, D_MODEL, dtype=jnp.bfloat16)}

    shared = dense(VOCAB, D_MODEL, 1.0)            # tied embedding / LM head, f32
    return {
        'shared': shared,                          # f32 table for embedding lookup
        'shared_bf16': shared.astype(jnp.bfloat16),  # pre-cast LM-head copy (no per-step cast)
        'enc_rel': dense(NUM_BUCKETS, N_HEADS, 1.0),
        'dec_rel': dense(NUM_BUCKETS, N_HEADS, 1.0),
        'enc_layers': [enc_layer() for _ in range(N_LAYERS)],
        'enc_final_ln': ln(),
        'dec_layers': [dec_layer() for _ in range(N_LAYERS)],
        'dec_final_ln': ln(),
        # Ranker head exists in the module (Linear(hidden, 1)) but is unused in forward.
        'ranker_w': dense(D_MODEL, 1),
        'ranker_b': jnp.zeros((1,), jnp.float32),
    }


@jax.jit
def forward_jit(params, input_ids, attention_mask, labels):
    return joint_t5_forward(params, input_ids, attention_mask, labels)


# ----------------------------------- main ------------------------------------
if __name__ == "__main__":
    params = init_params(jax.random.PRNGKey(0))

    B, T_ENC, T_DEC = 2, 8, 8
    k1, k2 = jax.random.split(jax.random.PRNGKey(0), 2)
    input_ids = jax.random.randint(k1, (B, T_ENC), 1, VOCAB, dtype=jnp.int32)
    attention_mask = jnp.ones((B, T_ENC), jnp.int32).at[1, 6:].set(0)
    labels = jax.random.randint(k2, (B, T_DEC), 1, VOCAB, dtype=jnp.int32)
    labels = labels.at[1, 5:].set(IGNORE)   # ignore_index positions

    out = forward_jit(params, input_ids, attention_mask, labels)
    jax.block_until_ready(out['logits'])
    jax.block_until_ready(out['loss'])

    assert out['logits'].shape == (B, T_DEC, VOCAB)
    assert bool(jnp.isfinite(out['loss']))
    print("KERNEL_OK")
</pallas_src>

<mosaic_0001>
module attributes {stable_mosaic.version = 11 : i64} {
  func.func @_encoder_layer_kernel(%arg0: i32, %arg1: memref<1x8x32xf32, #tpu.memory_space<vmem>>, %arg2: memref<1x32xf32, #tpu.memory_space<vmem>>, %arg3: memref<32x96xbf16, #tpu.memory_space<vmem>>, %arg4: memref<32x32xbf16, #tpu.memory_space<vmem>>, %arg5: memref<4x8x8xf32, #tpu.memory_space<vmem>>, %arg6: memref<1x1x8xf32, #tpu.memory_space<vmem>>, %arg7: memref<1x32xf32, #tpu.memory_space<vmem>>, %arg8: memref<32x64xbf16, #tpu.memory_space<vmem>>, %arg9: memref<64x32xbf16, #tpu.memory_space<vmem>>, %arg10: memref<1x32xf32, #tpu.memory_space<vmem>>, %arg11: memref<1x8x32xf32, #tpu.memory_space<vmem>>) attributes {dimension_semantics = [#tpu.dimension_semantics<parallel>], iteration_bounds = array<i64: 2>, scalar_prefetch = 0 : i64, scratch_operands = 0 : i64, tpu.core_type = #tpu.core_type<tc>, window_params = [{transform_indices = @transform_0, window_bounds = array<i64: 1, 8, 32>}, {pipeline_mode = #tpu.pipeline_mode<synchronous>, transform_indices = @transform_1, window_bounds = array<i64: 1, 32>}, {pipeline_mode = #tpu.pipeline_mode<synchronous>, transform_indices = @transform_2, window_bounds = array<i64: 32, 96>}, {pipeline_mode = #tpu.pipeline_mode<synchronous>, transform_indices = @transform_3, window_bounds = array<i64: 32, 32>}, {pipeline_mode = #tpu.pipeline_mode<synchronous>, transform_indices = @transform_4, window_bounds = array<i64: 4, 8, 8>}, {transform_indices = @transform_5, window_bounds = array<i64: 1, 1, 8>}, {pipeline_mode = #tpu.pipeline_mode<synchronous>, transform_indices = @transform_6, window_bounds = array<i64: 1, 32>}, {pipeline_mode = #tpu.pipeline_mode<synchronous>, transform_indices = @transform_7, window_bounds = array<i64: 32, 64>}, {pipeline_mode = #tpu.pipeline_mode<synchronous>, transform_indices = @transform_8, window_bounds = array<i64: 64, 32>}, {pipeline_mode = #tpu.pipeline_mode<synchronous>, transform_indices = @transform_9, window_bounds = array<i64: 1, 32>}, {transform_indices = @transform_10, window_bounds = array<i64: 1, 8, 32>}]} {
    %c0 = arith.constant 0 : index
    %c0_0 = arith.constant 0 : index
    %c0_1 = arith.constant 0 : index
    %0 = vector.load %arg1[%c0, %c0_0, %c0_1] : memref<1x8x32xf32, #tpu.memory_space<vmem>>, vector<1x8x32xf32>
    %1 = vector.shape_cast %0 : vector<1x8x32xf32> to vector<8x32xf32>
    %c0_2 = arith.constant 0 : index
    %c0_3 = arith.constant 0 : index
    %2 = vector.load %arg2[%c0_2, %c0_3] : memref<1x32xf32, #tpu.memory_space<vmem>>, vector<1x32xf32>
    %3 = arith.mulf %1, %1 : vector<8x32xf32>
    %cst = arith.constant dense<0.000000e+00> : vector<8xf32>
    %4 = vector.multi_reduction <add>, %3, %cst [1] : vector<8x32xf32> to vector<8xf32>
    %5 = vector.shape_cast %4 : vector<8xf32> to vector<8x1xf32>
    %cst_4 = arith.constant 3.200000e+01 : f32
    %6 = vector.broadcast %cst_4 : f32 to vector<8x1xf32>
    %7 = arith.divf %5, %6 : vector<8x1xf32>
    %cst_5 = arith.constant 9.99999997E-7 : f32
    %8 = vector.broadcast %cst_5 : f32 to vector<8x1xf32>
    %9 = arith.addf %7, %8 : vector<8x1xf32>
    %10 = math.rsqrt %9 : vector<8x1xf32>
    %11 = vector.broadcast %10 : vector<8x1xf32> to vector<8x32xf32>
    %12 = arith.mulf %1, %11 : vector<8x32xf32>
    %13 = vector.broadcast %2 : vector<1x32xf32> to vector<8x32xf32>
    %14 = arith.mulf %12, %13 : vector<8x32xf32>
    %15 = arith.truncf %14 : vector<8x32xf32> to vector<8x32xbf16>
    %c0_6 = arith.constant 0 : index
    %c0_7 = arith.constant 0 : index
    %16 = vector.load %arg3[%c0_6, %c0_7] : memref<32x96xbf16, #tpu.memory_space<vmem>>, vector<32x96xbf16>
    %cst_8 = arith.constant dense<0.000000e+00> : vector<8x96xf32>
    %17 = tpu.matmul %15, %16, %cst_8 {dimension_numbers = #tpu.dot_dimension_numbers<[1], [0], [0], [1], [0, 0, 1, 1], [], []>} : vector<8x32xbf16>, vector<32x96xbf16>, vector<8x96xf32> -> vector<8x96xf32>
    %18 = arith.truncf %17 : vector<8x96xf32> to vector<8x96xbf16>
    %19 = vector.extract_strided_slice %18 {offsets = [0, 0], sizes = [8, 32], strides = [1, 1]} : vector<8x96xbf16> to vector<8x32xbf16>
    %20 = vector.extract_strided_slice %18 {offsets = [0, 32], sizes = [8, 32], strides = [1, 1]} : vector<8x96xbf16> to vector<8x32xbf16>
    %21 = vector.extract_strided_slice %18 {offsets = [0, 64], sizes = [8, 32], strides = [1, 1]} : vector<8x96xbf16> to vector<8x32xbf16>
    %c0_9 = arith.constant 0 : index
    %c0_10 = arith.constant 0 : index
    %c0_11 = arith.constant 0 : index
    %22 = vector.load %arg6[%c0_9, %c0_10, %c0_11] : memref<1x1x8xf32, #tpu.memory_space<vmem>>, vector<1x1x8xf32>
    %23 = vector.shape_cast %22 : vector<1x1x8xf32> to vector<1x8xf32>
    %cst_12 = arith.constant 1.000000e+00 : f32
    %24 = vector.broadcast %cst_12 : f32 to vector<1x8xf32>
    %25 = arith.subf %24, %23 : vector<1x8xf32>
    %cst_13 = arith.constant -1.000000e+09 : f32
    %26 = vector.broadcast %cst_13 : f32 to vector<1x8xf32>
    %27 = arith.mulf %25, %26 : vector<1x8xf32>
    %c0_14 = arith.constant 0 : index
    %c0_15 = arith.constant 0 : index
    %c0_16 = arith.constant 0 : index
    %28 = vector.load %arg5[%c0_14, %c0_15, %c0_16] : memref<4x8x8xf32, #tpu.memory_space<vmem>>, vector<4x8x8xf32>
    %29 = vector.extract_strided_slice %19 {offsets = [0, 0], sizes = [8, 8], strides = [1, 1]} : vector<8x32xbf16> to vector<8x8xbf16>
    %30 = vector.extract_strided_slice %20 {offsets = [0, 0], sizes = [8, 8], strides = [1, 1]} : vector<8x32xbf16> to vector<8x8xbf16>
    %31 = vector.extract_strided_slice %21 {offsets = [0, 0], sizes = [8, 8], strides = [1, 1]} : vector<8x32xbf16> to vector<8x8xbf16>
    %cst_17 = arith.constant dense<0.000000e+00> : vector<8x8xf32>
    %32 = tpu.matmul %29, %30, %cst_17 {dimension_numbers = #tpu.dot_dimension_numbers<[1], [1], [0], [0], [0, 0, 1, 0], [], []>} : vector<8x8xbf16>, vector<8x8xbf16>, vector<8x8xf32> -> vector<8x8xf32>
    %33 = vector.extract_strided_slice %28 {offsets = [0, 0, 0], sizes = [1, 8, 8], strides = [1, 1, 1]} : vector<4x8x8xf32> to vector<1x8x8xf32>
    %34 = vector.shape_cast %33 : vector<1x8x8xf32> to vector<8x8xf32>
    %35 = arith.addf %32, %34 : vector<8x8xf32>
    %36 = vector.broadcast %27 : vector<1x8xf32> to vector<8x8xf32>
    %37 = arith.addf %35, %36 : vector<8x8xf32>
    %cst_18 = arith.constant dense<0xFF800000> : vector<8xf32>
    %38 = vector.multi_reduction <maximumf>, %37, %cst_18 [1] : vector<8x8xf32> to vector<8xf32>
    %39 = vector.shape_cast %38 : vector<8xf32> to vector<8x1xf32>
    %40 = vector.broadcast %39 : vector<8x1xf32> to vector<8x8xf32>
    %41 = arith.subf %37, %40 : vector<8x8xf32>
    %42 = math.exp %41 : vector<8x8xf32>
    %cst_19 = arith.constant dense<0.000000e+00> : vector<8xf32>
    %43 = vector.multi_reduction <add>, %42, %cst_19 [1] : vector<8x8xf32> to vector<8xf32>
    %44 = vector.shape_cast %43 : vector<8xf32> to vector<8x1xf32>
    %45 = tpu.reciprocal %44 {approx = true} : vector<8x1xf32> -> vector<8x1xf32>
    %46 = vector.broadcast %45 : vector<8x1xf32> to vector<8x8xf32>
    %47 = arith.mulf %42, %46 : vector<8x8xf32>
    %48 = arith.truncf %47 : vector<8x8xf32> to vector<8x8xbf16>
    %cst_20 = arith.constant dense<0.000000e+00> : vector<8x8xf32>
    %49 = tpu.matmul %48, %31, %cst_20 {dimension_numbers = #tpu.dot_dimension_numbers<[1], [0], [0], [1], [0, 0, 1, 1], [], []>} : vector<8x8xbf16>, vector<8x8xbf16>, vector<8x8xf32> -> vector<8x8xf32>
    %50 = vector.extract_strided_slice %19 {offsets = [0, 8], sizes = [8, 8], strides = [1, 1]} : vector<8x32xbf16> to vector<8x8xbf16>
    %51 = vector.extract_strided_slice %20 {offsets = [0, 8], sizes = [8, 8], strides = [1, 1]} : vector<8x32xbf16> to vector<8x8xbf16>
    %52 = vector.extract_strided_slice %21 {offsets = [0, 8], sizes = [8, 8], strides = [1, 1]} : vector<8x32xbf16> to vector<8x8xbf16>
    %cst_21 = arith.constant dense<0.000000e+00> : vector<8x8xf32>
    %53 = tpu.matmul %50, %51, %cst_21 {dimension_numbers = #tpu.dot_dimension_numbers<[1], [1], [0], [0], [0, 0, 1, 0], [], []>} : vector<8x8xbf16>, vector<8x8xbf16>, vector<8x8xf32> -> vector<8x8xf32>
    %54 = vector.extract_strided_slice %28 {offsets = [1, 0, 0], sizes = [1, 8, 8], strides = [1, 1, 1]} : vector<4x8x8xf32> to vector<1x8x8xf32>
    %55 = vector.shape_cast %54 : vector<1x8x8xf32> to vector<8x8xf32>
    %56 = arith.addf %53, %55 : vector<8x8xf32>
    %57 = vector.broadcast %27 : vector<1x8xf32> to vector<8x8xf32>
    %58 = arith.addf %56, %57 : vector<8x8xf32>
    %cst_22 = arith.constant dense<0xFF800000> : vector<8xf32>
    %59 = vector.multi_reduction <maximumf>, %58, %cst_22 [1] : vector<8x8xf32> to vector<8xf32>
    %60 = vector.shape_cast %59 : vector<8xf32> to vector<8x1xf32>
    %61 = vector.broadcast %60 : vector<8x1xf32> to vector<8x8xf32>
    %62 = arith.subf %58, %61 : vector<8x8xf32>
    %63 = math.exp %62 : vector<8x8xf32>
    %cst_23 = arith.constant dense<0.000000e+00> : vector<8xf32>
    %64 = vector.multi_reduction <add>, %63, %cst_23 [1] : vector<8x8xf32> to vector<8xf32>
    %65 = vector.shape_cast %64 : vector<8xf32> to vector<8x1xf32>
    %66 = tpu.reciprocal %65 {approx = true} : vector<8x1xf32> -> vector<8x1xf32>
    %67 = vector.broadcast %66 : vector<8x1xf32> to vector<8x8xf32>
    %68 = arith.mulf %63, %67 : vector<8x8xf32>
    %69 = arith.truncf %68 : vector<8x8xf32> to vector<8x8xbf16>
    %cst_24 = arith.constant dense<0.000000e+00> : vector<8x8xf32>
    %70 = tpu.matmul %69, %52, %cst_24 {dimension_numbers = #tpu.dot_dimension_numbers<[1], [0], [0], [1], [0, 0, 1, 1], [], []>} : vector<8x8xbf16>, vector<8x8xbf16>, vector<8x8xf32> -> vector<8x8xf32>
    %71 = vector.extract_strided_slice %19 {offsets = [0, 16], sizes = [8, 8], strides = [1, 1]} : vector<8x32xbf16> to vector<8x8xbf16>
    %72 = vector.extract_strided_slice %20 {offsets = [0, 16], sizes = [8, 8], strides = [1, 1]} : vector<8x32xbf16> to vector<8x8xbf16>
    %73 = vector.extract_strided_slice %21 {offsets = [0, 16], sizes = [8, 8], strides = [1, 1]} : vector<8x32xbf16> to vector<8x8xbf16>
    %cst_25 = arith.constant dense<0.000000e+00> : vector<8x8xf32>
    %74 = tpu.matmul %71, %72, %cst_25 {dimension_numbers = #tpu.dot_dimension_numbers<[1], [1], [0], [0], [0, 0, 1, 0], [], []>} : vector<8x8xbf16>, vector<8x8xbf16>, vector<8x8xf32> -> vector<8x8xf32>
    %75 = vector.extract_strided_slice %28 {offsets = [2, 0, 0], sizes = [1, 8, 8], strides = [1, 1, 1]} : vector<4x8x8xf32> to vector<1x8x8xf32>
    %76 = vector.shape_cast %75 : vector<1x8x8xf32> to vector<8x8xf32>
    %77 = arith.addf %74, %76 : vector<8x8xf32>
    %78 = vector.broadcast %27 : vector<1x8xf32> to vector<8x8xf32>
    %79 = arith.addf %77, %78 : vector<8x8xf32>
    %cst_26 = arith.constant dense<0xFF800000> : vector<8xf32>
    %80 = vector.multi_reduction <maximumf>, %79, %cst_26 [1] : vector<8x8xf32> to vector<8xf32>
    %81 = vector.shape_cast %80 : vector<8xf32> to vector<8x1xf32>
    %82 = vector.broadcast %81 : vector<8x1xf32> to vector<8x8xf32>
    %83 = arith.subf %79, %82 : vector<8x8xf32>
    %84 = math.exp %83 : vector<8x8xf32>
    %cst_27 = arith.constant dense<0.000000e+00> : vector<8xf32>
    %85 = vector.multi_reduction <add>, %84, %cst_27 [1] : vector<8x8xf32> to vector<8xf32>
    %86 = vector.shape_cast %85 : vector<8xf32> to vector<8x1xf32>
    %87 = tpu.reciprocal %86 {approx = true} : vector<8x1xf32> -> vector<8x1xf32>
    %88 = vector.broadcast %87 : vector<8x1xf32> to vector<8x8xf32>
    %89 = arith.mulf %84, %88 : vector<8x8xf32>
    %90 = arith.truncf %89 : vector<8x8xf32> to vector<8x8xbf16>
    %cst_28 = arith.constant dense<0.000000e+00> : vector<8x8xf32>
    %91 = tpu.matmul %90, %73, %cst_28 {dimension_numbers = #tpu.dot_dimension_numbers<[1], [0], [0], [1], [0, 0, 1, 1], [], []>} : vector<8x8xbf16>, vector<8x8xbf16>, vector<8x8xf32> -> vector<8x8xf32>
    %92 = vector.extract_strided_slice %19 {offsets = [0, 24], sizes = [8, 8], strides = [1, 1]} : vector<8x32xbf16> to vector<8x8xbf16>
    %93 = vector.extract_strided_slice %20 {offsets = [0, 24], sizes = [8, 8], strides = [1, 1]} : vector<8x32xbf16> to vector<8x8xbf16>
    %94 = vector.extract_strided_slice %21 {offsets = [0, 24], sizes = [8, 8], strides = [1, 1]} : vector<8x32xbf16> to vector<8x8xbf16>
    %cst_29 = arith.constant dense<0.000000e+00> : vector<8x8xf32>
    %95 = tpu.matmul %92, %93, %cst_29 {dimension_numbers = #tpu.dot_dimension_numbers<[1], [1], [0], [0], [0, 0, 1, 0], [], []>} : vector<8x8xbf16>, vector<8x8xbf16>, vector<8x8xf32> -> vector<8x8xf32>
    %96 = vector.extract_strided_slice %28 {offsets = [3, 0, 0], sizes = [1, 8, 8], strides = [1, 1, 1]} : vector<4x8x8xf32> to vector<1x8x8xf32>
    %97 = vector.shape_cast %96 : vector<1x8x8xf32> to vector<8x8xf32>
    %98 = arith.addf %95, %97 : vector<8x8xf32>
    %99 = vector.broadcast %27 : vector<1x8xf32> to vector<8x8xf32>
    %100 = arith.addf %98, %99 : vector<8x8xf32>
    %cst_30 = arith.constant dense<0xFF800000> : vector<8xf32>
    %101 = vector.multi_reduction <maximumf>, %100, %cst_30 [1] : vector<8x8xf32> to vector<8xf32>
    %102 = vector.shape_cast %101 : vector<8xf32> to vector<8x1xf32>
    %103 = vector.broadcast %102 : vector<8x1xf32> to vector<8x8xf32>
    %104 = arith.subf %100, %103 : vector<8x8xf32>
    %105 = math.exp %104 : vector<8x8xf32>
    %cst_31 = arith.constant dense<0.000000e+00> : vector<8xf32>
    %106 = vector.multi_reduction <add>, %105, %cst_31 [1] : vector<8x8xf32> to vector<8xf32>
    %107 = vector.shape_cast %106 : vector<8xf32> to vector<8x1xf32>
    %108 = tpu.reciprocal %107 {approx = true} : vector<8x1xf32> -> vector<8x1xf32>
    %109 = vector.broadcast %108 : vector<8x1xf32> to vector<8x8xf32>
    %110 = arith.mulf %105, %109 : vector<8x8xf32>
    %111 = arith.truncf %110 : vector<8x8xf32> to vector<8x8xbf16>
    %cst_32 = arith.constant dense<0.000000e+00> : vector<8x8xf32>
    %112 = tpu.matmul %111, %94, %cst_32 {dimension_numbers = #tpu.dot_dimension_numbers<[1], [0], [0], [1], [0, 0, 1, 1], [], []>} : vector<8x8xbf16>, vector<8x8xbf16>, vector<8x8xf32> -> vector<8x8xf32>
    %113 = tpu.concatenate %49, %70, %91, %112 in 1 : vector<8x8xf32>, vector<8x8xf32>, vector<8x8xf32>, vector<8x8xf32> -> vector<8x32xf32>
    %114 = arith.truncf %113 : vector<8x32xf32> to vector<8x32xbf16>
    %c0_33 = arith.constant 0 : index
    %c0_34 = arith.constant 0 : index
    %115 = vector.load %arg4[%c0_33, %c0_34] : memref<32x32xbf16, #tpu.memory_space<vmem>>, vector<32x32xbf16>
    %cst_35 = arith.constant dense<0.000000e+00> : vector<8x32xf32>
    %116 = tpu.matmul %114, %115, %cst_35 {dimension_numbers = #tpu.dot_dimension_numbers<[1], [0], [0], [1], [0, 0, 1, 1], [], []>} : vector<8x32xbf16>, vector<32x32xbf16>, vector<8x32xf32> -> vector<8x32xf32>
    %117 = arith.addf %1, %116 : vector<8x32xf32>
    %c0_36 = arith.constant 0 : index
    %c0_37 = arith.constant 0 : index
    %118 = vector.load %arg7[%c0_36, %c0_37] : memref<1x32xf32, #tpu.memory_space<vmem>>, vector<1x32xf32>
    %119 = arith.mulf %117, %117 : vector<8x32xf32>
    %cst_38 = arith.constant dense<0.000000e+00> : vector<8xf32>
    %120 = vector.multi_reduction <add>, %119, %cst_38 [1] : vector<8x32xf32> to vector<8xf32>
    %121 = vector.shape_cast %120 : vector<8xf32> to vector<8x1xf32>
    %cst_39 = arith.constant 3.200000e+01 : f32
    %122 = vector.broadcast %cst_39 : f32 to vector<8x1xf32>
    %123 = arith.divf %121, %122 : vector<8x1xf32>
    %cst_40 = arith.constant 9.99999997E-7 : f32
    %124 = vector.broadcast %cst_40 : f32 to vector<8x1xf32>
    %125 = arith.addf %123, %124 : vector<8x1xf32>
    %126 = math.rsqrt %125 : vector<8x1xf32>
    %127 = vector.broadcast %126 : vector<8x1xf32> to vector<8x32xf32>
    %128 = arith.mulf %117, %127 : vector<8x32xf32>
    %129 = vector.broadcast %118 : vector<1x32xf32> to vector<8x32xf32>
    %130 = arith.mulf %128, %129 : vector<8x32xf32>
    %131 = arith.truncf %130 : vector<8x32xf32> to vector<8x32xbf16>
    %c0_41 = arith.constant 0 : index
    %c0_42 = arith.constant 0 : index
    %132 = vector.load %arg8[%c0_41, %c0_42] : memref<32x64xbf16, #tpu.memory_space<vmem>>, vector<32x64xbf16>
    %cst_43 = arith.constant dense<0.000000e+00> : vector<8x64xf32>
    %133 = tpu.matmul %131, %132, %cst_43 {dimension_numbers = #tpu.dot_dimension_numbers<[1], [0], [0], [1], [0, 0, 1, 1], [], []>} : vector<8x32xbf16>, vector<32x64xbf16>, vector<8x64xf32> -> vector<8x64xf32>
    %cst_44 = arith.constant 0.000000e+00 : f32
    %134 = vector.broadcast %cst_44 : f32 to vector<8x64xf32>
    %135 = arith.maximumf %133, %134 : vector<8x64xf32>
    %136 = arith.truncf %135 : vector<8x64xf32> to vector<8x64xbf16>
    %c0_45 = arith.constant 0 : index
    %c0_46 = arith.constant 0 : index
    %137 = vector.load %arg9[%c0_45, %c0_46] : memref<64x32xbf16, #tpu.memory_space<vmem>>, vector<64x32xbf16>
    %cst_47 = arith.constant dense<0.000000e+00> : vector<8x32xf32>
    %138 = tpu.matmul %136, %137, %cst_47 {dimension_numbers = #tpu.dot_dimension_numbers<[1], [0], [0], [1], [0, 0, 1, 1], [], []>} : vector<8x64xbf16>, vector<64x32xbf16>, vector<8x32xf32> -> vector<8x32xf32>
    %139 = arith.addf %117, %138 : vector<8x32xf32>
    %c0_48 = arith.constant 0 : index
    %c0_49 = arith.constant 0 : index
    %140 = vector.load %arg10[%c0_48, %c0_49] : memref<1x32xf32, #tpu.memory_space<vmem>>, vector<1x32xf32>
    %141 = arith.mulf %139, %139 : vector<8x32xf32>
    %cst_50 = arith.constant dense<0.000000e+00> : vector<8xf32>
    %142 = vector.multi_reduction <add>, %141, %cst_50 [1] : vector<8x32xf32> to vector<8xf32>
    %143 = vector.shape_cast %142 : vector<8xf32> to vector<8x1xf32>
    %cst_51 = arith.constant 3.200000e+01 : f32
    %144 = vector.broadcast %cst_51 : f32 to vector<8x1xf32>
    %145 = arith.divf %143, %144 : vector<8x1xf32>
    %cst_52 = arith.constant 9.99999997E-7 : f32
    %146 = vector.broadcast %cst_52 : f32 to vector<8x1xf32>
    %147 = arith.addf %145, %146 : vector<8x1xf32>
    %148 = math.rsqrt %147 : vector<8x1xf32>
    %149 = vector.broadcast %148 : vector<8x1xf32> to vector<8x32xf32>
    %150 = arith.mulf %139, %149 : vector<8x32xf32>
    %151 = vector.broadcast %140 : vector<1x32xf32> to vector<8x32xf32>
    %152 = arith.mulf %150, %151 : vector<8x32xf32>
    %c0_53 = arith.constant 0 : index
    %c0_54 = arith.constant 0 : index
    %c0_55 = arith.constant 0 : index
    %153 = vector.load %arg11[%c0_53, %c0_54, %c0_55] : memref<1x8x32xf32, #tpu.memory_space<vmem>>, vector<1x8x32xf32>
    %154 = vector.shape_cast %153 : vector<1x8x32xf32> to vector<8x32xf32>
    %155 = vector.shape_cast %152 : vector<8x32xf32> to vector<1x8x32xf32>
    tpu.vector_store %arg11[%c0_53, %c0_54, %c0_55], %155 {strides = array<i32>} : memref<1x8x32xf32, #tpu.memory_space<vmem>>, vector<1x8x32xf32>,
    return
  }
  func.func @transform_0(%arg0: i32) -> (i32, i32, i32) {
    %c0_i32 = arith.constant 0 : i32
    %c0_i32_0 = arith.constant 0 : i32
    %c0_i32_1 = arith.constant 0 : i32
    return %arg0, %c0_i32, %c0_i32_0 : i32, i32, i32
  }
  func.func @transform_1(%arg0: i32) -> (i32, i32) {
    %c0_i32 = arith.constant 0 : i32
    %c0_i32_0 = arith.constant 0 : i32
    %c0_i32_1 = arith.constant 0 : i32
    return %c0_i32, %c0_i32_0 : i32, i32
  }
  func.func @transform_2(%arg0: i32) -> (i32, i32) {
    %c0_i32 = arith.constant 0 : i32
    %c0_i32_0 = arith.constant 0 : i32
    %c0_i32_1 = arith.constant 0 : i32
    return %c0_i32, %c0_i32_0 : i32, i32
  }
  func.func @transform_3(%arg0: i32) -> (i32, i32) {
    %c0_i32 = arith.constant 0 : i32
    %c0_i32_0 = arith.constant 0 : i32
    %c0_i32_1 = arith.constant 0 : i32
    return %c0_i32, %c0_i32_0 : i32, i32
  }
  func.func @transform_4(%arg0: i32) -> (i32, i32, i32) {
    %c0_i32 = arith.constant 0 : i32
    %c0_i32_0 = arith.constant 0 : i32
    %c0_i32_1 = arith.constant 0 : i32
    %c0_i32_2 = arith.constant 0 : i32
    return %c0_i32, %c0_i32_0, %c0_i32_1 : i32, i32, i32
  }
  func.func @transform_5(%arg0: i32) -> (i32, i32, i32) {
    %c0_i32 = arith.constant 0 : i32
    %c0_i32_0 = arith.constant 0 : i32
    %c0_i32_1 = arith.constant 0 : i32
    return %arg0, %c0_i32, %c0_i32_0 : i32, i32, i32
  }
  func.func @transform_6(%arg0: i32) -> (i32, i32) {
    %c0_i32 = arith.constant 0 : i32
    %c0_i32_0 = arith.constant 0 : i32
    %c0_i32_1 = arith.constant 0 : i32
    return %c0_i32, %c0_i32_0 : i32, i32
  }
  func.func @transform_7(%arg0: i32) -> (i32, i32) {
    %c0_i32 = arith.constant 0 : i32
    %c0_i32_0 = arith.constant 0 : i32
    %c0_i32_1 = arith.constant 0 : i32
    return %c0_i32, %c0_i32_0 : i32, i32
  }
  func.func @transform_8(%arg0: i32) -> (i32, i32) {
    %c0_i32 = arith.constant 0 : i32
    %c0_i32_0 = arith.constant 0 : i32
    %c0_i32_1 = arith.constant 0 : i32
    return %c0_i32, %c0_i32_0 : i32, i32
  }
  func.func @transform_9(%arg0: i32) -> (i32, i32) {
    %c0_i32 = arith.constant 0 : i32
    %c0_i32_0 = arith.constant 0 : i32
    %c0_i32_1 = arith.constant 0 : i32
    return %c0_i32, %c0_i32_0 : i32, i32
  }
  func.func @transform_10(%arg0: i32) -> (i32, i32, i32) {
    %c0_i32 = arith.constant 0 : i32
    %c0_i32_0 = arith.constant 0 : i32
    %c0_i32_1 = arith.constant 0 : i32
    return %arg0, %c0_i32, %c0_i32_0 : i32, i32, i32
  }
}

module attributes {stable_mosaic.version = 11 : i64} {
  func.func @_decoder_layer_kernel(%arg0: i32, %arg1: memref<1x8x32xf32, #tpu.memory_space<vmem>>, %arg2: memref<1x8x32xf32, #tpu.memory_space<vmem>>, %arg3: memref<1x32xf32, #tpu.memory_space<vmem>>, %arg4: memref<32x96xbf16, #tpu.memory_space<vmem>>, %arg5: memref<32x32xbf16, #tpu.memory_space<vmem>>, %arg6: memref<4x8x8xf32, #tpu.memory_space<vmem>>, %arg7: memref<1x32xf32, #tpu.memory_space<vmem>>, %arg8: memref<32x32xbf16, #tpu.memory_space<vmem>>, %arg9: memref<32x64xbf16, #tpu.memory_space<vmem>>, %arg10: memref<32x32xbf16, #tpu.memory_space<vmem>>, %arg11: memref<1x1x8xf32, #tpu.memory_space<vmem>>, %arg12: memref<1x32xf32, #tpu.memory_space<vmem>>, %arg13: memref<32x64xbf16, #tpu.memory_space<vmem>>, %arg14: memref<64x32xbf16, #tpu.memory_space<vmem>>, %arg15: memref<1x8x32xf32, #tpu.memory_space<vmem>>) attributes {dimension_semantics = [#tpu.dimension_semantics<parallel>], iteration_bounds = array<i64: 2>, scalar_prefetch = 0 : i64, scratch_operands = 0 : i64, tpu.core_type = #tpu.core_type<tc>, window_params = [{transform_indices = @transform_0, window_bounds = array<i64: 1, 8, 32>}, {transform_indices = @transform_1, window_bounds = array<i64: 1, 8, 32>}, {pipeline_mode = #tpu.pipeline_mode<synchronous>, transform_indices = @transform_2, window_bounds = array<i64: 1, 32>}, {pipeline_mode = #tpu.pipeline_mode<synchronous>, transform_indices = @transform_3, window_bounds = array<i64: 32, 96>}, {pipeline_mode = #tpu.pipeline_mode<synchronous>, transform_indices = @transform_4, window_bounds = array<i64: 32, 32>}, {pipeline_mode = #tpu.pipeline_mode<synchronous>, transform_indices = @transform_5, window_bounds = array<i64: 4, 8, 8>}, {pipeline_mode = #tpu.pipeline_mode<synchronous>, transform_indices = @transform_6, window_bounds = array<i64: 1, 32>}, {pipeline_mode = #tpu.pipeline_mode<synchronous>, transform_indices = @transform_7, window_bounds = array<i64: 32, 32>}, {pipeline_mode = #tpu.pipeline_mode<synchronous>, transform_indices = @transform_8, window_bounds = array<i64: 32, 64>}, {pipeline_mode = #tpu.pipeline_mode<synchronous>, transform_indices = @transform_9, window_bounds = array<i64: 32, 32>}, {transform_indices = @transform_10, window_bounds = array<i64: 1, 1, 8>}, {pipeline_mode = #tpu.pipeline_mode<synchronous>, transform_indices = @transform_11, window_bounds = array<i64: 1, 32>}, {pipeline_mode = #tpu.pipeline_mode<synchronous>, transform_indices = @transform_12, window_bounds = array<i64: 32, 64>}, {pipeline_mode = #tpu.pipeline_mode<synchronous>, transform_indices = @transform_13, window_bounds = array<i64: 64, 32>}, {transform_indices = @transform_14, window_bounds = array<i64: 1, 8, 32>}]} {
    %c0 = arith.constant 0 : index
    %c0_0 = arith.constant 0 : index
    %c0_1 = arith.constant 0 : index
    %0 = vector.load %arg1[%c0, %c0_0, %c0_1] : memref<1x8x32xf32, #tpu.memory_space<vmem>>, vector<1x8x32xf32>
    %1 = vector.shape_cast %0 : vector<1x8x32xf32> to vector<8x32xf32>
    %c0_2 = arith.constant 0 : index
    %c0_3 = arith.constant 0 : index
    %2 = vector.load %arg3[%c0_2, %c0_3] : memref<1x32xf32, #tpu.memory_space<vmem>>, vector<1x32xf32>
    %3 = arith.mulf %1, %1 : vector<8x32xf32>
    %cst = arith.constant dense<0.000000e+00> : vector<8xf32>
    %4 = vector.multi_reduction <add>, %3, %cst [1] : vector<8x32xf32> to vector<8xf32>
    %5 = vector.shape_cast %4 : vector<8xf32> to vector<8x1xf32>
    %cst_4 = arith.constant 3.200000e+01 : f32
    %6 = vector.broadcast %cst_4 : f32 to vector<8x1xf32>
    %7 = arith.divf %5, %6 : vector<8x1xf32>
    %cst_5 = arith.constant 9.99999997E-7 : f32
    %8 = vector.broadcast %cst_5 : f32 to vector<8x1xf32>
    %9 = arith.addf %7, %8 : vector<8x1xf32>
    %10 = math.rsqrt %9 : vector<8x1xf32>
    %11 = vector.broadcast %10 : vector<8x1xf32> to vector<8x32xf32>
    %12 = arith.mulf %1, %11 : vector<8x32xf32>
    %13 = vector.broadcast %2 : vector<1x32xf32> to vector<8x32xf32>
    %14 = arith.mulf %12, %13 : vector<8x32xf32>
    %15 = arith.truncf %14 : vector<8x32xf32> to vector<8x32xbf16>
    %c0_6 = arith.constant 0 : index
    %c0_7 = arith.constant 0 : index
    %16 = vector.load %arg4[%c0_6, %c0_7] : memref<32x96xbf16, #tpu.memory_space<vmem>>, vector<32x96xbf16>
    %cst_8 = arith.constant dense<0.000000e+00> : vector<8x96xf32>
    %17 = tpu.matmul %15, %16, %cst_8 {dimension_numbers = #tpu.dot_dimension_numbers<[1], [0], [0], [1], [0, 0, 1, 1], [], []>} : vector<8x32xbf16>, vector<32x96xbf16>, vector<8x96xf32> -> vector<8x96xf32>
    %18 = arith.truncf %17 : vector<8x96xf32> to vector<8x96xbf16>
    %19 = vector.extract_strided_slice %18 {offsets = [0, 0], sizes = [8, 32], strides = [1, 1]} : vector<8x96xbf16> to vector<8x32xbf16>
    %20 = vector.extract_strided_slice %18 {offsets = [0, 32], sizes = [8, 32], strides = [1, 1]} : vector<8x96xbf16> to vector<8x32xbf16>
    %21 = vector.extract_strided_slice %18 {offsets = [0, 64], sizes = [8, 32], strides = [1, 1]} : vector<8x96xbf16> to vector<8x32xbf16>
    %22 = tpu.iota {dimensions = array<i32: 0>} : vector<8x8xi32>
    %23 = tpu.iota {dimensions = array<i32: 1>} : vector<8x8xi32>
    %24 = arith.cmpi sle, %23, %22 : vector<8x8xi32>
    %cst_9 = arith.constant 0.000000e+00 : f32
    %cst_10 = arith.constant -1.000000e+09 : f32
    %25 = vector.broadcast %cst_9 : f32 to vector<8x8xf32>
    %26 = vector.broadcast %cst_10 : f32 to vector<8x8xf32>
    %27 = arith.select %24, %25, %26 : vector<8x8xi1>, vector<8x8xf32>
    %c0_11 = arith.constant 0 : index
    %c0_12 = arith.constant 0 : index
    %c0_13 = arith.constant 0 : index
    %28 = vector.load %arg6[%c0_11, %c0_12, %c0_13] : memref<4x8x8xf32, #tpu.memory_space<vmem>>, vector<4x8x8xf32>
    %29 = vector.extract_strided_slice %19 {offsets = [0, 0], sizes = [8, 8], strides = [1, 1]} : vector<8x32xbf16> to vector<8x8xbf16>
    %30 = vector.extract_strided_slice %20 {offsets = [0, 0], sizes = [8, 8], strides = [1, 1]} : vector<8x32xbf16> to vector<8x8xbf16>
    %31 = vector.extract_strided_slice %21 {offsets = [0, 0], sizes = [8, 8], strides = [1, 1]} : vector<8x32xbf16> to vector<8x8xbf16>
    %cst_14 = arith.constant dense<0.000000e+00> : vector<8x8xf32>
    %32 = tpu.matmul %29, %30, %cst_14 {dimension_numbers = #tpu.dot_dimension_numbers<[1], [1], [0], [0], [0, 0, 1, 0], [], []>} : vector<8x8xbf16>, vector<8x8xbf16>, vector<8x8xf32> -> vector<8x8xf32>
    %33 = vector.extract_strided_slice %28 {offsets = [0, 0, 0], sizes = [1, 8, 8], strides = [1, 1, 1]} : vector<4x8x8xf32> to vector<1x8x8xf32>
    %34 = vector.shape_cast %33 : vector<1x8x8xf32> to vector<8x8xf32>
    %35 = arith.addf %32, %34 : vector<8x8xf32>
    %36 = arith.addf %35, %27 : vector<8x8xf32>
    %cst_15 = arith.constant dense<0xFF800000> : vector<8xf32>
    %37 = vector.multi_reduction <maximumf>, %36, %cst_15 [1] : vector<8x8xf32> to vector<8xf32>
    %38 = vector.shape_cast %37 : vector<8xf32> to vector<8x1xf32>
    %39 = vector.broadcast %38 : vector<8x1xf32> to vector<8x8xf32>
    %40 = arith.subf %36, %39 : vector<8x8xf32>
    %41 = math.exp %40 : vector<8x8xf32>
    %cst_16 = arith.constant dense<0.000000e+00> : vector<8xf32>
    %42 = vector.multi_reduction <add>, %41, %cst_16 [1] : vector<8x8xf32> to vector<8xf32>
    %43 = vector.shape_cast %42 : vector<8xf32> to vector<8x1xf32>
    %44 = tpu.reciprocal %43 {approx = true} : vector<8x1xf32> -> vector<8x1xf32>
    %45 = vector.broadcast %44 : vector<8x1xf32> to vector<8x8xf32>
    %46 = arith.mulf %41, %45 : vector<8x8xf32>
    %47 = arith.truncf %46 : vector<8x8xf32> to vector<8x8xbf16>
    %cst_17 = arith.constant dense<0.000000e+00> : vector<8x8xf32>
    %48 = tpu.matmul %47, %31, %cst_17 {dimension_numbers = #tpu.dot_dimension_numbers<[1], [0], [0], [1], [0, 0, 1, 1], [], []>} : vector<8x8xbf16>, vector<8x8xbf16>, vector<8x8xf32> -> vector<8x8xf32>
    %49 = vector.extract_strided_slice %19 {offsets = [0, 8], sizes = [8, 8], strides = [1, 1]} : vector<8x32xbf16> to vector<8x8xbf16>
    %50 = vector.extract_strided_slice %20 {offsets = [0, 8], sizes = [8, 8], strides = [1, 1]} : vector<8x32xbf16> to vector<8x8xbf16>
    %51 = vector.extract_strided_slice %21 {offsets = [0, 8], sizes = [8, 8], strides = [1, 1]} : vector<8x32xbf16> to vector<8x8xbf16>
    %cst_18 = arith.constant dense<0.000000e+00> : vector<8x8xf32>
    %52 = tpu.matmul %49, %50, %cst_18 {dimension_numbers = #tpu.dot_dimension_numbers<[1], [1], [0], [0], [0, 0, 1, 0], [], []>} : vector<8x8xbf16>, vector<8x8xbf16>, vector<8x8xf32> -> vector<8x8xf32>
    %53 = vector.extract_strided_slice %28 {offsets = [1, 0, 0], sizes = [1, 8, 8], strides = [1, 1, 1]} : vector<4x8x8xf32> to vector<1x8x8xf32>
    %54 = vector.shape_cast %53 : vector<1x8x8xf32> to vector<8x8xf32>
    %55 = arith.addf %52, %54 : vector<8x8xf32>
    %56 = arith.addf %55, %27 : vector<8x8xf32>
    %cst_19 = arith.constant dense<0xFF800000> : vector<8xf32>
    %57 = vector.multi_reduction <maximumf>, %56, %cst_19 [1] : vector<8x8xf32> to vector<8xf32>
    %58 = vector.shape_cast %57 : vector<8xf32> to vector<8x1xf32>
    %59 = vector.broadcast %58 : vector<8x1xf32> to vector<8x8xf32>
    %60 = arith.subf %56, %59 : vector<8x8xf32>
    %61 = math.exp %60 : vector<8x8xf32>
    %cst_20 = arith.constant dense<0.000000e+00> : vector<8xf32>
    %62 = vector.multi_reduction <add>, %61, %cst_20 [1] : vector<8x8xf32> to vector<8xf32>
    %63 = vector.shape_cast %62 : vector<8xf32> to vector<8x1xf32>
    %64 = tpu.reciprocal %63 {approx = true} : vector<8x1xf32> -> vector<8x1xf32>
    %65 = vector.broadcast %64 : vector<8x1xf32> to vector<8x8xf32>
    %66 = arith.mulf %61, %65 : vector<8x8xf32>
    %67 = arith.truncf %66 : vector<8x8xf32> to vector<8x8xbf16>
    %cst_21 = arith.constant dense<0.000000e+00> : vector<8x8xf32>
    %68 = tpu.matmul %67, %51, %cst_21 {dimension_numbers = #tpu.dot_dimension_numbers<[1], [0], [0], [1], [0, 0, 1, 1], [], []>} : vector<8x8xbf16>, vector<8x8xbf16>, vector<8x8xf32> -> vector<8x8xf32>
    %69 = vector.extract_strided_slice %19 {offsets = [0, 16], sizes = [8, 8], strides = [1, 1]} : vector<8x32xbf16> to vector<8x8xbf16>
    %70 = vector.extract_strided_slice %20 {offsets = [0, 16], sizes = [8, 8], strides = [1, 1]} : vector<8x32xbf16> to vector<8x8xbf16>
    %71 = vector.extract_strided_slice %21 {offsets = [0, 16], sizes = [8, 8], strides = [1, 1]} : vector<8x32xbf16> to vector<8x8xbf16>
    %cst_22 = arith.constant dense<0.000000e+00> : vector<8x8xf32>
    %72 = tpu.matmul %69, %70, %cst_22 {dimension_numbers = #tpu.dot_dimension_numbers<[1], [1], [0], [0], [0, 0, 1, 0], [], []>} : vector<8x8xbf16>, vector<8x8xbf16>, vector<8x8xf32> -> vector<8x8xf32>
    %73 = vector.extract_strided_slice %28 {offsets = [2, 0, 0], sizes = [1, 8, 8], strides = [1, 1, 1]} : vector<4x8x8xf32> to vector<1x8x8xf32>
    %74 = vector.shape_cast %73 : vector<1x8x8xf32> to vector<8x8xf32>
    %75 = arith.addf %72, %74 : vector<8x8xf32>
    %76 = arith.addf %75, %27 : vector<8x8xf32>
    %cst_23 = arith.constant dense<0xFF800000> : vector<8xf32>
    %77 = vector.multi_reduction <maximumf>, %76, %cst_23 [1] : vector<8x8xf32> to vector<8xf32>
    %78 = vector.shape_cast %77 : vector<8xf32> to vector<8x1xf32>
    %79 = vector.broadcast %78 : vector<8x1xf32> to vector<8x8xf32>
    %80 = arith.subf %76, %79 : vector<8x8xf32>
    %81 = math.exp %80 : vector<8x8xf32>
    %cst_24 = arith.constant dense<0.000000e+00> : vector<8xf32>
    %82 = vector.multi_reduction <add>, %81, %cst_24 [1] : vector<8x8xf32> to vector<8xf32>
    %83 = vector.shape_cast %82 : vector<8xf32> to vector<8x1xf32>
    %84 = tpu.reciprocal %83 {approx = true} : vector<8x1xf32> -> vector<8x1xf32>
    %85 = vector.broadcast %84 : vector<8x1xf32> to vector<8x8xf32>
    %86 = arith.mulf %81, %85 : vector<8x8xf32>
    %87 = arith.truncf %86 : vector<8x8xf32> to vector<8x8xbf16>
    %cst_25 = arith.constant dense<0.000000e+00> : vector<8x8xf32>
    %88 = tpu.matmul %87, %71, %cst_25 {dimension_numbers = #tpu.dot_dimension_numbers<[1], [0], [0], [1], [0, 0, 1, 1], [], []>} : vector<8x8xbf16>, vector<8x8xbf16>, vector<8x8xf32> -> vector<8x8xf32>
    %89 = vector.extract_strided_slice %19 {offsets = [0, 24], sizes = [8, 8], strides = [1, 1]} : vector<8x32xbf16> to vector<8x8xbf16>
    %90 = vector.extract_strided_slice %20 {offsets = [0, 24], sizes = [8, 8], strides = [1, 1]} : vector<8x32xbf16> to vector<8x8xbf16>
    %91 = vector.extract_strided_slice %21 {offsets = [0, 24], sizes = [8, 8], strides = [1, 1]} : vector<8x32xbf16> to vector<8x8xbf16>
    %cst_26 = arith.constant dense<0.000000e+00> : vector<8x8xf32>
    %92 = tpu.matmul %89, %90, %cst_26 {dimension_numbers = #tpu.dot_dimension_numbers<[1], [1], [0], [0], [0, 0, 1, 0], [], []>} : vector<8x8xbf16>, vector<8x8xbf16>, vector<8x8xf32> -> vector<8x8xf32>
    %93 = vector.extract_strided_slice %28 {offsets = [3, 0, 0], sizes = [1, 8, 8], strides = [1, 1, 1]} : vector<4x8x8xf32> to vector<1x8x8xf32>
    %94 = vector.shape_cast %93 : vector<1x8x8xf32> to vector<8x8xf32>
    %95 = arith.addf %92, %94 : vector<8x8xf32>
    %96 = arith.addf %95, %27 : vector<8x8xf32>
    %cst_27 = arith.constant dense<0xFF800000> : vector<8xf32>
    %97 = vector.multi_reduction <maximumf>, %96, %cst_27 [1] : vector<8x8xf32> to vector<8xf32>
    %98 = vector.shape_cast %97 : vector<8xf32> to vector<8x1xf32>
    %99 = vector.broadcast %98 : vector<8x1xf32> to vector<8x8xf32>
    %100 = arith.subf %96, %99 : vector<8x8xf32>
    %101 = math.exp %100 : vector<8x8xf32>
    %cst_28 = arith.constant dense<0.000000e+00> : vector<8xf32>
    %102 = vector.multi_reduction <add>, %101, %cst_28 [1] : vector<8x8xf32> to vector<8xf32>
    %103 = vector.shape_cast %102 : vector<8xf32> to vector<8x1xf32>
    %104 = tpu.reciprocal %103 {approx = true} : vector<8x1xf32> -> vector<8x1xf32>
    %105 = vector.broadcast %104 : vector<8x1xf32> to vector<8x8xf32>
    %106 = arith.mulf %101, %105 : vector<8x8xf32>
    %107 = arith.truncf %106 : vector<8x8xf32> to vector<8x8xbf16>
    %cst_29 = arith.constant dense<0.000000e+00> : vector<8x8xf32>
    %108 = tpu.matmul %107, %91, %cst_29 {dimension_numbers = #tpu.dot_dimension_numbers<[1], [0], [0], [1], [0, 0, 1, 1], [], []>} : vector<8x8xbf16>, vector<8x8xbf16>, vector<8x8xf32> -> vector<8x8xf32>
    %109 = tpu.concatenate %48, %68, %88, %108 in 1 : vector<8x8xf32>, vector<8x8xf32>, vector<8x8xf32>, vector<8x8xf32> -> vector<8x32xf32>
    %110 = arith.truncf %109 : vector<8x32xf32> to vector<8x32xbf16>
    %c0_30 = arith.constant 0 : index
    %c0_31 = arith.constant 0 : index
    %111 = vector.load %arg5[%c0_30, %c0_31] : memref<32x32xbf16, #tpu.memory_space<vmem>>, vector<32x32xbf16>
    %cst_32 = arith.constant dense<0.000000e+00> : vector<8x32xf32>
    %112 = tpu.matmul %110, %111, %cst_32 {dimension_numbers = #tpu.dot_dimension_numbers<[1], [0], [0], [1], [0, 0, 1, 1], [], []>} : vector<8x32xbf16>, vector<32x32xbf16>, vector<8x32xf32> -> vector<8x32xf32>
    %113 = arith.addf %1, %112 : vector<8x32xf32>
    %c0_33 = arith.constant 0 : index
    %c0_34 = arith.constant 0 : index
    %114 = vector.load %arg7[%c0_33, %c0_34] : memref<1x32xf32, #tpu.memory_space<vmem>>, vector<1x32xf32>
    %115 = arith.mulf %113, %113 : vector<8x32xf32>
    %cst_35 = arith.constant dense<0.000000e+00> : vector<8xf32>
    %116 = vector.multi_reduction <add>, %115, %cst_35 [1] : vector<8x32xf32> to vector<8xf32>
    %117 = vector.shape_cast %116 : vector<8xf32> to vector<8x1xf32>
    %cst_36 = arith.constant 3.200000e+01 : f32
    %118 = vector.broadcast %cst_36 : f32 to vector<8x1xf32>
    %119 = arith.divf %117, %118 : vector<8x1xf32>
    %cst_37 = arith.constant 9.99999997E-7 : f32
    %120 = vector.broadcast %cst_37 : f32 to vector<8x1xf32>
    %121 = arith.addf %119, %120 : vector<8x1xf32>
    %122 = math.rsqrt %121 : vector<8x1xf32>
    %123 = vector.broadcast %122 : vector<8x1xf32> to vector<8x32xf32>
    %124 = arith.mulf %113, %123 : vector<8x32xf32>
    %125 = vector.broadcast %114 : vector<1x32xf32> to vector<8x32xf32>
    %126 = arith.mulf %124, %125 : vector<8x32xf32>
    %127 = arith.truncf %126 : vector<8x32xf32> to vector<8x32xbf16>
    %c0_38 = arith.constant 0 : index
    %c0_39 = arith.constant 0 : index
    %128 = vector.load %arg8[%c0_38, %c0_39] : memref<32x32xbf16, #tpu.memory_space<vmem>>, vector<32x32xbf16>
    %cst_40 = arith.constant dense<0.000000e+00> : vector<8x32xf32>
    %129 = tpu.matmul %127, %128, %cst_40 {dimension_numbers = #tpu.dot_dimension_numbers<[1], [0], [0], [1], [0, 0, 1, 1], [], []>} : vector<8x32xbf16>, vector<32x32xbf16>, vector<8x32xf32> -> vector<8x32xf32>
    %130 = arith.truncf %129 : vector<8x32xf32> to vector<8x32xbf16>
    %c0_41 = arith.constant 0 : index
    %c0_42 = arith.constant 0 : index
    %c0_43 = arith.constant 0 : index
    %131 = vector.load %arg2[%c0_41, %c0_42, %c0_43] : memref<1x8x32xf32, #tpu.memory_space<vmem>>, vector<1x8x32xf32>
    %132 = vector.shape_cast %131 : vector<1x8x32xf32> to vector<8x32xf32>
    %133 = arith.truncf %132 : vector<8x32xf32> to vector<8x32xbf16>
    %c0_44 = arith.constant 0 : index
    %c0_45 = arith.constant 0 : index
    %134 = vector.load %arg9[%c0_44, %c0_45] : memref<32x64xbf16, #tpu.memory_space<vmem>>, vector<32x64xbf16>
    %cst_46 = arith.constant dense<0.000000e+00> : vector<8x64xf32>
    %135 = tpu.matmul %133, %134, %cst_46 {dimension_numbers = #tpu.dot_dimension_numbers<[1], [0], [0], [1], [0, 0, 1, 1], [], []>} : vector<8x32xbf16>, vector<32x64xbf16>, vector<8x64xf32> -> vector<8x64xf32>
    %136 = arith.truncf %135 : vector<8x64xf32> to vector<8x64xbf16>
    %137 = vector.extract_strided_slice %136 {offsets = [0, 0], sizes = [8, 32], strides = [1, 1]} : vector<8x64xbf16> to vector<8x32xbf16>
    %138 = vector.extract_strided_slice %136 {offsets = [0, 32], sizes = [8, 32], strides = [1, 1]} : vector<8x64xbf16> to vector<8x32xbf16>
    %c0_47 = arith.constant 0 : index
    %c0_48 = arith.constant 0 : index
    %c0_49 = arith.constant 0 : index
    %139 = vector.load %arg11[%c0_47, %c0_48, %c0_49] : memref<1x1x8xf32, #tpu.memory_space<vmem>>, vector<1x1x8xf32>
    %140 = vector.shape_cast %139 : vector<1x1x8xf32> to vector<1x8xf32>
    %cst_50 = arith.constant 1.000000e+00 : f32
    %141 = vector.broadcast %cst_50 : f32 to vector<1x8xf32>
    %142 = arith.subf %141, %140 : vector<1x8xf32>
    %cst_51 = arith.constant -1.000000e+09 : f32
    %143 = vector.broadcast %cst_51 : f32 to vector<1x8xf32>
    %144 = arith.mulf %142, %143 : vector<1x8xf32>
    %145 = vector.extract_strided_slice %130 {offsets = [0, 0], sizes = [8, 8], strides = [1, 1]} : vector<8x32xbf16> to vector<8x8xbf16>
    %146 = vector.extract_strided_slice %137 {offsets = [0, 0], sizes = [8, 8], strides = [1, 1]} : vector<8x32xbf16> to vector<8x8xbf16>
    %147 = vector.extract_strided_slice %138 {offsets = [0, 0], sizes = [8, 8], strides = [1, 1]} : vector<8x32xbf16> to vector<8x8xbf16>
    %cst_52 = arith.constant dense<0.000000e+00> : vector<8x8xf32>
    %148 = tpu.matmul %145, %146, %cst_52 {dimension_numbers = #tpu.dot_dimension_numbers<[1], [1], [0], [0], [0, 0, 1, 0], [], []>} : vector<8x8xbf16>, vector<8x8xbf16>, vector<8x8xf32> -> vector<8x8xf32>
    %149 = vector.broadcast %144 : vector<1x8xf32> to vector<8x8xf32>
    %150 = arith.addf %148, %149 : vector<8x8xf32>
    %cst_53 = arith.constant dense<0xFF800000> : vector<8xf32>
    %151 = vector.multi_reduction <maximumf>, %150, %cst_53 [1] : vector<8x8xf32> to vector<8xf32>
    %152 = vector.shape_cast %151 : vector<8xf32> to vector<8x1xf32>
    %153 = vector.broadcast %152 : vector<8x1xf32> to vector<8x8xf32>
    %154 = arith.subf %150, %153 : vector<8x8xf32>
    %155 = math.exp %154 : vector<8x8xf32>
    %cst_54 = arith.constant dense<0.000000e+00> : vector<8xf32>
    %156 = vector.multi_reduction <add>, %155, %cst_54 [1] : vector<8x8xf32> to vector<8xf32>
    %157 = vector.shape_cast %156 : vector<8xf32> to vector<8x1xf32>
    %158 = tpu.reciprocal %157 {approx = true} : vector<8x1xf32> -> vector<8x1xf32>
    %159 = vector.broadcast %158 : vector<8x1xf32> to vector<8x8xf32>
    %160 = arith.mulf %155, %159 : vector<8x8xf32>
    %161 = arith.truncf %160 : vector<8x8xf32> to vector<8x8xbf16>
    %cst_55 = arith.constant dense<0.000000e+00> : vector<8x8xf32>
    %162 = tpu.matmul %161, %147, %cst_55 {dimension_numbers = #tpu.dot_dimension_numbers<[1], [0], [0], [1], [0, 0, 1, 1], [], []>} : vector<8x8xbf16>, vector<8x8xbf16>, vector<8x8xf32> -> vector<8x8xf32>
    %163 = vector.extract_strided_slice %130 {offsets = [0, 8], sizes = [8, 8], strides = [1, 1]} : vector<8x32xbf16> to vector<8x8xbf16>
    %164 = vector.extract_strided_slice %137 {offsets = [0, 8], sizes = [8, 8], strides = [1, 1]} : vector<8x32xbf16> to vector<8x8xbf16>
    %165 = vector.extract_strided_slice %138 {offsets = [0, 8], sizes = [8, 8], strides = [1, 1]} : vector<8x32xbf16> to vector<8x8xbf16>
    %cst_56 = arith.constant dense<0.000000e+00> : vector<8x8xf32>
    %166 = tpu.matmul %163, %164, %cst_56 {dimension_numbers = #tpu.dot_dimension_numbers<[1], [1], [0], [0], [0, 0, 1, 0], [], []>} : vector<8x8xbf16>, vector<8x8xbf16>, vector<8x8xf32> -> vector<8x8xf32>
    %167 = vector.broadcast %144 : vector<1x8xf32> to vector<8x8xf32>
    %168 = arith.addf %166, %167 : vector<8x8xf32>
    %cst_57 = arith.constant dense<0xFF800000> : vector<8xf32>
    %169 = vector.multi_reduction <maximumf>, %168, %cst_57 [1] : vector<8x8xf32> to vector<8xf32>
    %170 = vector.shape_cast %169 : vector<8xf32> to vector<8x1xf32>
    %171 = vector.broadcast %170 : vector<8x1xf32> to vector<8x8xf32>
    %172 = arith.subf %168, %171 : vector<8x8xf32>
    %173 = math.exp %172 : vector<8x8xf32>
    %cst_58 = arith.constant dense<0.000000e+00> : vector<8xf32>
    %174 = vector.multi_reduction <add>, %173, %cst_58 [1] : vector<8x8xf32> to vector<8xf32>
    %175 = vector.shape_cast %174 : vector<8xf32> to vector<8x1xf32>
    %176 = tpu.reciprocal %175 {approx = true} : vector<8x1xf32> -> vector<8x1xf32>
    %177 = vector.broadcast %176 : vector<8x1xf32> to vector<8x8xf32>
    %178 = arith.mulf %173, %177 : vector<8x8xf32>
    %179 = arith.truncf %178 : vector<8x8xf32> to vector<8x8xbf16>
    %cst_59 = arith.constant dense<0.000000e+00> : vector<8x8xf32>
    %180 = tpu.matmul %179, %165, %cst_59 {dimension_numbers = #tpu.dot_dimension_numbers<[1], [0], [0], [1], [0, 0, 1, 1], [], []>} : vector<8x8xbf16>, vector<8x8xbf16>, vector<8x8xf32> -> vector<8x8xf32>
    %181 = vector.extract_strided_slice %130 {offsets = [0, 16], sizes = [8, 8], strides = [1, 1]} : vector<8x32xbf16> to vector<8x8xbf16>
    %182 = vector.extract_strided_slice %137 {offsets = [0, 16], sizes = [8, 8], strides = [1, 1]} : vector<8x32xbf16> to vector<8x8xbf16>
    %183 = vector.extract_strided_slice %138 {offsets = [0, 16], sizes = [8, 8], strides = [1, 1]} : vector<8x32xbf16> to vector<8x8xbf16>
    %cst_60 = arith.constant dense<0.000000e+00> : vector<8x8xf32>
    %184 = tpu.matmul %181, %182, %cst_60 {dimension_numbers = #tpu.dot_dimension_numbers<[1], [1], [0], [0], [0, 0, 1, 0], [], []>} : vector<8x8xbf16>, vector<8x8xbf16>, vector<8x8xf32> -> vector<8x8xf32>
    %185 = vector.broadcast %144 : vector<1x8xf32> to vector<8x8xf32>
    %186 = arith.addf %184, %185 : vector<8x8xf32>
    %cst_61 = arith.constant dense<0xFF800000> : vector<8xf32>
    %187 = vector.multi_reduction <maximumf>, %186, %cst_61 [1] : vector<8x8xf32> to vector<8xf32>
    %188 = vector.shape_cast %187 : vector<8xf32> to vector<8x1xf32>
    %189 = vector.broadcast %188 : vector<8x1xf32> to vector<8x8xf32>
    %190 = arith.subf %186, %189 : vector<8x8xf32>
    %191 = math.exp %190 : vector<8x8xf32>
    %cst_62 = arith.constant dense<0.000000e+00> : vector<8xf32>
    %192 = vector.multi_reduction <add>, %191, %cst_62 [1] : vector<8x8xf32> to vector<8xf32>
    %193 = vector.shape_cast %192 : vector<8xf32> to vector<8x1xf32>
    %194 = tpu.reciprocal %193 {approx = true} : vector<8x1xf32> -> vector<8x1xf32>
    %195 = vector.broadcast %194 : vector<8x1xf32> to vector<8x8xf32>
    %196 = arith.mulf %191, %195 : vector<8x8xf32>
    %197 = arith.truncf %196 : vector<8x8xf32> to vector<8x8xbf16>
    %cst_63 = arith.constant dense<0.000000e+00> : vector<8x8xf32>
    %198 = tpu.matmul %197, %183, %cst_63 {dimension_numbers = #tpu.dot_dimension_numbers<[1], [0], [0], [1], [0, 0, 1, 1], [], []>} : vector<8x8xbf16>, vector<8x8xbf16>, vector<8x8xf32> -> vector<8x8xf32>
    %199 = vector.extract_strided_slice %130 {offsets = [0, 24], sizes = [8, 8], strides = [1, 1]} : vector<8x32xbf16> to vector<8x8xbf16>
    %200 = vector.extract_strided_slice %137 {offsets = [0, 24], sizes = [8, 8], strides = [1, 1]} : vector<8x32xbf16> to vector<8x8xbf16>
    %201 = vector.extract_strided_slice %138 {offsets = [0, 24], sizes = [8, 8], strides = [1, 1]} : vector<8x32xbf16> to vector<8x8xbf16>
    %cst_64 = arith.constant dense<0.000000e+00> : vector<8x8xf32>
    %202 = tpu.matmul %199, %200, %cst_64 {dimension_numbers = #tpu.dot_dimension_numbers<[1], [1], [0], [0], [0, 0, 1, 0], [], []>} : vector<8x8xbf16>, vector<8x8xbf16>, vector<8x8xf32> -> vector<8x8xf32>
    %203 = vector.broadcast %144 : vector<1x8xf32> to vector<8x8xf32>
    %204 = arith.addf %202, %203 : vector<8x8xf32>
    %cst_65 = arith.constant dense<0xFF800000> : vector<8xf32>
    %205 = vector.multi_reduction <maximumf>, %204, %cst_65 [1] : vector<8x8xf32> to vector<8xf32>
    %206 = vector.shape_cast %205 : vector<8xf32> to vector<8x1xf32>
    %207 = vector.broadcast %206 : vector<8x1xf32> to vector<8x8xf32>
    %208 = arith.subf %204, %207 : vector<8x8xf32>
    %209 = math.exp %208 : vector<8x8xf32>
    %cst_66 = arith.constant dense<0.000000e+00> : vector<8xf32>
    %210 = vector.multi_reduction <add>, %209, %cst_66 [1] : vector<8x8xf32> to vector<8xf32>
    %211 = vector.shape_cast %210 : vector<8xf32> to vector<8x1xf32>
    %212 = tpu.reciprocal %211 {approx = true} : vector<8x1xf32> -> vector<8x1xf32>
    %213 = vector.broadcast %212 : vector<8x1xf32> to vector<8x8xf32>
    %214 = arith.mulf %209, %213 : vector<8x8xf32>
    %215 = arith.truncf %214 : vector<8x8xf32> to vector<8x8xbf16>
    %cst_67 = arith.constant dense<0.000000e+00> : vector<8x8xf32>
    %216 = tpu.matmul %215, %201, %cst_67 {dimension_numbers = #tpu.dot_dimension_numbers<[1], [0], [0], [1], [0, 0, 1, 1], [], []>} : vector<8x8xbf16>, vector<8x8xbf16>, vector<8x8xf32> -> vector<8x8xf32>
    %217 = tpu.concatenate %162, %180, %198, %216 in 1 : vector<8x8xf32>, vector<8x8xf32>, vector<8x8xf32>, vector<8x8xf32> -> vector<8x32xf32>
    %218 = arith.truncf %217 : vector<8x32xf32> to vector<8x32xbf16>
    %c0_68 = arith.constant 0 : index
    %c0_69 = arith.constant 0 : index
    %219 = vector.load %arg10[%c0_68, %c0_69] : memref<32x32xbf16, #tpu.memory_space<vmem>>, vector<32x32xbf16>
    %cst_70 = arith.constant dense<0.000000e+00> : vector<8x32xf32>
    %220 = tpu.matmul %218, %219, %cst_70 {dimension_numbers = #tpu.dot_dimension_numbers<[1], [0], [0], [1], [0, 0, 1, 1], [], []>} : vector<8x32xbf16>, vector<32x32xbf16>, vector<8x32xf32> -> vector<8x32xf32>
    %221 = arith.addf %113, %220 : vector<8x32xf32>
    %c0_71 = arith.constant 0 : index
    %c0_72 = arith.constant 0 : index
    %222 = vector.load %arg12[%c0_71, %c0_72] : memref<1x32xf32, #tpu.memory_space<vmem>>, vector<1x32xf32>
    %223 = arith.mulf %221, %221 : vector<8x32xf32>
    %cst_73 = arith.constant dense<0.000000e+00> : vector<8xf32>
    %224 = vector.multi_reduction <add>, %223, %cst_73 [1] : vector<8x32xf32> to vector<8xf32>
    %225 = vector.shape_cast %224 : vector<8xf32> to vector<8x1xf32>
    %cst_74 = arith.constant 3.200000e+01 : f32
    %226 = vector.broadcast %cst_74 : f32 to vector<8x1xf32>
    %227 = arith.divf %225, %226 : vector<8x1xf32>
    %cst_75 = arith.constant 9.99999997E-7 : f32
    %228 = vector.broadcast %cst_75 : f32 to vector<8x1xf32>
    %229 = arith.addf %227, %228 : vector<8x1xf32>
    %230 = math.rsqrt %229 : vector<8x1xf32>
    %231 = vector.broadcast %230 : vector<8x1xf32> to vector<8x32xf32>
    %232 = arith.mulf %221, %231 : vector<8x32xf32>
    %233 = vector.broadcast %222 : vector<1x32xf32> to vector<8x32xf32>
    %234 = arith.mulf %232, %233 : vector<8x32xf32>
    %235 = arith.truncf %234 : vector<8x32xf32> to vector<8x32xbf16>
    %c0_76 = arith.constant 0 : index
    %c0_77 = arith.constant 0 : index
    %236 = vector.load %arg13[%c0_76, %c0_77] : memref<32x64xbf16, #tpu.memory_space<vmem>>, vector<32x64xbf16>
    %cst_78 = arith.constant dense<0.000000e+00> : vector<8x64xf32>
    %237 = tpu.matmul %235, %236, %cst_78 {dimension_numbers = #tpu.dot_dimension_numbers<[1], [0], [0], [1], [0, 0, 1, 1], [], []>} : vector<8x32xbf16>, vector<32x64xbf16>, vector<8x64xf32> -> vector<8x64xf32>
    %cst_79 = arith.constant 0.000000e+00 : f32
    %238 = vector.broadcast %cst_79 : f32 to vector<8x64xf32>
    %239 = arith.maximumf %237, %238 : vector<8x64xf32>
    %240 = arith.truncf %239 : vector<8x64xf32> to vector<8x64xbf16>
    %c0_80 = arith.constant 0 : index
    %c0_81 = arith.constant 0 : index
    %241 = vector.load %arg14[%c0_80, %c0_81] : memref<64x32xbf16, #tpu.memory_space<vmem>>, vector<64x32xbf16>
    %cst_82 = arith.constant dense<0.000000e+00> : vector<8x32xf32>
    %242 = tpu.matmul %240, %241, %cst_82 {dimension_numbers = #tpu.dot_dimension_numbers<[1], [0], [0], [1], [0, 0, 1, 1], [], []>} : vector<8x64xbf16>, vector<64x32xbf16>, vector<8x32xf32> -> vector<8x32xf32>
    %243 = arith.addf %221, %242 : vector<8x32xf32>
    %c0_83 = arith.constant 0 : index
    %c0_84 = arith.constant 0 : index
    %c0_85 = arith.constant 0 : index
    %244 = vector.load %arg15[%c0_83, %c0_84, %c0_85] : memref<1x8x32xf32, #tpu.memory_space<vmem>>, vector<1x8x32xf32>
    %245 = vector.shape_cast %244 : vector<1x8x32xf32> to vector<8x32xf32>
    %246 = vector.shape_cast %243 : vector<8x32xf32> to vector<1x8x32xf32>
    tpu.vector_store %arg15[%c0_83, %c0_84, %c0_85], %246 {strides = array<i32>} : memref<1x8x32xf32, #tpu.memory_space<vmem>>, vector<1x8x32xf32>,
    return
  }
  func.func @transform_0(%arg0: i32) -> (i32, i32, i32) {
    %c0_i32 = arith.constant 0 : i32
    %c0_i32_0 = arith.constant 0 : i32
    %c0_i32_1 = arith.constant 0 : i32
    return %arg0, %c0_i32, %c0_i32_0 : i32, i32, i32
  }
  func.func @transform_1(%arg0: i32) -> (i32, i32, i32) {
    %c0_i32 = arith.constant 0 : i32
    %c0_i32_0 = arith.constant 0 : i32
    %c0_i32_1 = arith.constant 0 : i32
    return %arg0, %c0_i32, %c0_i32_0 : i32, i32, i32
  }
  func.func @transform_2(%arg0: i32) -> (i32, i32) {
    %c0_i32 = arith.constant 0 : i32
    %c0_i32_0 = arith.constant 0 : i32
    %c0_i32_1 = arith.constant 0 : i32
    return %c0_i32, %c0_i32_0 : i32, i32
  }
  func.func @transform_3(%arg0: i32) -> (i32, i32) {
    %c0_i32 = arith.constant 0 : i32
    %c0_i32_0 = arith.constant 0 : i32
    %c0_i32_1 = arith.constant 0 : i32
    return %c0_i32, %c0_i32_0 : i32, i32
  }
  func.func @transform_4(%arg0: i32) -> (i32, i32) {
    %c0_i32 = arith.constant 0 : i32
    %c0_i32_0 = arith.constant 0 : i32
    %c0_i32_1 = arith.constant 0 : i32
    return %c0_i32, %c0_i32_0 : i32, i32
  }
  func.func @transform_5(%arg0: i32) -> (i32, i32, i32) {
    %c0_i32 = arith.constant 0 : i32
    %c0_i32_0 = arith.constant 0 : i32
    %c0_i32_1 = arith.constant 0 : i32
    %c0_i32_2 = arith.constant 0 : i32
    return %c0_i32, %c0_i32_0, %c0_i32_1 : i32, i32, i32
  }
  func.func @transform_6(%arg0: i32) -> (i32, i32) {
    %c0_i32 = arith.constant 0 : i32
    %c0_i32_0 = arith.constant 0 : i32
    %c0_i32_1 = arith.constant 0 : i32
    return %c0_i32, %c0_i32_0 : i32, i32
  }
  func.func @transform_7(%arg0: i32) -> (i32, i32) {
    %c0_i32 = arith.constant 0 : i32
    %c0_i32_0 = arith.constant 0 : i32
    %c0_i32_1 = arith.constant 0 : i32
    return %c0_i32, %c0_i32_0 : i32, i32
  }
  func.func @transform_8(%arg0: i32) -> (i32, i32) {
    %c0_i32 = arith.constant 0 : i32
    %c0_i32_0 = arith.constant 0 : i32
    %c0_i32_1 = arith.constant 0 : i32
    return %c0_i32, %c0_i32_0 : i32, i32
  }
  func.func @transform_9(%arg0: i32) -> (i32, i32) {
    %c0_i32 = arith.constant 0 : i32
    %c0_i32_0 = arith.constant 0 : i32
    %c0_i32_1 = arith.constant 0 : i32
    return %c0_i32, %c0_i32_0 : i32, i32
  }
  func.func @transform_10(%arg0: i32) -> (i32, i32, i32) {
    %c0_i32 = arith.constant 0 : i32
    %c0_i32_0 = arith.constant 0 : i32
    %c0_i32_1 = arith.constant 0 : i32
    return %arg0, %c0_i32, %c0_i32_0 : i32, i32, i32
  }
  func.func @transform_11(%arg0: i32) -> (i32, i32) {
    %c0_i32 = arith.constant 0 : i32
    %c0_i32_0 = arith.constant 0 : i32
    %c0_i32_1 = arith.constant 0 : i32
    return %c0_i32, %c0_i32_0 : i32, i32
  }
  func.func @transform_12(%arg0: i32) -> (i32, i32) {
    %c0_i32 = arith.constant 0 : i32
    %c0_i32_0 = arith.constant 0 : i32
    %c0_i32_1 = arith.constant 0 : i32
    return %c0_i32, %c0_i32_0 : i32, i32
  }
  func.func @transform_13(%arg0: i32) -> (i32, i32) {
    %c0_i32 = arith.constant 0 : i32
    %c0_i32_0 = arith.constant 0 : i32
    %c0_i32_1 = arith.constant 0 : i32
    return %c0_i32, %c0_i32_0 : i32, i32
  }
  func.func @transform_14(%arg0: i32) -> (i32, i32, i32) {
    %c0_i32 = arith.constant 0 : i32
    %c0_i32_0 = arith.constant 0 : i32
    %c0_i32_1 = arith.constant 0 : i32
    return %arg0, %c0_i32, %c0_i32_0 : i32, i32, i32
  }
}

module attributes {stable_mosaic.version = 11 : i64} {
  func.func @_lmhead_ce_kernel(%arg0: i32, %arg1: memref<1x8x32xf32, #tpu.memory_space<vmem>>, %arg2: memref<1x32xf32, #tpu.memory_space<vmem>>, %arg3: memref<64x32xbf16, #tpu.memory_space<vmem>>, %arg4: memref<1x8x1xi32, #tpu.memory_space<vmem>>, %arg5: memref<1x8x64xf32, #tpu.memory_space<vmem>>, %arg6: memref<1x1xf32, #tpu.memory_space<vmem>>, %arg7: memref<1x1xf32, #tpu.memory_space<vmem>>) attributes {dimension_semantics = [#tpu.dimension_semantics<arbitrary>], iteration_bounds = array<i64: 2>, scalar_prefetch = 0 : i64, scratch_operands = 0 : i64, tpu.core_type = #tpu.core_type<tc>, window_params = [{transform_indices = @transform_0, window_bounds = array<i64: 1, 8, 32>}, {pipeline_mode = #tpu.pipeline_mode<synchronous>, transform_indices = @transform_1, window_bounds = array<i64: 1, 32>}, {pipeline_mode = #tpu.pipeline_mode<synchronous>, transform_indices = @transform_2, window_bounds = array<i64: 64, 32>}, {transform_indices = @transform_3, window_bounds = array<i64: 1, 8, 1>}, {transform_indices = @transform_4, window_bounds = array<i64: 1, 8, 64>}, {pipeline_mode = #tpu.pipeline_mode<synchronous>, transform_indices = @transform_5, window_bounds = array<i64: 1, 1>}, {pipeline_mode = #tpu.pipeline_mode<synchronous>, transform_indices = @transform_6, window_bounds = array<i64: 1, 1>}]} {
    %c0_i32 = arith.constant 0 : i32
    %0 = arith.cmpi eq, %arg0, %c0_i32 : i32
    %1 = arith.extui %0 : i1 to i32
    %c0_i32_0 = arith.constant 0 : i32
    %2 = arith.cmpi ne, %1, %c0_i32_0 : i32
    scf.if %2 {
      %cst_30 = arith.constant 0.000000e+00 : f32
      %67 = vector.broadcast %cst_30 : f32 to vector<1x1xf32>
      %c0_31 = arith.constant 0 : index
      %c0_32 = arith.constant 0 : index
      %68 = vector.load %arg6[%c0_31, %c0_32] : memref<1x1xf32, #tpu.memory_space<vmem>>, vector<1x1xf32>
      tpu.vector_store %arg6[%c0_31, %c0_32], %67 {strides = array<i32>} : memref<1x1xf32, #tpu.memory_space<vmem>>, vector<1x1xf32>,
      %cst_33 = arith.constant 0.000000e+00 : f32
      %69 = vector.broadcast %cst_33 : f32 to vector<1x1xf32>
      %c0_34 = arith.constant 0 : index
      %c0_35 = arith.constant 0 : index
      %70 = vector.load %arg7[%c0_34, %c0_35] : memref<1x1xf32, #tpu.memory_space<vmem>>, vector<1x1xf32>
      tpu.vector_store %arg7[%c0_34, %c0_35], %69 {strides = array<i32>} : memref<1x1xf32, #tpu.memory_space<vmem>>, vector<1x1xf32>,
    } else {
    }
    %c0 = arith.constant 0 : index
    %c0_1 = arith.constant 0 : index
    %c0_2 = arith.constant 0 : index
    %3 = vector.load %arg1[%c0, %c0_1, %c0_2] : memref<1x8x32xf32, #tpu.memory_space<vmem>>, vector<1x8x32xf32>
    %4 = vector.shape_cast %3 : vector<1x8x32xf32> to vector<8x32xf32>
    %c0_3 = arith.constant 0 : index
    %c0_4 = arith.constant 0 : index
    %5 = vector.load %arg2[%c0_3, %c0_4] : memref<1x32xf32, #tpu.memory_space<vmem>>, vector<1x32xf32>
    %6 = arith.mulf %4, %4 : vector<8x32xf32>
    %cst = arith.constant dense<0.000000e+00> : vector<8xf32>
    %7 = vector.multi_reduction <add>, %6, %cst [1] : vector<8x32xf32> to vector<8xf32>
    %8 = vector.shape_cast %7 : vector<8xf32> to vector<8x1xf32>
    %cst_5 = arith.constant 3.200000e+01 : f32
    %9 = vector.broadcast %cst_5 : f32 to vector<8x1xf32>
    %10 = arith.divf %8, %9 : vector<8x1xf32>
    %cst_6 = arith.constant 9.99999997E-7 : f32
    %11 = vector.broadcast %cst_6 : f32 to vector<8x1xf32>
    %12 = arith.addf %10, %11 : vector<8x1xf32>
    %13 = math.rsqrt %12 : vector<8x1xf32>
    %14 = vector.broadcast %13 : vector<8x1xf32> to vector<8x32xf32>
    %15 = arith.mulf %4, %14 : vector<8x32xf32>
    %16 = vector.broadcast %5 : vector<1x32xf32> to vector<8x32xf32>
    %17 = arith.mulf %15, %16 : vector<8x32xf32>
    %cst_7 = arith.constant 0.176776692 : f32
    %18 = vector.broadcast %cst_7 : f32 to vector<8x32xf32>
    %19 = arith.mulf %17, %18 : vector<8x32xf32>
    %20 = arith.truncf %19 : vector<8x32xf32> to vector<8x32xbf16>
    %c0_8 = arith.constant 0 : index
    %c0_9 = arith.constant 0 : index
    %21 = vector.load %arg3[%c0_8, %c0_9] : memref<64x32xbf16, #tpu.memory_space<vmem>>, vector<64x32xbf16>
    %cst_10 = arith.constant dense<0.000000e+00> : vector<8x64xf32>
    %22 = tpu.matmul %20, %21, %cst_10 {dimension_numbers = #tpu.dot_dimension_numbers<[1], [1], [0], [0], [0, 0, 1, 0], [], []>} : vector<8x32xbf16>, vector<64x32xbf16>, vector<8x64xf32> -> vector<8x64xf32>
    %c0_11 = arith.constant 0 : index
    %c0_12 = arith.constant 0 : index
    %c0_13 = arith.constant 0 : index
    %23 = vector.load %arg5[%c0_11, %c0_12, %c0_13] : memref<1x8x64xf32, #tpu.memory_space<vmem>>, vector<1x8x64xf32>
    %24 = vector.shape_cast %23 : vector<1x8x64xf32> to vector<8x64xf32>
    %25 = vector.shape_cast %22 : vector<8x64xf32> to vector<1x8x64xf32>
    tpu.vector_store %arg5[%c0_11, %c0_12, %c0_13], %25 {strides = array<i32>} : memref<1x8x64xf32, #tpu.memory_space<vmem>>, vector<1x8x64xf32>,
    %c0_14 = arith.constant 0 : index
    %c0_15 = arith.constant 0 : index
    %c0_16 = arith.constant 0 : index
    %26 = vector.load %arg4[%c0_14, %c0_15, %c0_16] : memref<1x8x1xi32, #tpu.memory_space<vmem>>, vector<1x8x1xi32>
    %27 = vector.shape_cast %26 : vector<1x8x1xi32> to vector<8x1xi32>
    %cst_17 = arith.constant dense<0xFF800000> : vector<8xf32>
    %28 = vector.multi_reduction <maximumf>, %22, %cst_17 [1] : vector<8x64xf32> to vector<8xf32>
    %29 = vector.shape_cast %28 : vector<8xf32> to vector<8x1xf32>
    %30 = vector.broadcast %29 : vector<8x1xf32> to vector<8x64xf32>
    %31 = arith.subf %22, %30 : vector<8x64xf32>
    %32 = math.exp %31 : vector<8x64xf32>
    %cst_18 = arith.constant dense<0.000000e+00> : vector<8xf32>
    %33 = vector.multi_reduction <add>, %32, %cst_18 [1] : vector<8x64xf32> to vector<8xf32>
    %34 = vector.shape_cast %33 : vector<8xf32> to vector<8x1xf32>
    %35 = math.log %34 : vector<8x1xf32>
    %36 = arith.addf %35, %29 : vector<8x1xf32>
    %37 = tpu.iota {dimensions = array<i32: 1>} : vector<8x64xi32>
    %38 = vector.broadcast %27 : vector<8x1xi32> to vector<8x64xi32>
    %39 = arith.cmpi eq, %37, %38 : vector<8x64xi32>
    %40 = arith.extui %39 : vector<8x64xi1> to vector<8x64xi32>
    %41 = arith.sitofp %40 : vector<8x64xi32> to vector<8x64xf32>
    %42 = arith.mulf %41, %22 : vector<8x64xf32>
    %cst_19 = arith.constant dense<0.000000e+00> : vector<8xf32>
    %43 = vector.multi_reduction <add>, %42, %cst_19 [1] : vector<8x64xf32> to vector<8xf32>
    %44 = vector.shape_cast %43 : vector<8xf32> to vector<8x1xf32>
    %45 = arith.subf %36, %44 : vector<8x1xf32>
    %c-100_i32 = arith.constant -100 : i32
    %46 = vector.broadcast %c-100_i32 : i32 to vector<8x1xi32>
    %47 = arith.cmpi ne, %27, %46 : vector<8x1xi32>
    %48 = arith.extui %47 : vector<8x1xi1> to vector<8x1xi32>
    %49 = arith.sitofp %48 : vector<8x1xi32> to vector<8x1xf32>
    %c0_20 = arith.constant 0 : index
    %c0_21 = arith.constant 0 : index
    %50 = vector.load %arg6[%c0_20, %c0_21] : memref<1x1xf32, #tpu.memory_space<vmem>>, vector<1x1xf32>
    %51 = arith.mulf %45, %49 : vector<8x1xf32>
    %52 = vector.shape_cast %51 : vector<8x1xf32> to vector<1x8x1xf32>
    %cst_22 = arith.constant dense<0.000000e+00> : vector<1xf32>
    %53 = vector.multi_reduction <add>, %52, %cst_22 [1, 2] : vector<1x8x1xf32> to vector<1xf32>
    %54 = vector.shape_cast %53 : vector<1xf32> to vector<1x1x1xf32>
    %55 = vector.extract %54[0, 0, 0] : f32 from vector<1x1x1xf32>
    %56 = vector.broadcast %55 : f32 to vector<1x1xf32>
    %57 = arith.addf %50, %56 : vector<1x1xf32>
    %c0_23 = arith.constant 0 : index
    %c0_24 = arith.constant 0 : index
    %58 = vector.load %arg6[%c0_23, %c0_24] : memref<1x1xf32, #tpu.memory_space<vmem>>, vector<1x1xf32>
    tpu.vector_store %arg6[%c0_23, %c0_24], %57 {strides = array<i32>} : memref<1x1xf32, #tpu.memory_space<vmem>>, vector<1x1xf32>,
    %c0_25 = arith.constant 0 : index
    %c0_26 = arith.constant 0 : index
    %59 = vector.load %arg7[%c0_25, %c0_26] : memref<1x1xf32, #tpu.memory_space<vmem>>, vector<1x1xf32>
    %60 = vector.shape_cast %49 : vector<8x1xf32> to vector<1x8x1xf32>
    %cst_27 = arith.constant dense<0.000000e+00> : vector<1xf32>
    %61 = vector.multi_reduction <add>, %60, %cst_27 [1, 2] : vector<1x8x1xf32> to vector<1xf32>
    %62 = vector.shape_cast %61 : vector<1xf32> to vector<1x1x1xf32>
    %63 = vector.extract %62[0, 0, 0] : f32 from vector<1x1x1xf32>
    %64 = vector.broadcast %63 : f32 to vector<1x1xf32>
    %65 = arith.addf %59, %64 : vector<1x1xf32>
    %c0_28 = arith.constant 0 : index
    %c0_29 = arith.constant 0 : index
    %66 = vector.load %arg7[%c0_28, %c0_29] : memref<1x1xf32, #tpu.memory_space<vmem>>, vector<1x1xf32>
    tpu.vector_store %arg7[%c0_28, %c0_29], %65 {strides = array<i32>} : memref<1x1xf32, #tpu.memory_space<vmem>>, vector<1x1xf32>,
    return
  }
  func.func @transform_0(%arg0: i32) -> (i32, i32, i32) {
    %c0_i32 = arith.constant 0 : i32
    %c0_i32_0 = arith.constant 0 : i32
    %c0_i32_1 = arith.constant 0 : i32
    return %arg0, %c0_i32, %c0_i32_0 : i32, i32, i32
  }
  func.func @transform_1(%arg0: i32) -> (i32, i32) {
    %c0_i32 = arith.constant 0 : i32
    %c0_i32_0 = arith.constant 0 : i32
    %c0_i32_1 = arith.constant 0 : i32
    return %c0_i32, %c0_i32_0 : i32, i32
  }
  func.func @transform_2(%arg0: i32) -> (i32, i32) {
    %c0_i32 = arith.constant 0 : i32
    %c0_i32_0 = arith.constant 0 : i32
    %c0_i32_1 = arith.constant 0 : i32
    return %c0_i32, %c0_i32_0 : i32, i32
  }
  func.func @transform_3(%arg0: i32) -> (i32, i32, i32) {
    %c0_i32 = arith.constant 0 : i32
    %c0_i32_0 = arith.constant 0 : i32
    %c0_i32_1 = arith.constant 0 : i32
    return %arg0, %c0_i32, %c0_i32_0 : i32, i32, i32
  }
  func.func @transform_4(%arg0: i32) -> (i32, i32, i32) {
    %c0_i32 = arith.constant 0 : i32
    %c0_i32_0 = arith.constant 0 : i32
    %c0_i32_1 = arith.constant 0 : i32
    return %arg0, %c0_i32, %c0_i32_0 : i32, i32, i32
  }
  func.func @transform_5(%arg0: i32) -> (i32, i32) {
    %c0_i32 = arith.constant 0 : i32
    %c0_i32_0 = arith.constant 0 : i32
    %c0_i32_1 = arith.constant 0 : i32
    return %c0_i32, %c0_i32_0 : i32, i32
  }
  func.func @transform_6(%arg0: i32) -> (i32, i32) {
    %c0_i32 = arith.constant 0 : i32
    %c0_i32_0 = arith.constant 0 : i32
    %c0_i32_1 = arith.constant 0 : i32
    return %c0_i32, %c0_i32_0 : i32, i32
  }
}

</mosaic_0001>

<llo_original>
// kernel: forward_jit.5
$region0: #{forward_jit.5}
  #allocation0 [shape = 'u32[]', space=smem, size = 0x4, offset = 0x4, fixed_abs, tag = 'smem constant byte address 0x4 - core index']
  #allocation1 [shape = 'u32[144,128]{1,0:T(1,128)}', space=vmem, size = 0x12000, scoped, tag = 'internal scratch']
  %s0 = inlined_call_operand.vmem [shape: f32[2,8,32], index: 0, kind: input, shape index: {}]
  %s1 = inlined_call_operand.vmem [shape: f32[1,32], index: 1, kind: input, shape index: {}]
  %s2 = inlined_call_operand.vmem [shape: bf16[64,32], index: 2, kind: input, shape index: {}]
  %s3 = inlined_call_operand.vmem [shape: s32[2,8,1], index: 3, kind: input, shape index: {}]
  %s4 = inlined_call_operand.hbm [shape: f32[2,8,64], index: 4, kind: output, shape index: {0}]
  %s5 = inlined_call_operand.hbm [shape: f32[1,1], index: 5, kind: output, shape index: {1}]
  %s6 = inlined_call_operand.hbm [shape: f32[1,1], index: 6, kind: output, shape index: {2}]
  %7 = xla_tuple %s4, %s5, %s6
  %s8 = sld [smem:[#allocation0]]
  $region69: #{forward_jit.5} parent=0
    _
  %s10 = ssub.s32 1, %s8
  %s11 = scalar_select 0, %s10, %s8
  $region1: #{forward_jit.5} parent=0
    #allocation2 [shape = 'u8[8192]{0}', space=vmem, size = 0x2000, scoped, tag = 'output window, operand 0']
    #allocation3 [shape = 's32[2]{0}', space=sflag, size = 0x8, scoped, tag = 'scoped memory for forward_jit.5']
    #allocation4 [shape = 'u8[512]{0}', space=vmem, size = 0x400, scoped, tag = 'output window, operand 1, single buffered']
    #allocation5 [shape = 's32[1]{0}', space=sflag, size = 0x4, scoped, tag = 'scoped memory for forward_jit.5']
    #allocation6 [shape = 'u8[512]{0}', space=vmem, size = 0x400, scoped, tag = 'output window, operand 2, single buffered']
    %12 = vsyncpa [#allocation3], 0
    %s13 = scalar_lea.sflag [#allocation3], 1
    %14 = vsyncpa %s13, 0
    %15 = vsyncpa [#allocation5], 0
    loop: start=0, step=1, limit=4
    $region2: #{forward_jit.5} parent=1 // loop_pre_header
      _
    $region3: #{forward_jit.5} parent=1 // loop_header
      %s17 = sphi 0, %s21
      %p18 = scmp.ge.s32.totalorder %s17, 4
      %s27 = sphi 0, %s29
      %s30 = sphi 0, %s27
      %s31 = sphi 0, %s30
      %s47 = sphi 0, %s31
      %s51 = sphi 0, %s51
      %s53 = sphi 0, %s51
      %s54 = sphi 0, %s53
      %s68 = sphi 0, %s54
      %s72 = sphi 0, %s72
      %s74 = sphi 0, %s72
      %s75 = sphi 0, %s74
      %s89 = sphi 0, %s75
      %s95 = sphi 0, %s97
      %s98 = sphi 0, %s95
      %s99 = sphi 0, %s98
      %s115 = sphi 0, %s99
      %s121 = sphi 0, %s123
      %s124 = sphi 0, %s121
      %s125 = sphi 0, %s124
      %s141 = sphi 0, %s125
      %s145 = sphi 0, %s145
      %s147 = sphi 0, %s145
      %s148 = sphi 0, %s147
      %s162 = sphi 0, %s148
      %s166 = sphi 0, %s166
      %s168 = sphi 0, %s166
      %s169 = sphi 0, %s168
      %s183 = sphi 0, %s169
    $region4: #{forward_jit.5} parent=1 // loop_header_branch
      %20 = sbr.rel (%p18) target = $region8
    $region5: #{forward_jit.5} parent=1 // loop_body
      %s22 = ssub.s32 %s17, 1
      %s23 = ssub.s32 %s17, 2
      %s24 = sadd.s32 %s17, 1
      %s25 = ssub.s32 %s17, %s24
      %p26 = scmp.eq.s32.totalorder %s25, 0
      %s28 = sadd.s32 %s27, 1
      %s29 = scalar_select %p26, %s27, %s28
      %p32 = pneg %p26
      %p33 = scmp.eq.s32.totalorder %s17, 1
      %p34 = por %p32, %p33
      %p35 = scmp.ne.s32.totalorder %s27, %s30
      %p36 = scmp.eq.s32.totalorder %s17, 0
      %p37 = por %p35, %p36
      %p38 = scmp.ne.s32.totalorder %s27, %s30
      %p39 = scmp.eq.s32.totalorder %s22, 1
      %p40 = por %p38, %p39
      %p41 = scmp.ne.s32.totalorder %s30, %s31
      %p42 = scmp.eq.s32.totalorder %s22, 0
      %p43 = por %p41, %p42
      %p44 = scmp.ne.s32.totalorder %s30, %s31
      %p45 = scmp.eq.s32.totalorder %s23, 1
      %p46 = por %p44, %p45
      %p48 = scmp.ne.s32.totalorder %s31, %s47
      %p49 = scmp.eq.s32.totalorder %s23, 0
      %p50 = por %p48, %p49
      %s52 = sadd.s32 %s51, 1
      %p55 = scmp.eq.s32.totalorder %s17, 1
      %p56 = scmp.ne.s32.totalorder %s51, %s53
      %p57 = scmp.eq.s32.totalorder %s17, 0
      %p58 = por %p56, %p57
      %p59 = scmp.ne.s32.totalorder %s51, %s53
      %p60 = scmp.eq.s32.totalorder %s22, 1
      %p61 = por %p59, %p60
      %p62 = scmp.ne.s32.totalorder %s53, %s54
      %p63 = scmp.eq.s32.totalorder %s22, 0
      %p64 = por %p62, %p63
      %p65 = scmp.ne.s32.totalorder %s53, %s54
      %p66 = scmp.eq.s32.totalorder %s23, 1
      %p67 = por %p65, %p66
      %p69 = scmp.ne.s32.totalorder %s54, %s68
      %p70 = scmp.eq.s32.totalorder %s23, 0
      %p71 = por %p69, %p70
      %s73 = sadd.s32 %s72, 1
      %p76 = scmp.eq.s32.totalorder %s17, 1
      %p77 = scmp.ne.s32.totalorder %s72, %s74
      %p78 = scmp.eq.s32.totalorder %s17, 0
      %p79 = por %p77, %p78
      %p80 = scmp.ne.s32.totalorder %s72, %s74
      %p81 = scmp.eq.s32.totalorder %s22, 1
      %p82 = por %p80, %p81
      %p83 = scmp.ne.s32.totalorder %s74, %s75
      %p84 = scmp.eq.s32.totalorder %s22, 0
      %p85 = por %p83, %p84
      %p86 = scmp.ne.s32.totalorder %s74, %s75
      %p87 = scmp.eq.s32.totalorder %s23, 1
      %p88 = por %p86, %p87
      %p90 = scmp.ne.s32.totalorder %s75, %s89
      %p91 = scmp.eq.s32.totalorder %s23, 0
      %p92 = por %p90, %p91
      %s93 = ssub.s32 %s17, %s24
      %p94 = scmp.eq.s32.totalorder %s93, 0
      %s96 = sadd.s32 %s95, 1
      %s97 = scalar_select %p94, %s95, %s96
      %p100 = pneg %p94
      %p101 = scmp.eq.s32.totalorder %s17, 1
      %p102 = por %p100, %p101
      %p103 = scmp.ne.s32.totalorder %s95, %s98
      %p104 = scmp.eq.s32.totalorder %s17, 0
      %p105 = por %p103, %p104
      %p106 = scmp.ne.s32.totalorder %s95, %s98
      %p107 = scmp.eq.s32.totalorder %s22, 1
      %p108 = por %p106, %p107
      %p109 = scmp.ne.s32.totalorder %s98, %s99
      %p110 = scmp.eq.s32.totalorder %s22, 0
      %p111 = por %p109, %p110
      %p112 = scmp.ne.s32.totalorder %s98, %s99
      %p113 = scmp.eq.s32.totalorder %s23, 1
      %p114 = por %p112, %p113
      %p116 = scmp.ne.s32.totalorder %s99, %s115
      %p117 = scmp.eq.s32.totalorder %s23, 0
      %p118 = por %p116, %p117
      %s119 = ssub.s32 %s17, %s24
      %p120 = scmp.eq.s32.totalorder %s119, 0
      %s122 = sadd.s32 %s121, 1
      %s123 = scalar_select %p120, %s121, %s122
      %p126 = pneg %p120
      %p127 = scmp.eq.s32.totalorder %s17, 1
      %p128 = por %p126, %p127
      %p129 = scmp.ne.s32.totalorder %s121, %s124
      %p130 = scmp.eq.s32.totalorder %s17, 0
      %p131 = por %p129, %p130
      %p132 = scmp.ne.s32.totalorder %s121, %s124
      %p133 = scmp.eq.s32.totalorder %s22, 1
      %p134 = por %p132, %p133
      %p135 = scmp.ne.s32.totalorder %s124, %s125
      %p136 = scmp.eq.s32.totalorder %s22, 0
      %p137 = por %p135, %p136
      %p138 = scmp.ne.s32.totalorder %s124, %s125
      %p139 = scmp.eq.s32.totalorder %s23, 1
      %p140 = por %p138, %p139
      %p142 = scmp.ne.s32.totalorder %s125, %s141
      %p143 = scmp.eq.s32.totalorder %s23, 0
      %p144 = por %p142, %p143
      %s146 = sadd.s32 %s145, 1
      %p149 = scmp.eq.s32.totalorder %s17, 1
      %p150 = scmp.ne.s32.totalorder %s145, %s147
      %p151 = scmp.eq.s32.totalorder %s17, 0
      %p152 = por %p150, %p151
      %p153 = scmp.ne.s32.totalorder %s145, %s147
      %p154 = scmp.eq.s32.totalorder %s22, 1
      %p155 = por %p153, %p154
      %p156 = scmp.ne.s32.totalorder %s147, %s148
      %p157 = scmp.eq.s32.totalorder %s22, 0
      %p158 = por %p156, %p157
      %p159 = scmp.ne.s32.totalorder %s147, %s148
      %p160 = scmp.eq.s32.totalorder %s23, 1
      %p161 = por %p159, %p160
      %p163 = scmp.ne.s32.totalorder %s148, %s162
      %p164 = scmp.eq.s32.totalorder %s23, 0
      %p165 = por %p163, %p164
      %s167 = sadd.s32 %s166, 1
      %p170 = scmp.eq.s32.totalorder %s17, 1
      %p171 = scmp.ne.s32.totalorder %s166, %s168
      %p172 = scmp.eq.s32.totalorder %s17, 0
      %p173 = por %p171, %p172
      %p174 = scmp.ne.s32.totalorder %s166, %s168
      %p175 = scmp.eq.s32.totalorder %s22, 1
      %p176 = por %p174, %p175
      %p177 = scmp.ne.s32.totalorder %s168, %s169
      %p178 = scmp.eq.s32.totalorder %s22, 0
      %p179 = por %p177, %p178
      %p180 = scmp.ne.s32.totalorder %s168, %s169
      %p181 = scmp.eq.s32.totalorder %s23, 1
      %p182 = por %p180, %p181
      %p184 = scmp.ne.s32.totalorder %s169, %s183
      %p185 = scmp.eq.s32.totalorder %s23, 0
      %p186 = por %p184, %p185
      %p187 = scmp.le.s32.totalorder 1, %s17
      %p188 = scmp.lt.s32.totalorder %s17, 3
      %p189 = pnand %p187, %p188
      %p190 = pneg %p189
      // Predicated region
      $region9: #{forward_jit.5} parent=5 // pred_check
        _
      $region10: #{forward_jit.5} parent=5 // pred_check_branch
        %192 = sbr.rel (%p189) target = $region12
      $region11: #{forward_jit.5} parent=5 // pred_region
        %s193 = ssub.s32 %s17, 1
        // Predicated region
        $region13: #{forward_jit.5} parent=11 // pred_check
          %p194 = pneg %p64
        $region14: #{forward_jit.5} parent=11 // pred_check_branch
          %196 = sbr.rel (%p194) target = $region16
        $region15: #{forward_jit.5} parent=11 // pred_region
          _
        $region16: #{forward_jit.5} parent=11 // pred_fallthru
          _
        // Predicated region
        $region17: #{forward_jit.5} parent=11 // pred_check
          %p197 = pneg %p85
        $region18: #{forward_jit.5} parent=11 // pred_check_branch
          %199 = sbr.rel (%p197) target = $region20
        $region19: #{forward_jit.5} parent=11 // pred_region
          _
        $region20: #{forward_jit.5} parent=11 // pred_fallthru
          _
      $region12: #{forward_jit.5} parent=5 // pred_fallthru
        _
      %p200 = scmp.lt.s32.totalorder %s17, 2
      // Predicated region
      $region21: #{forward_jit.5} parent=5 // pred_check
        %p201 = pneg %p200
      $region22: #{forward_jit.5} parent=5 // pred_check_branch
        %203 = sbr.rel (%p201) target = $region24
      $region23: #{forward_jit.5} parent=5 // pred_region
        // Predicated region
        $region25: #{forward_jit.5} parent=23 // pred_check
          %p204 = pneg %p37
        $region26: #{forward_jit.5} parent=23 // pred_check_branch
          %206 = sbr.rel (%p204) target = $region28
        $region27: #{forward_jit.5} parent=23 // pred_region
          %p207 = scmp.lt.s32.totalorder %s17, 1
          %s208 = scalar_select %p207, %s17, 1
          %s209 = smul.addr %s208, 8
          %s210 = scalar_lea.vmem %s0, %s209
        $region28: #{forward_jit.5} parent=23 // pred_fallthru
          _
        // Predicated region
        $region29: #{forward_jit.5} parent=23 // pred_check
          %p211 = pneg %p105
        $region30: #{forward_jit.5} parent=23 // pred_check_branch
          %213 = sbr.rel (%p211) target = $region32
        $region31: #{forward_jit.5} parent=23 // pred_region
          %p214 = scmp.lt.s32.totalorder %s17, 1
          %s215 = scalar_select %p214, %s17, 1
          %s216 = smul.addr %s215, 8
          %s217 = scalar_lea.vmem %s3, %s216
        $region32: #{forward_jit.5} parent=23 // pred_fallthru
          _
      $region24: #{forward_jit.5} parent=5 // pred_fallthru
        _
      %p218 = scmp.le.s32.totalorder 1, %s17
      %p219 = scmp.lt.s32.totalorder %s17, 3
      %p220 = pnand %p218, %p219
      %p221 = pneg %p220
      // Predicated region
      $region33: #{forward_jit.5} parent=5 // pred_check
        _
      $region34: #{forward_jit.5} parent=5 // pred_check_branch
        %223 = sbr.rel (%p220) target = $region36
      $region35: #{forward_jit.5} parent=5 // pred_region
        %s224 = ssub.s32 %s17, 1
        %p225 = scmp.lt.s32.totalorder %s22, 1
        %s226 = scalar_select %p225, %s22, 1
        %s227 = smul.addr %s226, 8
        %s228 = scalar_lea.vmem %s0, %s227
        %p229 = pneg %p43
        %p230 = pneg %p40
        %p231 = pneg %p64
        %p232 = pneg %p61
        %p233 = pneg %p85
        %p234 = pneg %p82
        %p235 = scmp.lt.s32.totalorder %s22, 1
        %s236 = scalar_select %p235, %s22, 1
        %s237 = smul.addr %s236, 8
        %s238 = scalar_lea.vmem %s3, %s237
        %p239 = pneg %p111
        %p240 = pneg %p108
        %p241 = pneg %p137
        %p242 = pneg %p134
        %s243 = sand.u32 %s124, 1
        %s244 = scalar_lea.sflag [#allocation3], %s243
        %s245 = sand.u32 %s124, 1
        %s246 = smul.addr %s245, 8
        %s247 = scalar_lea.vmem [#allocation2], %s246
        %p248 = pneg %p158
        %p249 = pneg %p155
        %p250 = pneg %p179
        %p251 = pneg %p176
        %p252 = scmp.lt.s32.totalorder %s22, 1
        %s253 = scalar_select %p252, %s22, 1
        %s254 = smul.addr %s253, 8
        %s255 = scalar_lea.vmem %s0, %s254
        %p256 = scmp.lt.s32.totalorder %s22, 1
        %s257 = scalar_select %p256, %s22, 1
        %s258 = smul.addr %s257, 8
        %s259 = scalar_lea.vmem %s3, %s258
        %p261 = scmp.eq.s32.totalorder %s22, 0
        // Predicated region
        $region37: #{forward_jit.5} parent=35 // pred_check
          %p262 = pneg %p261
        $region38: #{forward_jit.5} parent=35 // pred_check_branch
          %264 = sbr.rel (%p262) target = $region40
        $region39: #{forward_jit.5} parent=35 // pred_region
          %vm265 = vcmask 0
          %266 = vst.msk [vmem:[#allocation4] sm:$0x1] %vm265, 0.0
          %267 = vst.msk [vmem:[#allocation6] sm:$0x1] %vm265, 0.0
        $region40: #{forward_jit.5} parent=35 // pred_fallthru
          _
        %v268 = vld [vmem:[%s255] sm:$0xff]
        %v269 = vld [vmem:[%s1] sm:$0x1]
        %v270 = vmul.f32 %v268, %v268
        %vm271 = vcmask 261120
        %v272 = vsel %vm271, %v270, 0.0
        %273 = vadd.xlane.f32.xlu0 %v272
        %v274 = vpop.xlane.xlu0 %273
        %v275 = vrcp.pop 32.0
        %v276 = vmul.f32 %v274, %v275
        %v277 = vadd.f32 %v276, 1e-06
        %v278 = vrsqrt.pop %v277
        %v279 = vmul.f32 %v268, %v278
        %v281 = vlaneseq
        %v282 = vshrl.u32 %v281, 7
        %v283 = vsub.s32 0, %v282
        %v284 = vrot.slane %v269, %v283
        %v286 = vmul.f32 %v279, %v284
        %v287 = vmul.f32 %v286, 0.17677669
        %v288 = vpack.c.bf16 %v287, %v287
        %v289 = vld [vmem:[%s2] sm:$0xf]
        %v290 = vld [vmem:[%s2 + $0x4] sm:$0xf]
        %v291 = vld [vmem:[%s2 + $0x8] sm:$0xf]
        %v292 = vld [vmem:[%s2 + $0xc] sm:$0xf]
        %v293 = vld [vmem:[%s2 + $0x10] sm:$0xf]
        %v294 = vld [vmem:[%s2 + $0x14] sm:$0xf]
        %v295 = vld [vmem:[%s2 + $0x18] sm:$0xf]
        %v296 = vld [vmem:[%s2 + $0x1c] sm:$0xf]
        %v305 = vunpack.c.l.b16 %v289
        %v306 = vunpack.c.l.b16 %v290
        %v307 = vunpack.c.l.b16 %v291
        %v308 = vunpack.c.l.b16 %v292
        %v309 = vunpack.c.l.b16 %v293
        %v310 = vunpack.c.l.b16 %v294
        %v311 = vunpack.c.l.b16 %v295
        %v312 = vunpack.c.l.b16 %v296
        %v313 = vpack.c.b16 %v306, %v305
        %v314 = vpack.c.b16 %v308, %v307
        %v315 = vpack.c.b16 %v310, %v309
        %v316 = vpack.c.b16 %v312, %v311
        %v318 = vsel %vm271, %v288, 0
        %v321 = vsel %vm271, %v313, 0
        %v324 = vsel %vm271, %v314, 0
        %v327 = vsel %vm271, %v315, 0
        %v330 = vsel %vm271, %v316, 0
        %332 = vmatprep.subr.bf16.mxu0 0
        %333 = vmatpush1.bf16.xpose.msra.mxu0 %v321
        %334 = vmatprep.subr.bf16.mxu0 0
        %335 = vmatpush1.bf16.xpose.msra.mxu0 %v324
        %336 = vmatprep.subr.bf16.mxu0 0
        %337 = vmatpush1.bf16.xpose.msra.mxu0 %v327
        %338 = vmatprep.subr.bf16.mxu0 0
        %339 = vmatpush1.bf16.xpose.msra.mxu0 %v330
        %340 = vmatprep.subr.bf16.mxu0 0
        %341 = vmatpush1.bf16.xpose.msra.mxu0 0
        %342 = vmatprep.subr.bf16.mxu0 0
        %343 = vmatpush1.bf16.xpose.msra.mxu0 0
        %344 = vmatprep.subr.bf16.mxu0 0
        %345 = vmatpush1.bf16.xpose.msra.mxu0 0
        %346 = vmatprep.subr.bf16.mxu0 0
        %347 = vmatpush1.bf16.xpose.msra.mxu0 0
        %348 = vmatprep.subr.bf16.mxu0 0
        %349 = vmatpush1.bf16.xpose.msra.mxu0 0
        %350 = vmatprep.subr.bf16.mxu0 0
        %351 = vmatpush1.bf16.xpose.msra.mxu0 0
        %352 = vmatprep.subr.bf16.mxu0 0
        %353 = vmatpush1.bf16.xpose.msra.mxu0 0
        %354 = vmatprep.subr.bf16.mxu0 0
        %355 = vmatpush1.bf16.xpose.msra.mxu0 0
        %356 = vmatprep.subr.bf16.mxu0 0
        %357 = vmatpush1.bf16.xpose.msra.mxu0 0
        %358 = vmatprep.subr.bf16.mxu0 0
        %359 = vmatpush1.bf16.xpose.msra.mxu0 0
        %360 = vmatprep.subr.bf16.mxu0 0
        %361 = vmatpush1.bf16.xpose.msra.mxu0 0
        %362 = vmatprep.subr.bf16.mxu0 0
        %363 = vmatpush1.bf16.xpose.msra.mxu0 0
        %364 = vmatprep.mubr.bf16.mxu0 0
        %365 = vmatmul.mubr.bf16.gmra.mrb[0].mxu0 %v318
        %v366 = vpop.f32.mrb[0].mxu0
        %v367 = vadd.f32 0.0, %v366
        %v368 = vpop.f32.mrb[0].mxu0
        %v369 = vpop.f32.mrb[0].mxu0
        %v370 = vpop.f32.mrb[0].mxu0
        %371 = vdwg.mxu0
        %vm372 = vcmask 523264
        %373 = vst.msk [vmem:[%s247] sm:$0xff] %vm372, %v367
        %v374 = vld [vmem:[%s259] sm:$0xff]
        %v375 = vsel %vm372, %v367, -inf
        %376 = vmax.xlane.f32.xlu0 %v375
        %v377 = vpop.xlane.xlu0 %376
        %v378 = vsub.f32 %v367, %v377
        %v379 = vmul.f32 %v378, 1.442695
        %v380 = vpow.pop %v379
        %v381 = vsel %vm372, %v380, 0.0
        %382 = vadd.xlane.f32.xlu0 %v381
        %v383 = vpop.xlane.xlu0 %382
        %v384 = vlog2.pop %v383
        %v385 = vmul.f32 %v384, 0.6931472
        %v386 = vadd.f32 %v385, %v377
        %v387 = vlaneseq
        %v388 = vand.u32 %v387, 127
        %389 = vset.pattern.permute.xlu0 0
        %390 = vperm.xlu0 %389, %v374
        %v391 = vpop.permute.xlu0 %390
        %vm392 = vcmp.eq.s32.totalorder %v388, %v391
        %v393 = vsel %vm392, 1, 0
        %v394 = vcvt.s32.f32 %v393
        %v395 = vmul.f32 %v394, %v367
        %v396 = vsel %vm372, %v395, 0.0
        %397 = vadd.xlane.f32.xlu0 %v396
        %v398 = vpop.xlane.xlu0 %397
        %v399 = vsub.f32 %v386, %v398
        %vm400 = vcmp.ne.s32.totalorder %v374, 4294967196
        %v401 = vsel %vm400, 1, 0
        %v402 = vcvt.s32.f32 %v401
        %v403 = vld [vmem:[#allocation4] sm:$0x1]
        %v404 = vmul.f32 %v399, %v402
        %vm405 = vcmask 7168
        %v406 = vsel %vm405, %v404, 0.0
        %407 = vadd.xlane.f32.xlu0 %v406
        %v408 = vpop.xlane.xlu0 %407
        %v409 = vrot.slane %v408, 4
        %v410 = vadd.f32 %v408, %v409
        %v411 = vrot.slane %v410, 2
        %v412 = vadd.f32 %v410, %v411
        %v413 = vrot.slane %v412, 1
        %v414 = vadd.f32 %v412, %v413
        %s415 = vtos %v414
        %v416 = vstv %s415
        %v417 = vadd.f32 %v403, %v416
        %vm418 = vcmask 0
        %419 = vst.msk [vmem:[#allocation4] sm:$0x1] %vm418, %v417
        %v420 = vld [vmem:[#allocation6] sm:$0x1]
        %v421 = vsel %vm405, %v402, 0.0
        %422 = vadd.xlane.f32.xlu0 %v421
        %v423 = vpop.xlane.xlu0 %422
        %v424 = vrot.slane %v423, 4
        %v425 = vadd.f32 %v423, %v424
        %v426 = vrot.slane %v425, 2
        %v427 = vadd.f32 %v425, %v426
        %v428 = vrot.slane %v427, 1
        %v429 = vadd.f32 %v427, %v428
        %s430 = vtos %v429
        %v431 = vstv %s430
        %v432 = vadd.f32 %v420, %v431
        %433 = vst.msk [vmem:[#allocation6] sm:$0x1] %vm418, %v432
        %s434 = sand.u32 %s124, 1
        %s435 = scalar_lea.sflag [#allocation3], %s434
        %s436 = sand.u32 %s124, 1
        %s437 = smul.addr %s436, 8
        %s438 = scalar_lea.vmem [#allocation2], %s437
        // Predicated region
        $region41: #{forward_jit.5} parent=35 // pred_check
          %p439 = pneg %p134
        $region42: #{forward_jit.5} parent=35 // pred_check_branch
          %441 = sbr.rel (%p439) target = $region44
        $region43: #{forward_jit.5} parent=35 // pred_region
          %s443 = ssub.s32 128, 128
          %444 = vsyncadd %s435, %s443
          %s445 = smul.addr %s22, 128
          %s446 = scalar_lea.hbm %s4, %s445
          %s448 = sshll.u32 %s438, 4
          %s449 = int_to_ptr.vmem [resolvable:$true] %s448
          %451 = dma.vmem_to_hbm [thread:$0]  %s449, 128, %s446, %s435
        $region44: #{forward_jit.5} parent=35 // pred_fallthru
          _
        // Predicated region
        $region45: #{forward_jit.5} parent=35 // pred_check
          %p452 = pneg %p155
        $region46: #{forward_jit.5} parent=35 // pred_check_branch
          %454 = sbr.rel (%p452) target = $region48
        $region47: #{forward_jit.5} parent=35 // pred_region
          %s456 = ssub.s32 16, 16
          %457 = vsyncadd [#allocation5], %s456
          %s459 = sshll.u32 [#allocation4], 4
          %s460 = int_to_ptr.vmem [resolvable:$true] %s459
          %462 = dma.vmem_to_hbm [thread:$0]  %s460, 16, %s5, [#allocation5]
        $region48: #{forward_jit.5} parent=35 // pred_fallthru
          _
        // Predicated region
        $region49: #{forward_jit.5} parent=35 // pred_check
          %p463 = pneg %p176
        $region50: #{forward_jit.5} parent=35 // pred_check_branch
          %465 = sbr.rel (%p463) target = $region52
        $region51: #{forward_jit.5} parent=35 // pred_region
          %s467 = ssub.s32 16, 16
          %468 = vsyncadd [#allocation5], %s467
          %s470 = sshll.u32 [#allocation6], 4
          %s471 = int_to_ptr.vmem [resolvable:$true] %s470
          %473 = dma.vmem_to_hbm [thread:$0]  %s471, 16, %s6, [#allocation5]
        $region52: #{forward_jit.5} parent=35 // pred_fallthru
          _
        // Predicated region
        $region53: #{forward_jit.5} parent=35 // pred_check
          %p474 = pneg %p155
        $region54: #{forward_jit.5} parent=35 // pred_check_branch
          %476 = sbr.rel (%p474) target = $region56
        $region55: #{forward_jit.5} parent=35 // pred_region
          %477 = dma.done [#allocation5], 16
        $region56: #{forward_jit.5} parent=35 // pred_fallthru
          _
        // Predicated region
        $region57: #{forward_jit.5} parent=35 // pred_check
          %p478 = pneg %p176
        $region58: #{forward_jit.5} parent=35 // pred_check_branch
          %480 = sbr.rel (%p478) target = $region60
        $region59: #{forward_jit.5} parent=35 // pred_region
          %481 = dma.done [#allocation5], 16
        $region60: #{forward_jit.5} parent=35 // pred_fallthru
          _
      $region36: #{forward_jit.5} parent=5 // pred_fallthru
        _
      %p482 = scmp.le.s32.totalorder 2, %s17
      // Predicated region
      $region61: #{forward_jit.5} parent=5 // pred_check
        %p483 = pneg %p482
      $region62: #{forward_jit.5} parent=5 // pred_check_branch
        %485 = sbr.rel (%p483) target = $region64
      $region63: #{forward_jit.5} parent=5 // pred_region
        %s486 = ssub.s32 %s17, 2
        // Predicated region
        $region65: #{forward_jit.5} parent=63 // pred_check
          %p487 = pneg %p140
        $region66: #{forward_jit.5} parent=63 // pred_check_branch
          %489 = sbr.rel (%p487) target = $region68
        $region67: #{forward_jit.5} parent=63 // pred_region
          %s490 = sand.u32 %s125, 1
          %s491 = scalar_lea.sflag [#allocation3], %s490
          %s492 = sand.u32 %s125, 1
          %s493 = smul.addr %s492, 8
          %s494 = scalar_lea.vmem [#allocation2], %s493
          %495 = dma.done %s491, 128
        $region68: #{forward_jit.5} parent=63 // pred_fallthru
          _
      $region64: #{forward_jit.5} parent=5 // pred_fallthru
        _
    $region6: #{forward_jit.5} parent=1 // loop_footer
      %s21 = sadd.s32 1, %s17
    $region7: #{forward_jit.5} parent=1 // loop_footer_branch
      %16 = sbr.rel target = $region3
    $region8: #{forward_jit.5} parent=1 // loop_exit
      _
    %496 = vsyncpa [#allocation3], 1
    %s497 = scalar_lea.sflag [#allocation3], 1
    %498 = vsyncpa %s497, 1
    %499 = vsyncpa [#allocation5], 1

// kernel: forward_jit.3
$region0: #{forward_jit.3}
  #allocation0 [shape = 'u32[]', space=smem, size = 0x4, offset = 0x4, fixed_abs, tag = 'smem constant byte address 0x4 - core index']
  #allocation1 [shape = 'u32[144,128]{1,0:T(1,128)}', space=vmem, size = 0x12000, scoped, tag = 'internal scratch']
  %s0 = inlined_call_operand.vmem [shape: f32[2,8,32], index: 0, kind: input, shape index: {}]
  %s1 = inlined_call_operand.vmem [shape: f32[1,32], index: 1, kind: input, shape index: {}]
  %s2 = inlined_call_operand.vmem [shape: bf16[32,96], index: 2, kind: input, shape index: {}]
  %s3 = inlined_call_operand.vmem [shape: bf16[32,32], index: 3, kind: input, shape index: {}]
  %s4 = inlined_call_operand.vmem [shape: f32[4,8,8], index: 4, kind: input, shape index: {}]
  %s5 = inlined_call_operand.vmem [shape: f32[2,1,8], index: 5, kind: input, shape index: {}]
  %s6 = inlined_call_operand.vmem [shape: f32[1,32], index: 6, kind: input, shape index: {}]
  %s7 = inlined_call_operand.vmem [shape: bf16[32,64], index: 7, kind: input, shape index: {}]
  %s8 = inlined_call_operand.vmem [shape: bf16[64,32], index: 8, kind: input, shape index: {}]
  %s9 = inlined_call_operand.vmem [shape: f32[1,32], index: 9, kind: input, shape index: {}]
  %s10 = inlined_call_operand.vmem [shape: f32[2,8,32], index: 10, kind: output, shape index: {}]
  %s11 = sld [smem:[#allocation0]]
  $region73: #{forward_jit.3} parent=0
    _
  %s13 = ssub.s32 1, %s11
  %s14 = scalar_select 0, %s13, %s11
  loop: start=0, step=1, limit=4
  $region2: #{forward_jit.3} parent=0 // loop_pre_header
    _
  $region3: #{forward_jit.3} parent=0 // loop_header
    %s16 = sphi 0, %s20
    %p17 = scmp.ge.s32.totalorder %s16, 4
    %s26 = sphi 0, %s28
    %s29 = sphi 0, %s26
    %s30 = sphi 0, %s29
    %s46 = sphi 0, %s30
    %s50 = sphi 0, %s50
    %s52 = sphi 0, %s50
    %s53 = sphi 0, %s52
    %s67 = sphi 0, %s53
    %s71 = sphi 0, %s71
    %s73 = sphi 0, %s71
    %s74 = sphi 0, %s73
    %s88 = sphi 0, %s74
    %s92 = sphi 0, %s92
    %s94 = sphi 0, %s92
    %s95 = sphi 0, %s94
    %s109 = sphi 0, %s95
    %s113 = sphi 0, %s113
    %s115 = sphi 0, %s113
    %s116 = sphi 0, %s115
    %s130 = sphi 0, %s116
    %s136 = sphi 0, %s138
    %s139 = sphi 0, %s136
    %s140 = sphi 0, %s139
    %s156 = sphi 0, %s140
    %s160 = sphi 0, %s160
    %s162 = sphi 0, %s160
    %s163 = sphi 0, %s162
    %s177 = sphi 0, %s163
    %s181 = sphi 0, %s181
    %s183 = sphi 0, %s181
    %s184 = sphi 0, %s183
    %s198 = sphi 0, %s184
    %s202 = sphi 0, %s202
    %s204 = sphi 0, %s202
    %s205 = sphi 0, %s204
    %s219 = sphi 0, %s205
    %s223 = sphi 0, %s223
    %s225 = sphi 0, %s223
    %s226 = sphi 0, %s225
    %s240 = sphi 0, %s226
    %s246 = sphi 0, %s248
    %s249 = sphi 0, %s246
    %s250 = sphi 0, %s249
    %s266 = sphi 0, %s250
  $region4: #{forward_jit.3} parent=0 // loop_header_branch
    %19 = sbr.rel (%p17) target = $region8
  $region5: #{forward_jit.3} parent=0 // loop_body
    %s21 = ssub.s32 %s16, 1
    %s22 = ssub.s32 %s16, 2
    %s23 = sadd.s32 %s16, 1
    %s24 = ssub.s32 %s16, %s23
    %p25 = scmp.eq.s32.totalorder %s24, 0
    %s27 = sadd.s32 %s26, 1
    %s28 = scalar_select %p25, %s26, %s27
    %p31 = pneg %p25
    %p32 = scmp.eq.s32.totalorder %s16, 1
    %p33 = por %p31, %p32
    %p34 = scmp.ne.s32.totalorder %s26, %s29
    %p35 = scmp.eq.s32.totalorder %s16, 0
    %p36 = por %p34, %p35
    %p37 = scmp.ne.s32.totalorder %s26, %s29
    %p38 = scmp.eq.s32.totalorder %s21, 1
    %p39 = por %p37, %p38
    %p40 = scmp.ne.s32.totalorder %s29, %s30
    %p41 = scmp.eq.s32.totalorder %s21, 0
    %p42 = por %p40, %p41
    %p43 = scmp.ne.s32.totalorder %s29, %s30
    %p44 = scmp.eq.s32.totalorder %s22, 1
    %p45 = por %p43, %p44
    %p47 = scmp.ne.s32.totalorder %s30, %s46
    %p48 = scmp.eq.s32.totalorder %s22, 0
    %p49 = por %p47, %p48
    %s51 = sadd.s32 %s50, 1
    %p54 = scmp.eq.s32.totalorder %s16, 1
    %p55 = scmp.ne.s32.totalorder %s50, %s52
    %p56 = scmp.eq.s32.totalorder %s16, 0
    %p57 = por %p55, %p56
    %p58 = scmp.ne.s32.totalorder %s50, %s52
    %p59 = scmp.eq.s32.totalorder %s21, 1
    %p60 = por %p58, %p59
    %p61 = scmp.ne.s32.totalorder %s52, %s53
    %p62 = scmp.eq.s32.totalorder %s21, 0
    %p63 = por %p61, %p62
    %p64 = scmp.ne.s32.totalorder %s52, %s53
    %p65 = scmp.eq.s32.totalorder %s22, 1
    %p66 = por %p64, %p65
    %p68 = scmp.ne.s32.totalorder %s53, %s67
    %p69 = scmp.eq.s32.totalorder %s22, 0
    %p70 = por %p68, %p69
    %s72 = sadd.s32 %s71, 1
    %p75 = scmp.eq.s32.totalorder %s16, 1
    %p76 = scmp.ne.s32.totalorder %s71, %s73
    %p77 = scmp.eq.s32.totalorder %s16, 0
    %p78 = por %p76, %p77
    %p79 = scmp.ne.s32.totalorder %s71, %s73
    %p80 = scmp.eq.s32.totalorder %s21, 1
    %p81 = por %p79, %p80
    %p82 = scmp.ne.s32.totalorder %s73, %s74
    %p83 = scmp.eq.s32.totalorder %s21, 0
    %p84 = por %p82, %p83
    %p85 = scmp.ne.s32.totalorder %s73, %s74
    %p86 = scmp.eq.s32.totalorder %s22, 1
    %p87 = por %p85, %p86
    %p89 = scmp.ne.s32.totalorder %s74, %s88
    %p90 = scmp.eq.s32.totalorder %s22, 0
    %p91 = por %p89, %p90
    %s93 = sadd.s32 %s92, 1
    %p96 = scmp.eq.s32.totalorder %s16, 1
    %p97 = scmp.ne.s32.totalorder %s92, %s94
    %p98 = scmp.eq.s32.totalorder %s16, 0
    %p99 = por %p97, %p98
    %p100 = scmp.ne.s32.totalorder %s92, %s94
    %p101 = scmp.eq.s32.totalorder %s21, 1
    %p102 = por %p100, %p101
    %p103 = scmp.ne.s32.totalorder %s94, %s95
    %p104 = scmp.eq.s32.totalorder %s21, 0
    %p105 = por %p103, %p104
    %p106 = scmp.ne.s32.totalorder %s94, %s95
    %p107 = scmp.eq.s32.totalorder %s22, 1
    %p108 = por %p106, %p107
    %p110 = scmp.ne.s32.totalorder %s95, %s109
    %p111 = scmp.eq.s32.totalorder %s22, 0
    %p112 = por %p110, %p111
    %s114 = sadd.s32 %s113, 1
    %p117 = scmp.eq.s32.totalorder %s16, 1
    %p118 = scmp.ne.s32.totalorder %s113, %s115
    %p119 = scmp.eq.s32.totalorder %s16, 0
    %p120 = por %p118, %p119
    %p121 = scmp.ne.s32.totalorder %s113, %s115
    %p122 = scmp.eq.s32.totalorder %s21, 1
    %p123 = por %p121, %p122
    %p124 = scmp.ne.s32.totalorder %s115, %s116
    %p125 = scmp.eq.s32.totalorder %s21, 0
    %p126 = por %p124, %p125
    %p127 = scmp.ne.s32.totalorder %s115, %s116
    %p128 = scmp.eq.s32.totalorder %s22, 1
    %p129 = por %p127, %p128
    %p131 = scmp.ne.s32.totalorder %s116, %s130
    %p132 = scmp.eq.s32.totalorder %s22, 0
    %p133 = por %p131, %p132
    %s134 = ssub.s32 %s16, %s23
    %p135 = scmp.eq.s32.totalorder %s134, 0
    %s137 = sadd.s32 %s136, 1
    %s138 = scalar_select %p135, %s136, %s137
    %p141 = pneg %p135
    %p142 = scmp.eq.s32.totalorder %s16, 1
    %p143 = por %p141, %p142
    %p144 = scmp.ne.s32.totalorder %s136, %s139
    %p145 = scmp.eq.s32.totalorder %s16, 0
    %p146 = por %p144, %p145
    %p147 = scmp.ne.s32.totalorder %s136, %s139
    %p148 = scmp.eq.s32.totalorder %s21, 1
    %p149 = por %p147, %p148
    %p150 = scmp.ne.s32.totalorder %s139, %s140
    %p151 = scmp.eq.s32.totalorder %s21, 0
    %p152 = por %p150, %p151
    %p153 = scmp.ne.s32.totalorder %s139, %s140
    %p154 = scmp.eq.s32.totalorder %s22, 1
    %p155 = por %p153, %p154
    %p157 = scmp.ne.s32.totalorder %s140, %s156
    %p158 = scmp.eq.s32.totalorder %s22, 0
    %p159 = por %p157, %p158
    %s161 = sadd.s32 %s160, 1
    %p164 = scmp.eq.s32.totalorder %s16, 1
    %p165 = scmp.ne.s32.totalorder %s160, %s162
    %p166 = scmp.eq.s32.totalorder %s16, 0
    %p167 = por %p165, %p166
    %p168 = scmp.ne.s32.totalorder %s160, %s162
    %p169 = scmp.eq.s32.totalorder %s21, 1
    %p170 = por %p168, %p169
    %p171 = scmp.ne.s32.totalorder %s162, %s163
    %p172 = scmp.eq.s32.totalorder %s21, 0
    %p173 = por %p171, %p172
    %p174 = scmp.ne.s32.totalorder %s162, %s163
    %p175 = scmp.eq.s32.totalorder %s22, 1
    %p176 = por %p174, %p175
    %p178 = scmp.ne.s32.totalorder %s163, %s177
    %p179 = scmp.eq.s32.totalorder %s22, 0
    %p180 = por %p178, %p179
    %s182 = sadd.s32 %s181, 1
    %p185 = scmp.eq.s32.totalorder %s16, 1
    %p186 = scmp.ne.s32.totalorder %s181, %s183
    %p187 = scmp.eq.s32.totalorder %s16, 0
    %p188 = por %p186, %p187
    %p189 = scmp.ne.s32.totalorder %s181, %s183
    %p190 = scmp.eq.s32.totalorder %s21, 1
    %p191 = por %p189, %p190
    %p192 = scmp.ne.s32.totalorder %s183, %s184
    %p193 = scmp.eq.s32.totalorder %s21, 0
    %p194 = por %p192, %p193
    %p195 = scmp.ne.s32.totalorder %s183, %s184
    %p196 = scmp.eq.s32.totalorder %s22, 1
    %p197 = por %p195, %p196
    %p199 = scmp.ne.s32.totalorder %s184, %s198
    %p200 = scmp.eq.s32.totalorder %s22, 0
    %p201 = por %p199, %p200
    %s203 = sadd.s32 %s202, 1
    %p206 = scmp.eq.s32.totalorder %s16, 1
    %p207 = scmp.ne.s32.totalorder %s202, %s204
    %p208 = scmp.eq.s32.totalorder %s16, 0
    %p209 = por %p207, %p208
    %p210 = scmp.ne.s32.totalorder %s202, %s204
    %p211 = scmp.eq.s32.totalorder %s21, 1
    %p212 = por %p210, %p211
    %p213 = scmp.ne.s32.totalorder %s204, %s205
    %p214 = scmp.eq.s32.totalorder %s21, 0
    %p215 = por %p213, %p214
    %p216 = scmp.ne.s32.totalorder %s204, %s205
    %p217 = scmp.eq.s32.totalorder %s22, 1
    %p218 = por %p216, %p217
    %p220 = scmp.ne.s32.totalorder %s205, %s219
    %p221 = scmp.eq.s32.totalorder %s22, 0
    %p222 = por %p220, %p221
    %s224 = sadd.s32 %s223, 1
    %p227 = scmp.eq.s32.totalorder %s16, 1
    %p228 = scmp.ne.s32.totalorder %s223, %s225
    %p229 = scmp.eq.s32.totalorder %s16, 0
    %p230 = por %p228, %p229
    %p231 = scmp.ne.s32.totalorder %s223, %s225
    %p232 = scmp.eq.s32.totalorder %s21, 1
    %p233 = por %p231, %p232
    %p234 = scmp.ne.s32.totalorder %s225, %s226
    %p235 = scmp.eq.s32.totalorder %s21, 0
    %p236 = por %p234, %p235
    %p237 = scmp.ne.s32.totalorder %s225, %s226
    %p238 = scmp.eq.s32.totalorder %s22, 1
    %p239 = por %p237, %p238
    %p241 = scmp.ne.s32.totalorder %s226, %s240
    %p242 = scmp.eq.s32.totalorder %s22, 0
    %p243 = por %p241, %p242
    %s244 = ssub.s32 %s16, %s23
    %p245 = scmp.eq.s32.totalorder %s244, 0
    %s247 = sadd.s32 %s246, 1
    %s248 = scalar_select %p245, %s246, %s247
    %p251 = pneg %p245
    %p252 = scmp.eq.s32.totalorder %s16, 1
    %p253 = por %p251, %p252
    %p254 = scmp.ne.s32.totalorder %s246, %s249
    %p255 = scmp.eq.s32.totalorder %s16, 0
    %p256 = por %p254, %p255
    %p257 = scmp.ne.s32.totalorder %s246, %s249
    %p258 = scmp.eq.s32.totalorder %s21, 1
    %p259 = por %p257, %p258
    %p260 = scmp.ne.s32.totalorder %s249, %s250
    %p261 = scmp.eq.s32.totalorder %s21, 0
    %p262 = por %p260, %p261
    %p263 = scmp.ne.s32.totalorder %s249, %s250
    %p264 = scmp.eq.s32.totalorder %s22, 1
    %p265 = por %p263, %p264
    %p267 = scmp.ne.s32.totalorder %s250, %s266
    %p268 = scmp.eq.s32.totalorder %s22, 0
    %p269 = por %p267, %p268
    %p270 = scmp.le.s32.totalorder 1, %s16
    %p271 = scmp.lt.s32.totalorder %s16, 3
    %p272 = pnand %p270, %p271
    %p273 = pneg %p272
    // Predicated region
    $region9: #{forward_jit.3} parent=5 // pred_check
      _
    $region10: #{forward_jit.3} parent=5 // pred_check_branch
      %275 = sbr.rel (%p272) target = $region12
    $region11: #{forward_jit.3} parent=5 // pred_region
      %s276 = ssub.s32 %s16, 1
      // Predicated region
      $region13: #{forward_jit.3} parent=11 // pred_check
        %p277 = pneg %p63
      $region14: #{forward_jit.3} parent=11 // pred_check_branch
        %279 = sbr.rel (%p277) target = $region16
      $region15: #{forward_jit.3} parent=11 // pred_region
        _
      $region16: #{forward_jit.3} parent=11 // pred_fallthru
        _
      // Predicated region
      $region17: #{forward_jit.3} parent=11 // pred_check
        %p280 = pneg %p84
      $region18: #{forward_jit.3} parent=11 // pred_check_branch
        %282 = sbr.rel (%p280) target = $region20
      $region19: #{forward_jit.3} parent=11 // pred_region
        _
      $region20: #{forward_jit.3} parent=11 // pred_fallthru
        _
      // Predicated region
      $region21: #{forward_jit.3} parent=11 // pred_check
        %p283 = pneg %p105
      $region22: #{forward_jit.3} parent=11 // pred_check_branch
        %285 = sbr.rel (%p283) target = $region24
      $region23: #{forward_jit.3} parent=11 // pred_region
        _
      $region24: #{forward_jit.3} parent=11 // pred_fallthru
        _
      // Predicated region
      $region25: #{forward_jit.3} parent=11 // pred_check
        %p286 = pneg %p126
      $region26: #{forward_jit.3} parent=11 // pred_check_branch
        %288 = sbr.rel (%p286) target = $region28
      $region27: #{forward_jit.3} parent=11 // pred_region
        _
      $region28: #{forward_jit.3} parent=11 // pred_fallthru
        _
      // Predicated region
      $region29: #{forward_jit.3} parent=11 // pred_check
        %p289 = pneg %p173
      $region30: #{forward_jit.3} parent=11 // pred_check_branch
        %291 = sbr.rel (%p289) target = $region32
      $region31: #{forward_jit.3} parent=11 // pred_region
        _
      $region32: #{forward_jit.3} parent=11 // pred_fallthru
        _
      // Predicated region
      $region33: #{forward_jit.3} parent=11 // pred_check
        %p292 = pneg %p194
      $region34: #{forward_jit.3} parent=11 // pred_check_branch
        %294 = sbr.rel (%p292) target = $region36
      $region35: #{forward_jit.3} parent=11 // pred_region
        _
      $region36: #{forward_jit.3} parent=11 // pred_fallthru
        _
      // Predicated region
      $region37: #{forward_jit.3} parent=11 // pred_check
        %p295 = pneg %p215
      $region38: #{forward_jit.3} parent=11 // pred_check_branch
        %297 = sbr.rel (%p295) target = $region40
      $region39: #{forward_jit.3} parent=11 // pred_region
        _
      $region40: #{forward_jit.3} parent=11 // pred_fallthru
        _
      // Predicated region
      $region41: #{forward_jit.3} parent=11 // pred_check
        %p298 = pneg %p236
      $region42: #{forward_jit.3} parent=11 // pred_check_branch
        %300 = sbr.rel (%p298) target = $region44
      $region43: #{forward_jit.3} parent=11 // pred_region
        _
      $region44: #{forward_jit.3} parent=11 // pred_fallthru
        _
    $region12: #{forward_jit.3} parent=5 // pred_fallthru
      _
    %p301 = scmp.lt.s32.totalorder %s16, 2
    // Predicated region
    $region45: #{forward_jit.3} parent=5 // pred_check
      %p302 = pneg %p301
    $region46: #{forward_jit.3} parent=5 // pred_check_branch
      %304 = sbr.rel (%p302) target = $region48
    $region47: #{forward_jit.3} parent=5 // pred_region
      // Predicated region
      $region49: #{forward_jit.3} parent=47 // pred_check
        %p305 = pneg %p36
      $region50: #{forward_jit.3} parent=47 // pred_check_branch
        %307 = sbr.rel (%p305) target = $region52
      $region51: #{forward_jit.3} parent=47 // pred_region
        %p308 = scmp.lt.s32.totalorder %s16, 1
        %s309 = scalar_select %p308, %s16, 1
        %s310 = smul.addr %s309, 8
        %s311 = scalar_lea.vmem %s0, %s310
      $region52: #{forward_jit.3} parent=47 // pred_fallthru
        _
      // Predicated region
      $region53: #{forward_jit.3} parent=47 // pred_check
        %p312 = pneg %p146
      $region54: #{forward_jit.3} parent=47 // pred_check_branch
        %314 = sbr.rel (%p312) target = $region56
      $region55: #{forward_jit.3} parent=47 // pred_region
        %p315 = scmp.lt.s32.totalorder %s16, 1
        %s316 = scalar_select %p315, %s16, 1
        %s317 = scalar_lea.vmem %s5, %s316
      $region56: #{forward_jit.3} parent=47 // pred_fallthru
        _
    $region48: #{forward_jit.3} parent=5 // pred_fallthru
      _
    %p318 = scmp.le.s32.totalorder 1, %s16
    %p319 = scmp.lt.s32.totalorder %s16, 3
    %p320 = pnand %p318, %p319
    %p321 = pneg %p320
    // Predicated region
    $region57: #{forward_jit.3} parent=5 // pred_check
      _
    $region58: #{forward_jit.3} parent=5 // pred_check_branch
      %323 = sbr.rel (%p320) target = $region60
    $region59: #{forward_jit.3} parent=5 // pred_region
      %s324 = ssub.s32 %s16, 1
      %p325 = scmp.lt.s32.totalorder %s21, 1
      %s326 = scalar_select %p325, %s21, 1
      %s327 = smul.addr %s326, 8
      %s328 = scalar_lea.vmem %s0, %s327
      %p329 = pneg %p42
      %p330 = pneg %p39
      %p331 = pneg %p63
      %p332 = pneg %p60
      %p333 = pneg %p84
      %p334 = pneg %p81
      %p335 = pneg %p105
      %p336 = pneg %p102
      %p337 = pneg %p126
      %p338 = pneg %p123
      %p339 = scmp.lt.s32.totalorder %s21, 1
      %s340 = scalar_select %p339, %s21, 1
      %s341 = scalar_lea.vmem %s5, %s340
      %p342 = pneg %p152
      %p343 = pneg %p149
      %p344 = pneg %p173
      %p345 = pneg %p170
      %p346 = pneg %p194
      %p347 = pneg %p191
      %p348 = pneg %p215
      %p349 = pneg %p212
      %p350 = pneg %p236
      %p351 = pneg %p233
      %p352 = pneg %p262
      %p353 = pneg %p259
      %p354 = scmp.lt.s32.totalorder %s21, 1
      %s355 = scalar_select %p354, %s21, 1
      %s356 = smul.addr %s355, 8
      %s357 = scalar_lea.vmem %s10, %s356
      %p358 = scmp.lt.s32.totalorder %s21, 1
      %s359 = scalar_select %p358, %s21, 1
      %s360 = smul.addr %s359, 8
      %s361 = scalar_lea.vmem %s0, %s360
      %p362 = scmp.lt.s32.totalorder %s21, 1
      %s363 = scalar_select %p362, %s21, 1
      %s364 = scalar_lea.vmem %s5, %s363
      %p365 = scmp.lt.s32.totalorder %s21, 1
      %s366 = scalar_select %p365, %s21, 1
      %s367 = smul.addr %s366, 8
      %s368 = scalar_lea.vmem %s10, %s367
      %v370 = vld [vmem:[%s361] sm:$0xff]
      %v371 = vld [vmem:[%s1] sm:$0x1]
      %v372 = vmul.f32 %v370, %v370
      %vm373 = vcmask 261120
      %v374 = vsel %vm373, %v372, 0.0
      %375 = vadd.xlane.f32.xlu0 %v374
      %v376 = vpop.xlane.xlu0 %375
      %v377 = vrcp.pop 32.0
      %v378 = vmul.f32 %v376, %v377
      %v379 = vadd.f32 %v378, 1e-06
      %v380 = vrsqrt.pop %v379
      %v381 = vmul.f32 %v370, %v380
      %v383 = vlaneseq
      %v384 = vshrl.u32 %v383, 7
      %v385 = vsub.s32 0, %v384
      %v386 = vrot.slane %v371, %v385
      %v388 = vmul.f32 %v381, %v386
      %v389 = vpack.c.bf16 %v388, %v388
      %v390 = vld [vmem:[%s2] sm:$0xf]
      %v391 = vld [vmem:[%s2 + $0x4] sm:$0xf]
      %v392 = vld [vmem:[%s2 + $0x8] sm:$0xf]
      %v393 = vld [vmem:[%s2 + $0xc] sm:$0xf]
      %v398 = vunpack.c.l.b16 %v390
      %v399 = vunpack.c.l.b16 %v391
      %v400 = vunpack.c.l.b16 %v392
      %v401 = vunpack.c.l.b16 %v393
      %v402 = vpack.c.b16 %v399, %v398
      %v403 = vpack.c.b16 %v401, %v400
      %v407 = vsel %vm373, %v389, 0
      %409 = vmatprep.subr.bf16.mxu0 0
      %410 = vmatpush1.bf16.msra.mxu0 %v402
      %411 = vmatprep.subr.bf16.mxu0 0
      %412 = vmatpush1.bf16.msra.mxu0 %v403
      %413 = vmatprep.subr.bf16.mxu0 0
      %414 = vmatpush1.bf16.msra.mxu0 0
      %415 = vmatprep.subr.bf16.mxu0 0
      %416 = vmatpush1.bf16.msra.mxu0 0
      %417 = vmatprep.subr.bf16.mxu0 0
      %418 = vmatpush1.bf16.msra.mxu0 0
      %419 = vmatprep.subr.bf16.mxu0 0
      %420 = vmatpush1.bf16.msra.mxu0 0
      %421 = vmatprep.subr.bf16.mxu0 0
      %422 = vmatpush1.bf16.msra.mxu0 0
      %423 = vmatprep.subr.bf16.mxu0 0
      %424 = vmatpush1.bf16.msra.mxu0 0
      %425 = vmatprep.subr.bf16.mxu0 0
      %426 = vmatpush1.bf16.msra.mxu0 0
      %427 = vmatprep.subr.bf16.mxu0 0
      %428 = vmatpush1.bf16.msra.mxu0 0
      %429 = vmatprep.subr.bf16.mxu0 0
      %430 = vmatpush1.bf16.msra.mxu0 0
      %431 = vmatprep.subr.bf16.mxu0 0
      %432 = vmatpush1.bf16.msra.mxu0 0
      %433 = vmatprep.subr.bf16.mxu0 0
      %434 = vmatpush1.bf16.msra.mxu0 0
      %435 = vmatprep.subr.bf16.mxu0 0
      %436 = vmatpush1.bf16.msra.mxu0 0
      %437 = vmatprep.subr.bf16.mxu0 0
      %438 = vmatpush1.bf16.msra.mxu0 0
      %439 = vmatprep.subr.bf16.mxu0 0
      %440 = vmatpush1.bf16.msra.mxu0 0
      %441 = vmatprep.mubr.bf16.mxu0 0
      %442 = vmatmul.mubr.bf16.gmra.mrb[0].mxu0 %v407
      %v443 = vpop.f32.mrb[0].mxu0
      %v444 = vadd.f32 0.0, %v443
      %v445 = vpop.f32.mrb[0].mxu0
      %v446 = vpop.f32.mrb[0].mxu0
      %v447 = vpop.f32.mrb[0].mxu0
      %448 = vdwg.mxu0
      %v449 = vpack.c.bf16 %v444, %v444
      %v450 = vld [vmem:[%s364] sm:$0x1]
      %v451 = vsub.f32 1.0, %v450
      %v452 = vmul.f32 %v451, -1e+09
      %v453 = vld [vmem:[%s4] sm:$0xff]
      %v454 = vld [vmem:[%s4 + $0x8] sm:$0xff]
      %v455 = vld [vmem:[%s4 + $0x10] sm:$0xff]
      %v456 = vld [vmem:[%s4 + $0x18] sm:$0xff]
      %458 = vrot.lane.b32.xlu0 %v449, 96
      %v459 = vpop.permute.xlu0 %458
      %vm460 = vcmask 64512
      %v462 = vsel %vm460, %v449, 0
      %v465 = vsel %vm460, %v459, 0
      %467 = vmatprep.subr.bf16.mxu0 0
      %468 = vmatpush1.bf16.xpose.msra.mxu0 %v465
      %469 = vmatprep.subr.bf16.mxu0 0
      %470 = vmatpush1.bf16.xpose.msra.mxu0 0
      %471 = vmatprep.subr.bf16.mxu0 0
      %472 = vmatpush1.bf16.xpose.msra.mxu0 0
      %473 = vmatprep.subr.bf16.mxu0 0
      %474 = vmatpush1.bf16.xpose.msra.mxu0 0
      %475 = vmatprep.subr.bf16.mxu0 0
      %476 = vmatpush1.bf16.xpose.msra.mxu0 0
      %477 = vmatprep.subr.bf16.mxu0 0
      %478 = vmatpush1.bf16.xpose.msra.mxu0 0
      %479 = vmatprep.subr.bf16.mxu0 0
      %480 = vmatpush1.bf16.xpose.msra.mxu0 0
      %481 = vmatprep.subr.bf16.mxu0 0
      %482 = vmatpush1.bf16.xpose.msra.mxu0 0
      %483 = vmatprep.subr.bf16.mxu0 0
      %484 = vmatpush1.bf16.xpose.msra.mxu0 0
      %485 = vmatprep.subr.bf16.mxu0 0
      %486 = vmatpush1.bf16.xpose.msra.mxu0 0
      %487 = vmatprep.subr.bf16.mxu0 0
      %488 = vmatpush1.bf16.xpose.msra.mxu0 0
      %489 = vmatprep.subr.bf16.mxu0 0
      %490 = vmatpush1.bf16.xpose.msra.mxu0 0
      %491 = vmatprep.subr.bf16.mxu0 0
      %492 = vmatpush1.bf16.xpose.msra.mxu0 0
      %493 = vmatprep.subr.bf16.mxu0 0
      %494 = vmatpush1.bf16.xpose.msra.mxu0 0
      %495 = vmatprep.subr.bf16.mxu0 0
      %496 = vmatpush1.bf16.xpose.msra.mxu0 0
      %497 = vmatprep.subr.bf16.mxu0 0
      %498 = vmatpush1.bf16.xpose.msra.mxu0 0
      %499 = vmatprep.mubr.bf16.mxu0 0
      %500 = vmatmul.mubr.bf16.gmra.mrb[0].mxu0 %v462
      %v501 = vpop.f32.mrb[0].mxu0
      %v502 = vadd.f32 %v453, %v501
      %v503 = vpop.f32.mrb[0].mxu0
      %v504 = vpop.f32.mrb[0].mxu0
      %v505 = vpop.f32.mrb[0].mxu0
      %506 = vdwg.mxu0
      %v508 = vlaneseq
      %v509 = vshrl.u32 %v508, 7
      %v510 = vsub.s32 0, %v509
      %v511 = vrot.slane %v452, %v510
      %v513 = vadd.f32 %v502, %v511
      %v514 = vsel %vm460, %v513, -inf
      %515 = vmax.xlane.f32.xlu0 %v514
      %v516 = vpop.xlane.xlu0 %515
      %v517 = vsub.f32 %v513, %v516
      %v518 = vmul.f32 %v517, 1.442695
      %v519 = vpow.pop %v518
      %v520 = vsel %vm460, %v519, 0.0
      %521 = vadd.xlane.f32.xlu0 %v520
      %v522 = vpop.xlane.xlu0 %521
      %v523 = vrcp.pop %v522
      %v524 = vmul.f32 %v519, %v523
      %v525 = vpack.c.bf16 %v524, %v524
      %526 = vrot.lane.b32.xlu0 %v449, 64
      %v527 = vpop.permute.xlu0 %526
      %v529 = vsel %vm460, %v525, 0
      %vm531 = vcmask 1043456
      %v533 = vsel %vm531, %v527, 0
      %535 = vmatprep.subr.bf16.mxu0 0
      %536 = vmatpush1.bf16.msra.mxu0 %v533
      %537 = vmatprep.subr.bf16.mxu0 0
      %538 = vmatpush1.bf16.msra.mxu0 0
      %539 = vmatprep.subr.bf16.mxu0 0
      %540 = vmatpush1.bf16.msra.mxu0 0
      %541 = vmatprep.subr.bf16.mxu0 0
      %542 = vmatpush1.bf16.msra.mxu0 0
      %543 = vmatprep.subr.bf16.mxu0 0
      %544 = vmatpush1.bf16.msra.mxu0 0
      %545 = vmatprep.subr.bf16.mxu0 0
      %546 = vmatpush1.bf16.msra.mxu0 0
      %547 = vmatprep.subr.bf16.mxu0 0
      %548 = vmatpush1.bf16.msra.mxu0 0
      %549 = vmatprep.subr.bf16.mxu0 0
      %550 = vmatpush1.bf16.msra.mxu0 0
      %551 = vmatprep.subr.bf16.mxu0 0
      %552 = vmatpush1.bf16.msra.mxu0 0
      %553 = vmatprep.subr.bf16.mxu0 0
      %554 = vmatpush1.bf16.msra.mxu0 0
      %555 = vmatprep.subr.bf16.mxu0 0
      %556 = vmatpush1.bf16.msra.mxu0 0
      %557 = vmatprep.subr.bf16.mxu0 0
      %558 = vmatpush1.bf16.msra.mxu0 0
      %559 = vmatprep.subr.bf16.mxu0 0
      %560 = vmatpush1.bf16.msra.mxu0 0
      %561 = vmatprep.subr.bf16.mxu0 0
      %562 = vmatpush1.bf16.msra.mxu0 0
      %563 = vmatprep.subr.bf16.mxu0 0
      %564 = vmatpush1.bf16.msra.mxu0 0
      %565 = vmatprep.subr.bf16.mxu0 0
      %566 = vmatpush1.bf16.msra.mxu0 0
      %567 = vmatprep.mubr.bf16.mxu0 0
      %568 = vmatmul.mubr.bf16.gmra.mrb[0].mxu0 %v529
      %v569 = vpop.f32.mrb[0].mxu0
      %v570 = vadd.f32 0.0, %v569
      %v571 = vpop.f32.mrb[0].mxu0
      %v572 = vpop.f32.mrb[0].mxu0
      %v573 = vpop.f32.mrb[0].mxu0
      %574 = vdwg.mxu0
      %575 = vrot.lane.b32.xlu0 %v449, 120
      %v576 = vpop.permute.xlu0 %575
      %577 = vrot.lane.b32.xlu0 %v449, 88
      %v578 = vpop.permute.xlu0 %577
      %v580 = vsel %vm460, %v576, 0
      %v583 = vsel %vm460, %v578, 0
      %585 = vmatprep.subr.bf16.mxu0 0
      %586 = vmatpush1.bf16.xpose.msra.mxu0 %v583
      %587 = vmatprep.subr.bf16.mxu0 0
      %588 = vmatpush1.bf16.xpose.msra.mxu0 0
      %589 = vmatprep.subr.bf16.mxu0 0
      %590 = vmatpush1.bf16.xpose.msra.mxu0 0
      %591 = vmatprep.subr.bf16.mxu0 0
      %592 = vmatpush1.bf16.xpose.msra.mxu0 0
      %593 = vmatprep.subr.bf16.mxu0 0
      %594 = vmatpush1.bf16.xpose.msra.mxu0 0
      %595 = vmatprep.subr.bf16.mxu0 0
      %596 = vmatpush1.bf16.xpose.msra.mxu0 0
      %597 = vmatprep.subr.bf16.mxu0 0
      %598 = vmatpush1.bf16.xpose.msra.mxu0 0
      %599 = vmatprep.subr.bf16.mxu0 0
      %600 = vmatpush1.bf16.xpose.msra.mxu0 0
      %601 = vmatprep.subr.bf16.mxu0 0
      %602 = vmatpush1.bf16.xpose.msra.mxu0 0
      %603 = vmatprep.subr.bf16.mxu0 0
      %604 = vmatpush1.bf16.xpose.msra.mxu0 0
      %605 = vmatprep.subr.bf16.mxu0 0
      %606 = vmatpush1.bf16.xpose.msra.mxu0 0
      %607 = vmatprep.subr.bf16.mxu0 0
      %608 = vmatpush1.bf16.xpose.msra.mxu0 0
      %609 = vmatprep.subr.bf16.mxu0 0
      %610 = vmatpush1.bf16.xpose.msra.mxu0 0
      %611 = vmatprep.subr.bf16.mxu0 0
      %612 = vmatpush1.bf16.xpose.msra.mxu0 0
      %613 = vmatprep.subr.bf16.mxu0 0
      %614 = vmatpush1.bf16.xpose.msra.mxu0 0
      %615 = vmatprep.subr.bf16.mxu0 0
      %616 = vmatpush1.bf16.xpose.msra.mxu0 0
      %617 = vmatprep.mubr.bf16.mxu0 0
      %618 = vmatmul.mubr.bf16.gmra.mrb[0].mxu0 %v580
      %v619 = vpop.f32.mrb[0].mxu0
      %v620 = vadd.f32 %v454, %v619
      %v621 = vpop.f32.mrb[0].mxu0
      %v622 = vpop.f32.mrb[0].mxu0
      %v623 = vpop.f32.mrb[0].mxu0
      %624 = vdwg.mxu0
      %v625 = vadd.f32 %v620, %v511
      %v626 = vsel %vm460, %v625, -inf
      %627 = vmax.xlane.f32.xlu0 %v626
      %v628 = vpop.xlane.xlu0 %627
      %v629 = vsub.f32 %v625, %v628
      %v630 = vmul.f32 %v629, 1.442695
      %v631 = vpow.pop %v630
      %v632 = vsel %vm460, %v631, 0.0
      %633 = vadd.xlane.f32.xlu0 %v632
      %v634 = vpop.xlane.xlu0 %633
      %v635 = vrcp.pop %v634
      %v636 = vmul.f32 %v631, %v635
      %v637 = vpack.c.bf16 %v636, %v636
      %638 = vrot.lane.b32.xlu0 %v449, 56
      %v639 = vpop.permute.xlu0 %638
      %v641 = vsel %vm460, %v637, 0
      %v644 = vsel %vm531, %v639, 0
      %646 = vmatprep.subr.bf16.mxu0 0
      %647 = vmatpush1.bf16.msra.mxu0 %v644
      %648 = vmatprep.subr.bf16.mxu0 0
      %649 = vmatpush1.bf16.msra.mxu0 0
      %650 = vmatprep.subr.bf16.mxu0 0
      %651 = vmatpush1.bf16.msra.mxu0 0
      %652 = vmatprep.subr.bf16.mxu0 0
      %653 = vmatpush1.bf16.msra.mxu0 0
      %654 = vmatprep.subr.bf16.mxu0 0
      %655 = vmatpush1.bf16.msra.mxu0 0
      %656 = vmatprep.subr.bf16.mxu0 0
      %657 = vmatpush1.bf16.msra.mxu0 0
      %658 = vmatprep.subr.bf16.mxu0 0
      %659 = vmatpush1.bf16.msra.mxu0 0
      %660 = vmatprep.subr.bf16.mxu0 0
      %661 = vmatpush1.bf16.msra.mxu0 0
      %662 = vmatprep.subr.bf16.mxu0 0
      %663 = vmatpush1.bf16.msra.mxu0 0
      %664 = vmatprep.subr.bf16.mxu0 0
      %665 = vmatpush1.bf16.msra.mxu0 0
      %666 = vmatprep.subr.bf16.mxu0 0
      %667 = vmatpush1.bf16.msra.mxu0 0
      %668 = vmatprep.subr.bf16.mxu0 0
      %669 = vmatpush1.bf16.msra.mxu0 0
      %670 = vmatprep.subr.bf16.mxu0 0
      %671 = vmatpush1.bf16.msra.mxu0 0
      %672 = vmatprep.subr.bf16.mxu0 0
      %673 = vmatpush1.bf16.msra.mxu0 0
      %674 = vmatprep.subr.bf16.mxu0 0
      %675 = vmatpush1.bf16.msra.mxu0 0
      %676 = vmatprep.subr.bf16.mxu0 0
      %677 = vmatpush1.bf16.msra.mxu0 0
      %678 = vmatprep.mubr.bf16.mxu0 0
      %679 = vmatmul.mubr.bf16.gmra.mrb[0].mxu0 %v641
      %v680 = vpop.f32.mrb[0].mxu0
      %v681 = vadd.f32 0.0, %v680
      %v682 = vpop.f32.mrb[0].mxu0
      %v683 = vpop.f32.mrb[0].mxu0
      %v684 = vpop.f32.mrb[0].mxu0
      %685 = vdwg.mxu0
      %686 = vrot.lane.b32.xlu0 %v449, 112
      %v687 = vpop.permute.xlu0 %686
      %688 = vrot.lane.b32.xlu0 %v449, 80
      %v689 = vpop.permute.xlu0 %688
      %v691 = vsel %vm460, %v687, 0
      %v694 = vsel %vm460, %v689, 0
      %696 = vmatprep.subr.bf16.mxu0 0
      %697 = vmatpush1.bf16.xpose.msra.mxu0 %v694
      %698 = vmatprep.subr.bf16.mxu0 0
      %699 = vmatpush1.bf16.xpose.msra.mxu0 0
      %700 = vmatprep.subr.bf16.mxu0 0
      %701 = vmatpush1.bf16.xpose.msra.mxu0 0
      %702 = vmatprep.subr.bf16.mxu0 0
      %703 = vmatpush1.bf16.xpose.msra.mxu0 0
      %704 = vmatprep.subr.bf16.mxu0 0
      %705 = vmatpush1.bf16.xpose.msra.mxu0 0
      %706 = vmatprep.subr.bf16.mxu0 0
      %707 = vmatpush1.bf16.xpose.msra.mxu0 0
      %708 = vmatprep.subr.bf16.mxu0 0
      %709 = vmatpush1.bf16.xpose.msra.mxu0 0
      %710 = vmatprep.subr.bf16.mxu0 0
      %711 = vmatpush1.bf16.xpose.msra.mxu0 0
      %712 = vmatprep.subr.bf16.mxu0 0
      %713 = vmatpush1.bf16.xpose.msra.mxu0 0
      %714 = vmatprep.subr.bf16.mxu0 0
      %715 = vmatpush1.bf16.xpose.msra.mxu0 0
      %716 = vmatprep.subr.bf16.mxu0 0
      %717 = vmatpush1.bf16.xpose.msra.mxu0 0
      %718 = vmatprep.subr.bf16.mxu0 0
      %719 = vmatpush1.bf16.xpose.msra.mxu0 0
      %720 = vmatprep.subr.bf16.mxu0 0
      %721 = vmatpush1.bf16.xpose.msra.mxu0 0
      %722 = vmatprep.subr.bf16.mxu0 0
      %723 = vmatpush1.bf16.xpose.msra.mxu0 0
      %724 = vmatprep.subr.bf16.mxu0 0
      %725 = vmatpush1.bf16.xpose.msra.mxu0 0
      %726 = vmatprep.subr.bf16.mxu0 0
      %727 = vmatpush1.bf16.xpose.msra.mxu0 0
      %728 = vmatprep.mubr.bf16.mxu0 0
      %729 = vmatmul.mubr.bf16.gmra.mrb[0].mxu0 %v691
      %v730 = vpop.f32.mrb[0].mxu0
      %v731 = vadd.f32 %v455, %v730
      %v732 = vpop.f32.mrb[0].mxu0
      %v733 = vpop.f32.mrb[0].mxu0
      %v734 = vpop.f32.mrb[0].mxu0
      %735 = vdwg.mxu0
      %v736 = vadd.f32 %v731, %v511
      %v737 = vsel %vm460, %v736, -inf
      %738 = vmax.xlane.f32.xlu0 %v737
      %v739 = vpop.xlane.xlu0 %738
      %v740 = vsub.f32 %v736, %v739
      %v741 = vmul.f32 %v740, 1.442695
      %v742 = vpow.pop %v741
      %v743 = vsel %vm460, %v742, 0.0
      %744 = vadd.xlane.f32.xlu0 %v743
      %v745 = vpop.xlane.xlu0 %744
      %v746 = vrcp.pop %v745
      %v747 = vmul.f32 %v742, %v746
      %v748 = vpack.c.bf16 %v747, %v747
      %749 = vrot.lane.b32.xlu0 %v449, 48
      %v750 = vpop.permute.xlu0 %749
      %v752 = vsel %vm460, %v748, 0
      %v755 = vsel %vm531, %v750, 0
      %757 = vmatprep.subr.bf16.mxu0 0
      %758 = vmatpush1.bf16.msra.mxu0 %v755
      %759 = vmatprep.subr.bf16.mxu0 0
      %760 = vmatpush1.bf16.msra.mxu0 0
      %761 = vmatprep.subr.bf16.mxu0 0
      %762 = vmatpush1.bf16.msra.mxu0 0
      %763 = vmatprep.subr.bf16.mxu0 0
      %764 = vmatpush1.bf16.msra.mxu0 0
      %765 = vmatprep.subr.bf16.mxu0 0
      %766 = vmatpush1.bf16.msra.mxu0 0
      %767 = vmatprep.subr.bf16.mxu0 0
      %768 = vmatpush1.bf16.msra.mxu0 0
      %769 = vmatprep.subr.bf16.mxu0 0
      %770 = vmatpush1.bf16.msra.mxu0 0
      %771 = vmatprep.subr.bf16.mxu0 0
      %772 = vmatpush1.bf16.msra.mxu0 0
      %773 = vmatprep.subr.bf16.mxu0 0
      %774 = vmatpush1.bf16.msra.mxu0 0
      %775 = vmatprep.subr.bf16.mxu0 0
      %776 = vmatpush1.bf16.msra.mxu0 0
      %777 = vmatprep.subr.bf16.mxu0 0
      %778 = vmatpush1.bf16.msra.mxu0 0
      %779 = vmatprep.subr.bf16.mxu0 0
      %780 = vmatpush1.bf16.msra.mxu0 0
      %781 = vmatprep.subr.bf16.mxu0 0
      %782 = vmatpush1.bf16.msra.mxu0 0
      %783 = vmatprep.subr.bf16.mxu0 0
      %784 = vmatpush1.bf16.msra.mxu0 0
      %785 = vmatprep.subr.bf16.mxu0 0
      %786 = vmatpush1.bf16.msra.mxu0 0
      %787 = vmatprep.subr.bf16.mxu0 0
      %788 = vmatpush1.bf16.msra.mxu0 0
      %789 = vmatprep.mubr.bf16.mxu0 0
      %790 = vmatmul.mubr.bf16.gmra.mrb[0].mxu0 %v752
      %v791 = vpop.f32.mrb[0].mxu0
      %v792 = vadd.f32 0.0, %v791
      %v793 = vpop.f32.mrb[0].mxu0
      %v794 = vpop.f32.mrb[0].mxu0
      %v795 = vpop.f32.mrb[0].mxu0
      %796 = vdwg.mxu0
      %797 = vrot.lane.b32.xlu0 %v449, 104
      %v798 = vpop.permute.xlu0 %797
      %799 = vrot.lane.b32.xlu0 %v449, 72
      %v800 = vpop.permute.xlu0 %799
      %v802 = vsel %vm460, %v798, 0
      %v805 = vsel %vm460, %v800, 0
      %807 = vmatprep.subr.bf16.mxu0 0
      %808 = vmatpush1.bf16.xpose.msra.mxu0 %v805
      %809 = vmatprep.subr.bf16.mxu0 0
      %810 = vmatpush1.bf16.xpose.msra.mxu0 0
      %811 = vmatprep.subr.bf16.mxu0 0
      %812 = vmatpush1.bf16.xpose.msra.mxu0 0
      %813 = vmatprep.subr.bf16.mxu0 0
      %814 = vmatpush1.bf16.xpose.msra.mxu0 0
      %815 = vmatprep.subr.bf16.mxu0 0
      %816 = vmatpush1.bf16.xpose.msra.mxu0 0
      %817 = vmatprep.subr.bf16.mxu0 0
      %818 = vmatpush1.bf16.xpose.msra.mxu0 0
      %819 = vmatprep.subr.bf16.mxu0 0
      %820 = vmatpush1.bf16.xpose.msra.mxu0 0
      %821 = vmatprep.subr.bf16.mxu0 0
      %822 = vmatpush1.bf16.xpose.msra.mxu0 0
      %823 = vmatprep.subr.bf16.mxu0 0
      %824 = vmatpush1.bf16.xpose.msra.mxu0 0
      %825 = vmatprep.subr.bf16.mxu0 0
      %826 = vmatpush1.bf16.xpose.msra.mxu0 0
      %827 = vmatprep.subr.bf16.mxu0 0
      %828 = vmatpush1.bf16.xpose.msra.mxu0 0
      %829 = vmatprep.subr.bf16.mxu0 0
      %830 = vmatpush1.bf16.xpose.msra.mxu0 0
      %831 = vmatprep.subr.bf16.mxu0 0
      %832 = vmatpush1.bf16.xpose.msra.mxu0 0
      %833 = vmatprep.subr.bf16.mxu0 0
      %834 = vmatpush1.bf16.xpose.msra.mxu0 0
      %835 = vmatprep.subr.bf16.mxu0 0
      %836 = vmatpush1.bf16.xpose.msra.mxu0 0
      %837 = vmatprep.subr.bf16.mxu0 0
      %838 = vmatpush1.bf16.xpose.msra.mxu0 0
      %839 = vmatprep.mubr.bf16.mxu0 0
      %840 = vmatmul.mubr.bf16.gmra.mrb[0].mxu0 %v802
      %v841 = vpop.f32.mrb[0].mxu0
      %v842 = vadd.f32 %v456, %v841
      %v843 = vpop.f32.mrb[0].mxu0
      %v844 = vpop.f32.mrb[0].mxu0
      %v845 = vpop.f32.mrb[0].mxu0
      %846 = vdwg.mxu0
      %v847 = vadd.f32 %v842, %v511
      %v848 = vsel %vm460, %v847, -inf
      %849 = vmax.xlane.f32.xlu0 %v848
      %v850 = vpop.xlane.xlu0 %849
      %v851 = vsub.f32 %v847, %v850
      %v852 = vmul.f32 %v851, 1.442695
      %v853 = vpow.pop %v852
      %v854 = vsel %vm460, %v853, 0.0
      %855 = vadd.xlane.f32.xlu0 %v854
      %v856 = vpop.xlane.xlu0 %855
      %v857 = vrcp.pop %v856
      %v858 = vmul.f32 %v853, %v857
      %v859 = vpack.c.bf16 %v858, %v858
      %860 = vrot.lane.b32.xlu0 %v449, 40
      %v861 = vpop.permute.xlu0 %860
      %v863 = vsel %vm460, %v859, 0
      %v866 = vsel %vm531, %v861, 0
      %868 = vmatprep.subr.bf16.mxu0 0
      %869 = vmatpush1.bf16.msra.mxu0 %v866
      %870 = vmatprep.subr.bf16.mxu0 0
      %871 = vmatpush1.bf16.msra.mxu0 0
      %872 = vmatprep.subr.bf16.mxu0 0
      %873 = vmatpush1.bf16.msra.mxu0 0
      %874 = vmatprep.subr.bf16.mxu0 0
      %875 = vmatpush1.bf16.msra.mxu0 0
      %876 = vmatprep.subr.bf16.mxu0 0
      %877 = vmatpush1.bf16.msra.mxu0 0
      %878 = vmatprep.subr.bf16.mxu0 0
      %879 = vmatpush1.bf16.msra.mxu0 0
      %880 = vmatprep.subr.bf16.mxu0 0
      %881 = vmatpush1.bf16.msra.mxu0 0
      %882 = vmatprep.subr.bf16.mxu0 0
      %883 = vmatpush1.bf16.msra.mxu0 0
      %884 = vmatprep.subr.bf16.mxu0 0
      %885 = vmatpush1.bf16.msra.mxu0 0
      %886 = vmatprep.subr.bf16.mxu0 0
      %887 = vmatpush1.bf16.msra.mxu0 0
      %888 = vmatprep.subr.bf16.mxu0 0
      %889 = vmatpush1.bf16.msra.mxu0 0
      %890 = vmatprep.subr.bf16.mxu0 0
      %891 = vmatpush1.bf16.msra.mxu0 0
      %892 = vmatprep.subr.bf16.mxu0 0
      %893 = vmatpush1.bf16.msra.mxu0 0
      %894 = vmatprep.subr.bf16.mxu0 0
      %895 = vmatpush1.bf16.msra.mxu0 0
      %896 = vmatprep.subr.bf16.mxu0 0
      %897 = vmatpush1.bf16.msra.mxu0 0
      %898 = vmatprep.subr.bf16.mxu0 0
      %899 = vmatpush1.bf16.msra.mxu0 0
      %900 = vmatprep.mubr.bf16.mxu0 0
      %901 = vmatmul.mubr.bf16.gmra.mrb[0].mxu0 %v863
      %v902 = vpop.f32.mrb[0].mxu0
      %v903 = vadd.f32 0.0, %v902
      %v904 = vpop.f32.mrb[0].mxu0
      %v905 = vpop.f32.mrb[0].mxu0
      %v906 = vpop.f32.mrb[0].mxu0
      %907 = vdwg.mxu0
      %909 = vrot.lane.b32.xlu0 %v681, 8
      %v910 = vpop.permute.xlu0 %909
      %913 = vrot.lane.b32.xlu0 %v792, 16
      %v914 = vpop.permute.xlu0 %913
      %917 = vrot.lane.b32.xlu0 %v903, 24
      %v918 = vpop.permute.xlu0 %917
      %v920 = vsel %vm460, %v570, %v910
      %vm921 = vcmask 130048
      %v922 = vsel %vm921, %v920, %v914
      %vm923 = vcmask 195584
      %v924 = vsel %vm923, %v922, %v918
      %v925 = vpack.c.bf16 %v924, %v924
      %v926 = vld [vmem:[%s3] sm:$0xf]
      %v927 = vld [vmem:[%s3 + $0x4] sm:$0xf]
      %v928 = vld [vmem:[%s3 + $0x8] sm:$0xf]
      %v929 = vld [vmem:[%s3 + $0xc] sm:$0xf]
      %v934 = vunpack.c.l.b16 %v926
      %v935 = vunpack.c.l.b16 %v927
      %v936 = vunpack.c.l.b16 %v928
      %v937 = vunpack.c.l.b16 %v929
      %v938 = vpack.c.b16 %v935, %v934
      %v939 = vpack.c.b16 %v937, %v936
      %v943 = vsel %vm373, %v925, 0
      %945 = vmatprep.subr.bf16.mxu0 0
      %946 = vmatpush1.bf16.msra.mxu0 %v938
      %947 = vmatprep.subr.bf16.mxu0 0
      %948 = vmatpush1.bf16.msra.mxu0 %v939
      %949 = vmatprep.subr.bf16.mxu0 0
      %950 = vmatpush1.bf16.msra.mxu0 0
      %951 = vmatprep.subr.bf16.mxu0 0
      %952 = vmatpush1.bf16.msra.mxu0 0
      %953 = vmatprep.subr.bf16.mxu0 0
      %954 = vmatpush1.bf16.msra.mxu0 0
      %955 = vmatprep.subr.bf16.mxu0 0
      %956 = vmatpush1.bf16.msra.mxu0 0
      %957 = vmatprep.subr.bf16.mxu0 0
      %958 = vmatpush1.bf16.msra.mxu0 0
      %959 = vmatprep.subr.bf16.mxu0 0
      %960 = vmatpush1.bf16.msra.mxu0 0
      %961 = vmatprep.subr.bf16.mxu0 0
      %962 = vmatpush1.bf16.msra.mxu0 0
      %963 = vmatprep.subr.bf16.mxu0 0
      %964 = vmatpush1.bf16.msra.mxu0 0
      %965 = vmatprep.subr.bf16.mxu0 0
      %966 = vmatpush1.bf16.msra.mxu0 0
      %967 = vmatprep.subr.bf16.mxu0 0
      %968 = vmatpush1.bf16.msra.mxu0 0
      %969 = vmatprep.subr.bf16.mxu0 0
      %970 = vmatpush1.bf16.msra.mxu0 0
      %971 = vmatprep.subr.bf16.mxu0 0
      %972 = vmatpush1.bf16.msra.mxu0 0
      %973 = vmatprep.subr.bf16.mxu0 0
      %974 = vmatpush1.bf16.msra.mxu0 0
      %975 = vmatprep.subr.bf16.mxu0 0
      %976 = vmatpush1.bf16.msra.mxu0 0
      %977 = vmatprep.mubr.bf16.mxu0 0
      %978 = vmatmul.mubr.bf16.gmra.mrb[0].mxu0 %v943
      %v979 = vpop.f32.mrb[0].mxu0
      %v980 = vadd.f32 0.0, %v979
      %v981 = vpop.f32.mrb[0].mxu0
      %v982 = vpop.f32.mrb[0].mxu0
      %v983 = vpop.f32.mrb[0].mxu0
      %984 = vdwg.mxu0
      %v985 = vadd.f32 %v370, %v980
      %v986 = vld [vmem:[%s6] sm:$0x1]
      %v987 = vmul.f32 %v985, %v985
      %v988 = vsel %vm373, %v987, 0.0
      %989 = vadd.xlane.f32.xlu0 %v988
      %v990 = vpop.xlane.xlu0 %989
      %v991 = vmul.f32 %v990, %v377
      %v992 = vadd.f32 %v991, 1e-06
      %v993 = vrsqrt.pop %v992
      %v994 = vmul.f32 %v985, %v993
      %v996 = vlaneseq
      %v997 = vshrl.u32 %v996, 7
      %v998 = vsub.s32 0, %v997
      %v999 = vrot.slane %v986, %v998
      %v1001 = vmul.f32 %v994, %v999
      %v1002 = vpack.c.bf16 %v1001, %v1001
      %v1003 = vld [vmem:[%s7] sm:$0xf]
      %v1004 = vld [vmem:[%s7 + $0x4] sm:$0xf]
      %v1005 = vld [vmem:[%s7 + $0x8] sm:$0xf]
      %v1006 = vld [vmem:[%s7 + $0xc] sm:$0xf]
      %v1011 = vunpack.c.l.b16 %v1003
      %v1012 = vunpack.c.l.b16 %v1004
      %v1013 = vunpack.c.l.b16 %v1005
      %v1014 = vunpack.c.l.b16 %v1006
      %v1015 = vpack.c.b16 %v1012, %v1011
      %v1016 = vpack.c.b16 %v1014, %v1013
      %v1020 = vsel %vm373, %v1002, 0
      %1022 = vmatprep.subr.bf16.mxu0 0
      %1023 = vmatpush1.bf16.msra.mxu0 %v1015
      %1024 = vmatprep.subr.bf16.mxu0 0
      %1025 = vmatpush1.bf16.msra.mxu0 %v1016
      %1026 = vmatprep.subr.bf16.mxu0 0
      %1027 = vmatpush1.bf16.msra.mxu0 0
      %1028 = vmatprep.subr.bf16.mxu0 0
      %1029 = vmatpush1.bf16.msra.mxu0 0
      %1030 = vmatprep.subr.bf16.mxu0 0
      %1031 = vmatpush1.bf16.msra.mxu0 0
      %1032 = vmatprep.subr.bf16.mxu0 0
      %1033 = vmatpush1.bf16.msra.mxu0 0
      %1034 = vmatprep.subr.bf16.mxu0 0
      %1035 = vmatpush1.bf16.msra.mxu0 0
      %1036 = vmatprep.subr.bf16.mxu0 0
      %1037 = vmatpush1.bf16.msra.mxu0 0
      %1038 = vmatprep.subr.bf16.mxu0 0
      %1039 = vmatpush1.bf16.msra.mxu0 0
      %1040 = vmatprep.subr.bf16.mxu0 0
      %1041 = vmatpush1.bf16.msra.mxu0 0
      %1042 = vmatprep.subr.bf16.mxu0 0
      %1043 = vmatpush1.bf16.msra.mxu0 0
      %1044 = vmatprep.subr.bf16.mxu0 0
      %1045 = vmatpush1.bf16.msra.mxu0 0
      %1046 = vmatprep.subr.bf16.mxu0 0
      %1047 = vmatpush1.bf16.msra.mxu0 0
      %1048 = vmatprep.subr.bf16.mxu0 0
      %1049 = vmatpush1.bf16.msra.mxu0 0
      %1050 = vmatprep.subr.bf16.mxu0 0
      %1051 = vmatpush1.bf16.msra.mxu0 0
      %1052 = vmatprep.subr.bf16.mxu0 0
      %1053 = vmatpush1.bf16.msra.mxu0 0
      %1054 = vmatprep.mubr.bf16.mxu0 0
      %1055 = vmatmul.mubr.bf16.gmra.mrb[0].mxu0 %v1020
      %v1056 = vpop.f32.mrb[0].mxu0
      %v1057 = vadd.f32 0.0, %v1056
      %v1058 = vpop.f32.mrb[0].mxu0
      %v1059 = vpop.f32.mrb[0].mxu0
      %v1060 = vpop.f32.mrb[0].mxu0
      %1061 = vdwg.mxu0
      %v1062 = vmax.f32 %v1057, 0.0
      %v1063 = vpack.c.bf16 %v1062, %v1062
      %v1064 = vld [vmem:[%s8] sm:$0xf]
      %v1065 = vld [vmem:[%s8 + $0x4] sm:$0xf]
      %v1066 = vld [vmem:[%s8 + $0x8] sm:$0xf]
      %v1067 = vld [vmem:[%s8 + $0xc] sm:$0xf]
      %v1068 = vld [vmem:[%s8 + $0x10] sm:$0xf]
      %v1069 = vld [vmem:[%s8 + $0x14] sm:$0xf]
      %v1070 = vld [vmem:[%s8 + $0x18] sm:$0xf]
      %v1071 = vld [vmem:[%s8 + $0x1c] sm:$0xf]
      %v1080 = vunpack.c.l.b16 %v1064
      %v1081 = vunpack.c.l.b16 %v1065
      %v1082 = vunpack.c.l.b16 %v1066
      %v1083 = vunpack.c.l.b16 %v1067
      %v1084 = vunpack.c.l.b16 %v1068
      %v1085 = vunpack.c.l.b16 %v1069
      %v1086 = vunpack.c.l.b16 %v1070
      %v1087 = vunpack.c.l.b16 %v1071
      %v1088 = vpack.c.b16 %v1081, %v1080
      %v1089 = vpack.c.b16 %v1083, %v1082
      %v1090 = vpack.c.b16 %v1085, %v1084
      %v1091 = vpack.c.b16 %v1087, %v1086
      %vm1096 = vcmask 523264
      %v1098 = vsel %vm1096, %v1063, 0
      %1100 = vmatprep.subr.bf16.mxu0 0
      %1101 = vmatpush1.bf16.msra.mxu0 %v1088
      %1102 = vmatprep.subr.bf16.mxu0 0
      %1103 = vmatpush1.bf16.msra.mxu0 %v1089
      %1104 = vmatprep.subr.bf16.mxu0 0
      %1105 = vmatpush1.bf16.msra.mxu0 %v1090
      %1106 = vmatprep.subr.bf16.mxu0 0
      %1107 = vmatpush1.bf16.msra.mxu0 %v1091
      %1108 = vmatprep.subr.bf16.mxu0 0
      %1109 = vmatpush1.bf16.msra.mxu0 0
      %1110 = vmatprep.subr.bf16.mxu0 0
      %1111 = vmatpush1.bf16.msra.mxu0 0
      %1112 = vmatprep.subr.bf16.mxu0 0
      %1113 = vmatpush1.bf16.msra.mxu0 0
      %1114 = vmatprep.subr.bf16.mxu0 0
      %1115 = vmatpush1.bf16.msra.mxu0 0
      %1116 = vmatprep.subr.bf16.mxu0 0
      %1117 = vmatpush1.bf16.msra.mxu0 0
      %1118 = vmatprep.subr.bf16.mxu0 0
      %1119 = vmatpush1.bf16.msra.mxu0 0
      %1120 = vmatprep.subr.bf16.mxu0 0
      %1121 = vmatpush1.bf16.msra.mxu0 0
      %1122 = vmatprep.subr.bf16.mxu0 0
      %1123 = vmatpush1.bf16.msra.mxu0 0
      %1124 = vmatprep.subr.bf16.mxu0 0
      %1125 = vmatpush1.bf16.msra.mxu0 0
      %1126 = vmatprep.subr.bf16.mxu0 0
      %1127 = vmatpush1.bf16.msra.mxu0 0
      %1128 = vmatprep.subr.bf16.mxu0 0
      %1129 = vmatpush1.bf16.msra.mxu0 0
      %1130 = vmatprep.subr.bf16.mxu0 0
      %1131 = vmatpush1.bf16.msra.mxu0 0
      %1132 = vmatprep.mubr.bf16.mxu0 0
      %1133 = vmatmul.mubr.bf16.gmra.mrb[0].mxu0 %v1098
      %v1134 = vpop.f32.mrb[0].mxu0
      %v1135 = vadd.f32 0.0, %v1134
      %v1136 = vpop.f32.mrb[0].mxu0
      %v1137 = vpop.f32.mrb[0].mxu0
      %v1138 = vpop.f32.mrb[0].mxu0
      %1139 = vdwg.mxu0
      %v1140 = vadd.f32 %v985, %v1135
      %v1141 = vld [vmem:[%s9] sm:$0x1]
      %v1142 = vmul.f32 %v1140, %v1140
      %v1143 = vsel %vm373, %v1142, 0.0
      %1144 = vadd.xlane.f32.xlu0 %v1143
      %v1145 = vpop.xlane.xlu0 %1144
      %v1146 = vmul.f32 %v1145, %v377
      %v1147 = vadd.f32 %v1146, 1e-06
      %v1148 = vrsqrt.pop %v1147
      %v1149 = vmul.f32 %v1140, %v1148
      %v1151 = vlaneseq
      %v1152 = vshrl.u32 %v1151, 7
      %v1153 = vsub.s32 0, %v1152
      %v1154 = vrot.slane %v1141, %v1153
      %v1156 = vmul.f32 %v1149, %v1154
      %1157 = vst.msk [vmem:[%s368] sm:$0xff] %vm373, %v1156
      %p1158 = scmp.lt.s32.totalorder %s21, 1
      %s1159 = scalar_select %p1158, %s21, 1
      %s1160 = smul.addr %s1159, 8
      %s1161 = scalar_lea.vmem %s10, %s1160
      // Predicated region
      $region61: #{forward_jit.3} parent=59 // pred_check
        %p1162 = pneg %p259
      $region62: #{forward_jit.3} parent=59 // pred_check_branch
        %1164 = sbr.rel (%p1162) target = $region64
      $region63: #{forward_jit.3} parent=59 // pred_region
        _
      $region64: #{forward_jit.3} parent=59 // pred_fallthru
        _
    $region60: #{forward_jit.3} parent=5 // pred_fallthru
      _
    %p1165 = scmp.le.s32.totalorder 2, %s16
    // Predicated region
    $region65: #{forward_jit.3} parent=5 // pred_check
      %p1166 = pneg %p1165
    $region66: #{forward_jit.3} parent=5 // pred_check_branch
      %1168 = sbr.rel (%p1166) target = $region68
    $region67: #{forward_jit.3} parent=5 // pred_region
      %s1169 = ssub.s32 %s16, 2
      // Predicated region
      $region69: #{forward_jit.3} parent=67 // pred_check
        %p1170 = pneg %p265
      $region70: #{forward_jit.3} parent=67 // pred_check_branch
        %1172 = sbr.rel (%p1170) target = $region72
      $region71: #{forward_jit.3} parent=67 // pred_region
        %p1173 = scmp.lt.s32.totalorder %s22, 1
        %s1174 = scalar_select %p1173, %s22, 1
        %s1175 = smul.addr %s1174, 8
        %s1176 = scalar_lea.vmem %s10, %s1175
      $region72: #{forward_jit.3} parent=67 // pred_fallthru
        _
    $region68: #{forward_jit.3} parent=5 // pred_fallthru
      _
  $region6: #{forward_jit.3} parent=0 // loop_footer
    %s20 = sadd.s32 1, %s16
  $region7: #{forward_jit.3} parent=0 // loop_footer_branch
    %15 = sbr.rel target = $region3
  $region8: #{forward_jit.3} parent=0 // loop_exit
    _

// kernel: forward_jit.4
$region0: #{forward_jit.4}
  #allocation0 [shape = 'u32[]', space=smem, size = 0x4, offset = 0x4, fixed_abs, tag = 'smem constant byte address 0x4 - core index']
  #allocation1 [shape = 'u32[144,128]{1,0:T(1,128)}', space=vmem, size = 0x12000, scoped, tag = 'internal scratch']
  %s0 = inlined_call_operand.vmem [shape: f32[2,8,32], index: 0, kind: input, shape index: {}]
  %s1 = inlined_call_operand.vmem [shape: f32[2,8,32], index: 1, kind: input, shape index: {}]
  %s2 = inlined_call_operand.vmem [shape: f32[1,32], index: 2, kind: input, shape index: {}]
  %s3 = inlined_call_operand.vmem [shape: bf16[32,96], index: 3, kind: input, shape index: {}]
  %s4 = inlined_call_operand.vmem [shape: bf16[32,32], index: 4, kind: input, shape index: {}]
  %s5 = inlined_call_operand.vmem [shape: f32[4,8,8], index: 5, kind: input, shape index: {}]
  %s6 = inlined_call_operand.vmem [shape: f32[1,32], index: 6, kind: input, shape index: {}]
  %s7 = inlined_call_operand.vmem [shape: bf16[32,32], index: 7, kind: input, shape index: {}]
  %s8 = inlined_call_operand.vmem [shape: bf16[32,64], index: 8, kind: input, shape index: {}]
  %s9 = inlined_call_operand.vmem [shape: bf16[32,32], index: 9, kind: input, shape index: {}]
  %s10 = inlined_call_operand.vmem [shape: f32[2,1,8], index: 10, kind: input, shape index: {}]
  %s11 = inlined_call_operand.vmem [shape: f32[1,32], index: 11, kind: input, shape index: {}]
  %s12 = inlined_call_operand.vmem [shape: bf16[32,64], index: 12, kind: input, shape index: {}]
  %s13 = inlined_call_operand.vmem [shape: bf16[64,32], index: 13, kind: input, shape index: {}]
  %s14 = inlined_call_operand.vmem [shape: f32[2,8,32], index: 14, kind: output, shape index: {}]
  %s15 = sld [smem:[#allocation0]]
  $region89: #{forward_jit.4} parent=0
    _
  %s17 = ssub.s32 1, %s15
  %s18 = scalar_select 0, %s17, %s15
  loop: start=0, step=1, limit=4
  $region2: #{forward_jit.4} parent=0 // loop_pre_header
    _
  $region3: #{forward_jit.4} parent=0 // loop_header
    %s20 = sphi 0, %s24
    %p21 = scmp.ge.s32.totalorder %s20, 4
    %s30 = sphi 0, %s32
    %s33 = sphi 0, %s30
    %s34 = sphi 0, %s33
    %s50 = sphi 0, %s34
    %s56 = sphi 0, %s58
    %s59 = sphi 0, %s56
    %s60 = sphi 0, %s59
    %s76 = sphi 0, %s60
    %s80 = sphi 0, %s80
    %s82 = sphi 0, %s80
    %s83 = sphi 0, %s82
    %s97 = sphi 0, %s83
    %s101 = sphi 0, %s101
    %s103 = sphi 0, %s101
    %s104 = sphi 0, %s103
    %s118 = sphi 0, %s104
    %s122 = sphi 0, %s122
    %s124 = sphi 0, %s122
    %s125 = sphi 0, %s124
    %s139 = sphi 0, %s125
    %s143 = sphi 0, %s143
    %s145 = sphi 0, %s143
    %s146 = sphi 0, %s145
    %s160 = sphi 0, %s146
    %s164 = sphi 0, %s164
    %s166 = sphi 0, %s164
    %s167 = sphi 0, %s166
    %s181 = sphi 0, %s167
    %s185 = sphi 0, %s185
    %s187 = sphi 0, %s185
    %s188 = sphi 0, %s187
    %s202 = sphi 0, %s188
    %s206 = sphi 0, %s206
    %s208 = sphi 0, %s206
    %s209 = sphi 0, %s208
    %s223 = sphi 0, %s209
    %s227 = sphi 0, %s227
    %s229 = sphi 0, %s227
    %s230 = sphi 0, %s229
    %s244 = sphi 0, %s230
    %s250 = sphi 0, %s252
    %s253 = sphi 0, %s250
    %s254 = sphi 0, %s253
    %s270 = sphi 0, %s254
    %s274 = sphi 0, %s274
    %s276 = sphi 0, %s274
    %s277 = sphi 0, %s276
    %s291 = sphi 0, %s277
    %s295 = sphi 0, %s295
    %s297 = sphi 0, %s295
    %s298 = sphi 0, %s297
    %s312 = sphi 0, %s298
    %s316 = sphi 0, %s316
    %s318 = sphi 0, %s316
    %s319 = sphi 0, %s318
    %s333 = sphi 0, %s319
    %s339 = sphi 0, %s341
    %s342 = sphi 0, %s339
    %s343 = sphi 0, %s342
    %s359 = sphi 0, %s343
  $region4: #{forward_jit.4} parent=0 // loop_header_branch
    %23 = sbr.rel (%p21) target = $region8
  $region5: #{forward_jit.4} parent=0 // loop_body
    %s25 = ssub.s32 %s20, 1
    %s26 = ssub.s32 %s20, 2
    %s27 = sadd.s32 %s20, 1
    %s28 = ssub.s32 %s20, %s27
    %p29 = scmp.eq.s32.totalorder %s28, 0
    %s31 = sadd.s32 %s30, 1
    %s32 = scalar_select %p29, %s30, %s31
    %p35 = pneg %p29
    %p36 = scmp.eq.s32.totalorder %s20, 1
    %p37 = por %p35, %p36
    %p38 = scmp.ne.s32.totalorder %s30, %s33
    %p39 = scmp.eq.s32.totalorder %s20, 0
    %p40 = por %p38, %p39
    %p41 = scmp.ne.s32.totalorder %s30, %s33
    %p42 = scmp.eq.s32.totalorder %s25, 1
    %p43 = por %p41, %p42
    %p44 = scmp.ne.s32.totalorder %s33, %s34
    %p45 = scmp.eq.s32.totalorder %s25, 0
    %p46 = por %p44, %p45
    %p47 = scmp.ne.s32.totalorder %s33, %s34
    %p48 = scmp.eq.s32.totalorder %s26, 1
    %p49 = por %p47, %p48
    %p51 = scmp.ne.s32.totalorder %s34, %s50
    %p52 = scmp.eq.s32.totalorder %s26, 0
    %p53 = por %p51, %p52
    %s54 = ssub.s32 %s20, %s27
    %p55 = scmp.eq.s32.totalorder %s54, 0
    %s57 = sadd.s32 %s56, 1
    %s58 = scalar_select %p55, %s56, %s57
    %p61 = pneg %p55
    %p62 = scmp.eq.s32.totalorder %s20, 1
    %p63 = por %p61, %p62
    %p64 = scmp.ne.s32.totalorder %s56, %s59
    %p65 = scmp.eq.s32.totalorder %s20, 0
    %p66 = por %p64, %p65
    %p67 = scmp.ne.s32.totalorder %s56, %s59
    %p68 = scmp.eq.s32.totalorder %s25, 1
    %p69 = por %p67, %p68
    %p70 = scmp.ne.s32.totalorder %s59, %s60
    %p71 = scmp.eq.s32.totalorder %s25, 0
    %p72 = por %p70, %p71
    %p73 = scmp.ne.s32.totalorder %s59, %s60
    %p74 = scmp.eq.s32.totalorder %s26, 1
    %p75 = por %p73, %p74
    %p77 = scmp.ne.s32.totalorder %s60, %s76
    %p78 = scmp.eq.s32.totalorder %s26, 0
    %p79 = por %p77, %p78
    %s81 = sadd.s32 %s80, 1
    %p84 = scmp.eq.s32.totalorder %s20, 1
    %p85 = scmp.ne.s32.totalorder %s80, %s82
    %p86 = scmp.eq.s32.totalorder %s20, 0
    %p87 = por %p85, %p86
    %p88 = scmp.ne.s32.totalorder %s80, %s82
    %p89 = scmp.eq.s32.totalorder %s25, 1
    %p90 = por %p88, %p89
    %p91 = scmp.ne.s32.totalorder %s82, %s83
    %p92 = scmp.eq.s32.totalorder %s25, 0
    %p93 = por %p91, %p92
    %p94 = scmp.ne.s32.totalorder %s82, %s83
    %p95 = scmp.eq.s32.totalorder %s26, 1
    %p96 = por %p94, %p95
    %p98 = scmp.ne.s32.totalorder %s83, %s97
    %p99 = scmp.eq.s32.totalorder %s26, 0
    %p100 = por %p98, %p99
    %s102 = sadd.s32 %s101, 1
    %p105 = scmp.eq.s32.totalorder %s20, 1
    %p106 = scmp.ne.s32.totalorder %s101, %s103
    %p107 = scmp.eq.s32.totalorder %s20, 0
    %p108 = por %p106, %p107
    %p109 = scmp.ne.s32.totalorder %s101, %s103
    %p110 = scmp.eq.s32.totalorder %s25, 1
    %p111 = por %p109, %p110
    %p112 = scmp.ne.s32.totalorder %s103, %s104
    %p113 = scmp.eq.s32.totalorder %s25, 0
    %p114 = por %p112, %p113
    %p115 = scmp.ne.s32.totalorder %s103, %s104
    %p116 = scmp.eq.s32.totalorder %s26, 1
    %p117 = por %p115, %p116
    %p119 = scmp.ne.s32.totalorder %s104, %s118
    %p120 = scmp.eq.s32.totalorder %s26, 0
    %p121 = por %p119, %p120
    %s123 = sadd.s32 %s122, 1
    %p126 = scmp.eq.s32.totalorder %s20, 1
    %p127 = scmp.ne.s32.totalorder %s122, %s124
    %p128 = scmp.eq.s32.totalorder %s20, 0
    %p129 = por %p127, %p128
    %p130 = scmp.ne.s32.totalorder %s122, %s124
    %p131 = scmp.eq.s32.totalorder %s25, 1
    %p132 = por %p130, %p131
    %p133 = scmp.ne.s32.totalorder %s124, %s125
    %p134 = scmp.eq.s32.totalorder %s25, 0
    %p135 = por %p133, %p134
    %p136 = scmp.ne.s32.totalorder %s124, %s125
    %p137 = scmp.eq.s32.totalorder %s26, 1
    %p138 = por %p136, %p137
    %p140 = scmp.ne.s32.totalorder %s125, %s139
    %p141 = scmp.eq.s32.totalorder %s26, 0
    %p142 = por %p140, %p141
    %s144 = sadd.s32 %s143, 1
    %p147 = scmp.eq.s32.totalorder %s20, 1
    %p148 = scmp.ne.s32.totalorder %s143, %s145
    %p149 = scmp.eq.s32.totalorder %s20, 0
    %p150 = por %p148, %p149
    %p151 = scmp.ne.s32.totalorder %s143, %s145
    %p152 = scmp.eq.s32.totalorder %s25, 1
    %p153 = por %p151, %p152
    %p154 = scmp.ne.s32.totalorder %s145, %s146
    %p155 = scmp.eq.s32.totalorder %s25, 0
    %p156 = por %p154, %p155
    %p157 = scmp.ne.s32.totalorder %s145, %s146
    %p158 = scmp.eq.s32.totalorder %s26, 1
    %p159 = por %p157, %p158
    %p161 = scmp.ne.s32.totalorder %s146, %s160
    %p162 = scmp.eq.s32.totalorder %s26, 0
    %p163 = por %p161, %p162
    %s165 = sadd.s32 %s164, 1
    %p168 = scmp.eq.s32.totalorder %s20, 1
    %p169 = scmp.ne.s32.totalorder %s164, %s166
    %p170 = scmp.eq.s32.totalorder %s20, 0
    %p171 = por %p169, %p170
    %p172 = scmp.ne.s32.totalorder %s164, %s166
    %p173 = scmp.eq.s32.totalorder %s25, 1
    %p174 = por %p172, %p173
    %p175 = scmp.ne.s32.totalorder %s166, %s167
    %p176 = scmp.eq.s32.totalorder %s25, 0
    %p177 = por %p175, %p176
    %p178 = scmp.ne.s32.totalorder %s166, %s167
    %p179 = scmp.eq.s32.totalorder %s26, 1
    %p180 = por %p178, %p179
    %p182 = scmp.ne.s32.totalorder %s167, %s181
    %p183 = scmp.eq.s32.totalorder %s26, 0
    %p184 = por %p182, %p183
    %s186 = sadd.s32 %s185, 1
    %p189 = scmp.eq.s32.totalorder %s20, 1
    %p190 = scmp.ne.s32.totalorder %s185, %s187
    %p191 = scmp.eq.s32.totalorder %s20, 0
    %p192 = por %p190, %p191
    %p193 = scmp.ne.s32.totalorder %s185, %s187
    %p194 = scmp.eq.s32.totalorder %s25, 1
    %p195 = por %p193, %p194
    %p196 = scmp.ne.s32.totalorder %s187, %s188
    %p197 = scmp.eq.s32.totalorder %s25, 0
    %p198 = por %p196, %p197
    %p199 = scmp.ne.s32.totalorder %s187, %s188
    %p200 = scmp.eq.s32.totalorder %s26, 1
    %p201 = por %p199, %p200
    %p203 = scmp.ne.s32.totalorder %s188, %s202
    %p204 = scmp.eq.s32.totalorder %s26, 0
    %p205 = por %p203, %p204
    %s207 = sadd.s32 %s206, 1
    %p210 = scmp.eq.s32.totalorder %s20, 1
    %p211 = scmp.ne.s32.totalorder %s206, %s208
    %p212 = scmp.eq.s32.totalorder %s20, 0
    %p213 = por %p211, %p212
    %p214 = scmp.ne.s32.totalorder %s206, %s208
    %p215 = scmp.eq.s32.totalorder %s25, 1
    %p216 = por %p214, %p215
    %p217 = scmp.ne.s32.totalorder %s208, %s209
    %p218 = scmp.eq.s32.totalorder %s25, 0
    %p219 = por %p217, %p218
    %p220 = scmp.ne.s32.totalorder %s208, %s209
    %p221 = scmp.eq.s32.totalorder %s26, 1
    %p222 = por %p220, %p221
    %p224 = scmp.ne.s32.totalorder %s209, %s223
    %p225 = scmp.eq.s32.totalorder %s26, 0
    %p226 = por %p224, %p225
    %s228 = sadd.s32 %s227, 1
    %p231 = scmp.eq.s32.totalorder %s20, 1
    %p232 = scmp.ne.s32.totalorder %s227, %s229
    %p233 = scmp.eq.s32.totalorder %s20, 0
    %p234 = por %p232, %p233
    %p235 = scmp.ne.s32.totalorder %s227, %s229
    %p236 = scmp.eq.s32.totalorder %s25, 1
    %p237 = por %p235, %p236
    %p238 = scmp.ne.s32.totalorder %s229, %s230
    %p239 = scmp.eq.s32.totalorder %s25, 0
    %p240 = por %p238, %p239
    %p241 = scmp.ne.s32.totalorder %s229, %s230
    %p242 = scmp.eq.s32.totalorder %s26, 1
    %p243 = por %p241, %p242
    %p245 = scmp.ne.s32.totalorder %s230, %s244
    %p246 = scmp.eq.s32.totalorder %s26, 0
    %p247 = por %p245, %p246
    %s248 = ssub.s32 %s20, %s27
    %p249 = scmp.eq.s32.totalorder %s248, 0
    %s251 = sadd.s32 %s250, 1
    %s252 = scalar_select %p249, %s250, %s251
    %p255 = pneg %p249
    %p256 = scmp.eq.s32.totalorder %s20, 1
    %p257 = por %p255, %p256
    %p258 = scmp.ne.s32.totalorder %s250, %s253
    %p259 = scmp.eq.s32.totalorder %s20, 0
    %p260 = por %p258, %p259
    %p261 = scmp.ne.s32.totalorder %s250, %s253
    %p262 = scmp.eq.s32.totalorder %s25, 1
    %p263 = por %p261, %p262
    %p264 = scmp.ne.s32.totalorder %s253, %s254
    %p265 = scmp.eq.s32.totalorder %s25, 0
    %p266 = por %p264, %p265
    %p267 = scmp.ne.s32.totalorder %s253, %s254
    %p268 = scmp.eq.s32.totalorder %s26, 1
    %p269 = por %p267, %p268
    %p271 = scmp.ne.s32.totalorder %s254, %s270
    %p272 = scmp.eq.s32.totalorder %s26, 0
    %p273 = por %p271, %p272
    %s275 = sadd.s32 %s274, 1
    %p278 = scmp.eq.s32.totalorder %s20, 1
    %p279 = scmp.ne.s32.totalorder %s274, %s276
    %p280 = scmp.eq.s32.totalorder %s20, 0
    %p281 = por %p279, %p280
    %p282 = scmp.ne.s32.totalorder %s274, %s276
    %p283 = scmp.eq.s32.totalorder %s25, 1
    %p284 = por %p282, %p283
    %p285 = scmp.ne.s32.totalorder %s276, %s277
    %p286 = scmp.eq.s32.totalorder %s25, 0
    %p287 = por %p285, %p286
    %p288 = scmp.ne.s32.totalorder %s276, %s277
    %p289 = scmp.eq.s32.totalorder %s26, 1
    %p290 = por %p288, %p289
    %p292 = scmp.ne.s32.totalorder %s277, %s291
    %p293 = scmp.eq.s32.totalorder %s26, 0
    %p294 = por %p292, %p293
    %s296 = sadd.s32 %s295, 1
    %p299 = scmp.eq.s32.totalorder %s20, 1
    %p300 = scmp.ne.s32.totalorder %s295, %s297
    %p301 = scmp.eq.s32.totalorder %s20, 0
    %p302 = por %p300, %p301
    %p303 = scmp.ne.s32.totalorder %s295, %s297
    %p304 = scmp.eq.s32.totalorder %s25, 1
    %p305 = por %p303, %p304
    %p306 = scmp.ne.s32.totalorder %s297, %s298
    %p307 = scmp.eq.s32.totalorder %s25, 0
    %p308 = por %p306, %p307
    %p309 = scmp.ne.s32.totalorder %s297, %s298
    %p310 = scmp.eq.s32.totalorder %s26, 1
    %p311 = por %p309, %p310
    %p313 = scmp.ne.s32.totalorder %s298, %s312
    %p314 = scmp.eq.s32.totalorder %s26, 0
    %p315 = por %p313, %p314
    %s317 = sadd.s32 %s316, 1
    %p320 = scmp.eq.s32.totalorder %s20, 1
    %p321 = scmp.ne.s32.totalorder %s316, %s318
    %p322 = scmp.eq.s32.totalorder %s20, 0
    %p323 = por %p321, %p322
    %p324 = scmp.ne.s32.totalorder %s316, %s318
    %p325 = scmp.eq.s32.totalorder %s25, 1
    %p326 = por %p324, %p325
    %p327 = scmp.ne.s32.totalorder %s318, %s319
    %p328 = scmp.eq.s32.totalorder %s25, 0
    %p329 = por %p327, %p328
    %p330 = scmp.ne.s32.totalorder %s318, %s319
    %p331 = scmp.eq.s32.totalorder %s26, 1
    %p332 = por %p330, %p331
    %p334 = scmp.ne.s32.totalorder %s319, %s333
    %p335 = scmp.eq.s32.totalorder %s26, 0
    %p336 = por %p334, %p335
    %s337 = ssub.s32 %s20, %s27
    %p338 = scmp.eq.s32.totalorder %s337, 0
    %s340 = sadd.s32 %s339, 1
    %s341 = scalar_select %p338, %s339, %s340
    %p344 = pneg %p338
    %p345 = scmp.eq.s32.totalorder %s20, 1
    %p346 = por %p344, %p345
    %p347 = scmp.ne.s32.totalorder %s339, %s342
    %p348 = scmp.eq.s32.totalorder %s20, 0
    %p349 = por %p347, %p348
    %p350 = scmp.ne.s32.totalorder %s339, %s342
    %p351 = scmp.eq.s32.totalorder %s25, 1
    %p352 = por %p350, %p351
    %p353 = scmp.ne.s32.totalorder %s342, %s343
    %p354 = scmp.eq.s32.totalorder %s25, 0
    %p355 = por %p353, %p354
    %p356 = scmp.ne.s32.totalorder %s342, %s343
    %p357 = scmp.eq.s32.totalorder %s26, 1
    %p358 = por %p356, %p357
    %p360 = scmp.ne.s32.totalorder %s343, %s359
    %p361 = scmp.eq.s32.totalorder %s26, 0
    %p362 = por %p360, %p361
    %p363 = scmp.le.s32.totalorder 1, %s20
    %p364 = scmp.lt.s32.totalorder %s20, 3
    %p365 = pnand %p363, %p364
    %p366 = pneg %p365
    // Predicated region
    $region9: #{forward_jit.4} parent=5 // pred_check
      _
    $region10: #{forward_jit.4} parent=5 // pred_check_branch
      %368 = sbr.rel (%p365) target = $region12
    $region11: #{forward_jit.4} parent=5 // pred_region
      %s369 = ssub.s32 %s20, 1
      // Predicated region
      $region13: #{forward_jit.4} parent=11 // pred_check
        %p370 = pneg %p93
      $region14: #{forward_jit.4} parent=11 // pred_check_branch
        %372 = sbr.rel (%p370) target = $region16
      $region15: #{forward_jit.4} parent=11 // pred_region
        _
      $region16: #{forward_jit.4} parent=11 // pred_fallthru
        _
      // Predicated region
      $region17: #{forward_jit.4} parent=11 // pred_check
        %p373 = pneg %p114
      $region18: #{forward_jit.4} parent=11 // pred_check_branch
        %375 = sbr.rel (%p373) target = $region20
      $region19: #{forward_jit.4} parent=11 // pred_region
        _
      $region20: #{forward_jit.4} parent=11 // pred_fallthru
        _
      // Predicated region
      $region21: #{forward_jit.4} parent=11 // pred_check
        %p376 = pneg %p135
      $region22: #{forward_jit.4} parent=11 // pred_check_branch
        %378 = sbr.rel (%p376) target = $region24
      $region23: #{forward_jit.4} parent=11 // pred_region
        _
      $region24: #{forward_jit.4} parent=11 // pred_fallthru
        _
      // Predicated region
      $region25: #{forward_jit.4} parent=11 // pred_check
        %p379 = pneg %p156
      $region26: #{forward_jit.4} parent=11 // pred_check_branch
        %381 = sbr.rel (%p379) target = $region28
      $region27: #{forward_jit.4} parent=11 // pred_region
        _
      $region28: #{forward_jit.4} parent=11 // pred_fallthru
        _
      // Predicated region
      $region29: #{forward_jit.4} parent=11 // pred_check
        %p382 = pneg %p177
      $region30: #{forward_jit.4} parent=11 // pred_check_branch
        %384 = sbr.rel (%p382) target = $region32
      $region31: #{forward_jit.4} parent=11 // pred_region
        _
      $region32: #{forward_jit.4} parent=11 // pred_fallthru
        _
      // Predicated region
      $region33: #{forward_jit.4} parent=11 // pred_check
        %p385 = pneg %p198
      $region34: #{forward_jit.4} parent=11 // pred_check_branch
        %387 = sbr.rel (%p385) target = $region36
      $region35: #{forward_jit.4} parent=11 // pred_region
        _
      $region36: #{forward_jit.4} parent=11 // pred_fallthru
        _
      // Predicated region
      $region37: #{forward_jit.4} parent=11 // pred_check
        %p388 = pneg %p219
      $region38: #{forward_jit.4} parent=11 // pred_check_branch
        %390 = sbr.rel (%p388) target = $region40
      $region39: #{forward_jit.4} parent=11 // pred_region
        _
      $region40: #{forward_jit.4} parent=11 // pred_fallthru
        _
      // Predicated region
      $region41: #{forward_jit.4} parent=11 // pred_check
        %p391 = pneg %p240
      $region42: #{forward_jit.4} parent=11 // pred_check_branch
        %393 = sbr.rel (%p391) target = $region44
      $region43: #{forward_jit.4} parent=11 // pred_region
        _
      $region44: #{forward_jit.4} parent=11 // pred_fallthru
        _
      // Predicated region
      $region45: #{forward_jit.4} parent=11 // pred_check
        %p394 = pneg %p287
      $region46: #{forward_jit.4} parent=11 // pred_check_branch
        %396 = sbr.rel (%p394) target = $region48
      $region47: #{forward_jit.4} parent=11 // pred_region
        _
      $region48: #{forward_jit.4} parent=11 // pred_fallthru
        _
      // Predicated region
      $region49: #{forward_jit.4} parent=11 // pred_check
        %p397 = pneg %p308
      $region50: #{forward_jit.4} parent=11 // pred_check_branch
        %399 = sbr.rel (%p397) target = $region52
      $region51: #{forward_jit.4} parent=11 // pred_region
        _
      $region52: #{forward_jit.4} parent=11 // pred_fallthru
        _
      // Predicated region
      $region53: #{forward_jit.4} parent=11 // pred_check
        %p400 = pneg %p329
      $region54: #{forward_jit.4} parent=11 // pred_check_branch
        %402 = sbr.rel (%p400) target = $region56
      $region55: #{forward_jit.4} parent=11 // pred_region
        _
      $region56: #{forward_jit.4} parent=11 // pred_fallthru
        _
    $region12: #{forward_jit.4} parent=5 // pred_fallthru
      _
    %p403 = scmp.lt.s32.totalorder %s20, 2
    // Predicated region
    $region57: #{forward_jit.4} parent=5 // pred_check
      %p404 = pneg %p403
    $region58: #{forward_jit.4} parent=5 // pred_check_branch
      %406 = sbr.rel (%p404) target = $region60
    $region59: #{forward_jit.4} parent=5 // pred_region
      // Predicated region
      $region61: #{forward_jit.4} parent=59 // pred_check
        %p407 = pneg %p40
      $region62: #{forward_jit.4} parent=59 // pred_check_branch
        %409 = sbr.rel (%p407) target = $region64
      $region63: #{forward_jit.4} parent=59 // pred_region
        %p410 = scmp.lt.s32.totalorder %s20, 1
        %s411 = scalar_select %p410, %s20, 1
        %s412 = smul.addr %s411, 8
        %s413 = scalar_lea.vmem %s0, %s412
      $region64: #{forward_jit.4} parent=59 // pred_fallthru
        _
      // Predicated region
      $region65: #{forward_jit.4} parent=59 // pred_check
        %p414 = pneg %p66
      $region66: #{forward_jit.4} parent=59 // pred_check_branch
        %416 = sbr.rel (%p414) target = $region68
      $region67: #{forward_jit.4} parent=59 // pred_region
        %p417 = scmp.lt.s32.totalorder %s20, 1
        %s418 = scalar_select %p417, %s20, 1
        %s419 = smul.addr %s418, 8
        %s420 = scalar_lea.vmem %s1, %s419
      $region68: #{forward_jit.4} parent=59 // pred_fallthru
        _
      // Predicated region
      $region69: #{forward_jit.4} parent=59 // pred_check
        %p421 = pneg %p260
      $region70: #{forward_jit.4} parent=59 // pred_check_branch
        %423 = sbr.rel (%p421) target = $region72
      $region71: #{forward_jit.4} parent=59 // pred_region
        %p424 = scmp.lt.s32.totalorder %s20, 1
        %s425 = scalar_select %p424, %s20, 1
        %s426 = scalar_lea.vmem %s10, %s425
      $region72: #{forward_jit.4} parent=59 // pred_fallthru
        _
    $region60: #{forward_jit.4} parent=5 // pred_fallthru
      _
    %p427 = scmp.le.s32.totalorder 1, %s20
    %p428 = scmp.lt.s32.totalorder %s20, 3
    %p429 = pnand %p427, %p428
    %p430 = pneg %p429
    // Predicated region
    $region73: #{forward_jit.4} parent=5 // pred_check
      _
    $region74: #{forward_jit.4} parent=5 // pred_check_branch
      %432 = sbr.rel (%p429) target = $region76
    $region75: #{forward_jit.4} parent=5 // pred_region
      %s433 = ssub.s32 %s20, 1
      %p434 = scmp.lt.s32.totalorder %s25, 1
      %s435 = scalar_select %p434, %s25, 1
      %s436 = smul.addr %s435, 8
      %s437 = scalar_lea.vmem %s0, %s436
      %p438 = pneg %p46
      %p439 = pneg %p43
      %p440 = scmp.lt.s32.totalorder %s25, 1
      %s441 = scalar_select %p440, %s25, 1
      %s442 = smul.addr %s441, 8
      %s443 = scalar_lea.vmem %s1, %s442
      %p444 = pneg %p72
      %p445 = pneg %p69
      %p446 = pneg %p93
      %p447 = pneg %p90
      %p448 = pneg %p114
      %p449 = pneg %p111
      %p450 = pneg %p135
      %p451 = pneg %p132
      %p452 = pneg %p156
      %p453 = pneg %p153
      %p454 = pneg %p177
      %p455 = pneg %p174
      %p456 = pneg %p198
      %p457 = pneg %p195
      %p458 = pneg %p219
      %p459 = pneg %p216
      %p460 = pneg %p240
      %p461 = pneg %p237
      %p462 = scmp.lt.s32.totalorder %s25, 1
      %s463 = scalar_select %p462, %s25, 1
      %s464 = scalar_lea.vmem %s10, %s463
      %p465 = pneg %p266
      %p466 = pneg %p263
      %p467 = pneg %p287
      %p468 = pneg %p284
      %p469 = pneg %p308
      %p470 = pneg %p305
      %p471 = pneg %p329
      %p472 = pneg %p326
      %p473 = pneg %p355
      %p474 = pneg %p352
      %p475 = scmp.lt.s32.totalorder %s25, 1
      %s476 = scalar_select %p475, %s25, 1
      %s477 = smul.addr %s476, 8
      %s478 = scalar_lea.vmem %s14, %s477
      %p479 = scmp.lt.s32.totalorder %s25, 1
      %s480 = scalar_select %p479, %s25, 1
      %s481 = smul.addr %s480, 8
      %s482 = scalar_lea.vmem %s0, %s481
      %p483 = scmp.lt.s32.totalorder %s25, 1
      %s484 = scalar_select %p483, %s25, 1
      %s485 = smul.addr %s484, 8
      %s486 = scalar_lea.vmem %s1, %s485
      %p487 = scmp.lt.s32.totalorder %s25, 1
      %s488 = scalar_select %p487, %s25, 1
      %s489 = scalar_lea.vmem %s10, %s488
      %p490 = scmp.lt.s32.totalorder %s25, 1
      %s491 = scalar_select %p490, %s25, 1
      %s492 = smul.addr %s491, 8
      %s493 = scalar_lea.vmem %s14, %s492
      %v495 = vld [vmem:[%s482] sm:$0xff]
      %v496 = vld [vmem:[%s2] sm:$0x1]
      %v497 = vmul.f32 %v495, %v495
      %vm498 = vcmask 261120
      %v499 = vsel %vm498, %v497, 0.0
      %500 = vadd.xlane.f32.xlu0 %v499
      %v501 = vpop.xlane.xlu0 %500
      %v502 = vrcp.pop 32.0
      %v503 = vmul.f32 %v501, %v502
      %v504 = vadd.f32 %v503, 1e-06
      %v505 = vrsqrt.pop %v504
      %v506 = vmul.f32 %v495, %v505
      %v508 = vlaneseq
      %v509 = vshrl.u32 %v508, 7
      %v510 = vsub.s32 0, %v509
      %v511 = vrot.slane %v496, %v510
      %v513 = vmul.f32 %v506, %v511
      %v514 = vpack.c.bf16 %v513, %v513
      %v515 = vld [vmem:[%s3] sm:$0xf]
      %v516 = vld [vmem:[%s3 + $0x4] sm:$0xf]
      %v517 = vld [vmem:[%s3 + $0x8] sm:$0xf]
      %v518 = vld [vmem:[%s3 + $0xc] sm:$0xf]
      %v523 = vunpack.c.l.b16 %v515
      %v524 = vunpack.c.l.b16 %v516
      %v525 = vunpack.c.l.b16 %v517
      %v526 = vunpack.c.l.b16 %v518
      %v527 = vpack.c.b16 %v524, %v523
      %v528 = vpack.c.b16 %v526, %v525
      %v532 = vsel %vm498, %v514, 0
      %534 = vmatprep.subr.bf16.mxu0 0
      %535 = vmatpush1.bf16.msra.mxu0 %v527
      %536 = vmatprep.subr.bf16.mxu0 0
      %537 = vmatpush1.bf16.msra.mxu0 %v528
      %538 = vmatprep.subr.bf16.mxu0 0
      %539 = vmatpush1.bf16.msra.mxu0 0
      %540 = vmatprep.subr.bf16.mxu0 0
      %541 = vmatpush1.bf16.msra.mxu0 0
      %542 = vmatprep.subr.bf16.mxu0 0
      %543 = vmatpush1.bf16.msra.mxu0 0
      %544 = vmatprep.subr.bf16.mxu0 0
      %545 = vmatpush1.bf16.msra.mxu0 0
      %546 = vmatprep.subr.bf16.mxu0 0
      %547 = vmatpush1.bf16.msra.mxu0 0
      %548 = vmatprep.subr.bf16.mxu0 0
      %549 = vmatpush1.bf16.msra.mxu0 0
      %550 = vmatprep.subr.bf16.mxu0 0
      %551 = vmatpush1.bf16.msra.mxu0 0
      %552 = vmatprep.subr.bf16.mxu0 0
      %553 = vmatpush1.bf16.msra.mxu0 0
      %554 = vmatprep.subr.bf16.mxu0 0
      %555 = vmatpush1.bf16.msra.mxu0 0
      %556 = vmatprep.subr.bf16.mxu0 0
      %557 = vmatpush1.bf16.msra.mxu0 0
      %558 = vmatprep.subr.bf16.mxu0 0
      %559 = vmatpush1.bf16.msra.mxu0 0
      %560 = vmatprep.subr.bf16.mxu0 0
      %561 = vmatpush1.bf16.msra.mxu0 0
      %562 = vmatprep.subr.bf16.mxu0 0
      %563 = vmatpush1.bf16.msra.mxu0 0
      %564 = vmatprep.subr.bf16.mxu0 0
      %565 = vmatpush1.bf16.msra.mxu0 0
      %566 = vmatprep.mubr.bf16.mxu0 0
      %567 = vmatmul.mubr.bf16.gmra.mrb[0].mxu0 %v532
      %v568 = vpop.f32.mrb[0].mxu0
      %v569 = vadd.f32 0.0, %v568
      %v570 = vpop.f32.mrb[0].mxu0
      %v571 = vpop.f32.mrb[0].mxu0
      %v572 = vpop.f32.mrb[0].mxu0
      %573 = vdwg.mxu0
      %v574 = vpack.c.bf16 %v569, %v569
      %v575 = vlaneseq
      %v576 = vshrl.u32 %v575, 7
      %v577 = vlaneseq
      %v578 = vand.u32 %v577, 127
      %vm579 = vcmp.le.s32.totalorder %v578, %v576
      %v580 = vsel %vm579, 0.0, -1e+09
      %v581 = vld [vmem:[%s5] sm:$0xff]
      %v582 = vld [vmem:[%s5 + $0x8] sm:$0xff]
      %v583 = vld [vmem:[%s5 + $0x10] sm:$0xff]
      %v584 = vld [vmem:[%s5 + $0x18] sm:$0xff]
      %586 = vrot.lane.b32.xlu0 %v574, 96
      %v587 = vpop.permute.xlu0 %586
      %vm588 = vcmask 64512
      %v590 = vsel %vm588, %v574, 0
      %v593 = vsel %vm588, %v587, 0
      %595 = vmatprep.subr.bf16.mxu0 0
      %596 = vmatpush1.bf16.xpose.msra.mxu0 %v593
      %597 = vmatprep.subr.bf16.mxu0 0
      %598 = vmatpush1.bf16.xpose.msra.mxu0 0
      %599 = vmatprep.subr.bf16.mxu0 0
      %600 = vmatpush1.bf16.xpose.msra.mxu0 0
      %601 = vmatprep.subr.bf16.mxu0 0
      %602 = vmatpush1.bf16.xpose.msra.mxu0 0
      %603 = vmatprep.subr.bf16.mxu0 0
      %604 = vmatpush1.bf16.xpose.msra.mxu0 0
      %605 = vmatprep.subr.bf16.mxu0 0
      %606 = vmatpush1.bf16.xpose.msra.mxu0 0
      %607 = vmatprep.subr.bf16.mxu0 0
      %608 = vmatpush1.bf16.xpose.msra.mxu0 0
      %609 = vmatprep.subr.bf16.mxu0 0
      %610 = vmatpush1.bf16.xpose.msra.mxu0 0
      %611 = vmatprep.subr.bf16.mxu0 0
      %612 = vmatpush1.bf16.xpose.msra.mxu0 0
      %613 = vmatprep.subr.bf16.mxu0 0
      %614 = vmatpush1.bf16.xpose.msra.mxu0 0
      %615 = vmatprep.subr.bf16.mxu0 0
      %616 = vmatpush1.bf16.xpose.msra.mxu0 0
      %617 = vmatprep.subr.bf16.mxu0 0
      %618 = vmatpush1.bf16.xpose.msra.mxu0 0
      %619 = vmatprep.subr.bf16.mxu0 0
      %620 = vmatpush1.bf16.xpose.msra.mxu0 0
      %621 = vmatprep.subr.bf16.mxu0 0
      %622 = vmatpush1.bf16.xpose.msra.mxu0 0
      %623 = vmatprep.subr.bf16.mxu0 0
      %624 = vmatpush1.bf16.xpose.msra.mxu0 0
      %625 = vmatprep.subr.bf16.mxu0 0
      %626 = vmatpush1.bf16.xpose.msra.mxu0 0
      %627 = vmatprep.mubr.bf16.mxu0 0
      %628 = vmatmul.mubr.bf16.gmra.mrb[0].mxu0 %v590
      %v629 = vpop.f32.mrb[0].mxu0
      %v630 = vadd.f32 %v581, %v629
      %v631 = vpop.f32.mrb[0].mxu0
      %v632 = vpop.f32.mrb[0].mxu0
      %v633 = vpop.f32.mrb[0].mxu0
      %634 = vdwg.mxu0
      %v635 = vadd.f32 %v630, %v580
      %v636 = vsel %vm588, %v635, -inf
      %637 = vmax.xlane.f32.xlu0 %v636
      %v638 = vpop.xlane.xlu0 %637
      %v639 = vsub.f32 %v635, %v638
      %v640 = vmul.f32 %v639, 1.442695
      %v641 = vpow.pop %v640
      %v642 = vsel %vm588, %v641, 0.0
      %643 = vadd.xlane.f32.xlu0 %v642
      %v644 = vpop.xlane.xlu0 %643
      %v645 = vrcp.pop %v644
      %v646 = vmul.f32 %v641, %v645
      %v647 = vpack.c.bf16 %v646, %v646
      %648 = vrot.lane.b32.xlu0 %v574, 64
      %v649 = vpop.permute.xlu0 %648
      %v651 = vsel %vm588, %v647, 0
      %vm653 = vcmask 1043456
      %v655 = vsel %vm653, %v649, 0
      %657 = vmatprep.subr.bf16.mxu0 0
      %658 = vmatpush1.bf16.msra.mxu0 %v655
      %659 = vmatprep.subr.bf16.mxu0 0
      %660 = vmatpush1.bf16.msra.mxu0 0
      %661 = vmatprep.subr.bf16.mxu0 0
      %662 = vmatpush1.bf16.msra.mxu0 0
      %663 = vmatprep.subr.bf16.mxu0 0
      %664 = vmatpush1.bf16.msra.mxu0 0
      %665 = vmatprep.subr.bf16.mxu0 0
      %666 = vmatpush1.bf16.msra.mxu0 0
      %667 = vmatprep.subr.bf16.mxu0 0
      %668 = vmatpush1.bf16.msra.mxu0 0
      %669 = vmatprep.subr.bf16.mxu0 0
      %670 = vmatpush1.bf16.msra.mxu0 0
      %671 = vmatprep.subr.bf16.mxu0 0
      %672 = vmatpush1.bf16.msra.mxu0 0
      %673 = vmatprep.subr.bf16.mxu0 0
      %674 = vmatpush1.bf16.msra.mxu0 0
      %675 = vmatprep.subr.bf16.mxu0 0
      %676 = vmatpush1.bf16.msra.mxu0 0
      %677 = vmatprep.subr.bf16.mxu0 0
      %678 = vmatpush1.bf16.msra.mxu0 0
      %679 = vmatprep.subr.bf16.mxu0 0
      %680 = vmatpush1.bf16.msra.mxu0 0
      %681 = vmatprep.subr.bf16.mxu0 0
      %682 = vmatpush1.bf16.msra.mxu0 0
      %683 = vmatprep.subr.bf16.mxu0 0
      %684 = vmatpush1.bf16.msra.mxu0 0
      %685 = vmatprep.subr.bf16.mxu0 0
      %686 = vmatpush1.bf16.msra.mxu0 0
      %687 = vmatprep.subr.bf16.mxu0 0
      %688 = vmatpush1.bf16.msra.mxu0 0
      %689 = vmatprep.mubr.bf16.mxu0 0
      %690 = vmatmul.mubr.bf16.gmra.mrb[0].mxu0 %v651
      %v691 = vpop.f32.mrb[0].mxu0
      %v692 = vadd.f32 0.0, %v691
      %v693 = vpop.f32.mrb[0].mxu0
      %v694 = vpop.f32.mrb[0].mxu0
      %v695 = vpop.f32.mrb[0].mxu0
      %696 = vdwg.mxu0
      %697 = vrot.lane.b32.xlu0 %v574, 120
      %v698 = vpop.permute.xlu0 %697
      %699 = vrot.lane.b32.xlu0 %v574, 88
      %v700 = vpop.permute.xlu0 %699
      %v702 = vsel %vm588, %v698, 0
      %v705 = vsel %vm588, %v700, 0
      %707 = vmatprep.subr.bf16.mxu0 0
      %708 = vmatpush1.bf16.xpose.msra.mxu0 %v705
      %709 = vmatprep.subr.bf16.mxu0 0
      %710 = vmatpush1.bf16.xpose.msra.mxu0 0
      %711 = vmatprep.subr.bf16.mxu0 0
      %712 = vmatpush1.bf16.xpose.msra.mxu0 0
      %713 = vmatprep.subr.bf16.mxu0 0
      %714 = vmatpush1.bf16.xpose.msra.mxu0 0
      %715 = vmatprep.subr.bf16.mxu0 0
      %716 = vmatpush1.bf16.xpose.msra.mxu0 0
      %717 = vmatprep.subr.bf16.mxu0 0
      %718 = vmatpush1.bf16.xpose.msra.mxu0 0
      %719 = vmatprep.subr.bf16.mxu0 0
      %720 = vmatpush1.bf16.xpose.msra.mxu0 0
      %721 = vmatprep.subr.bf16.mxu0 0
      %722 = vmatpush1.bf16.xpose.msra.mxu0 0
      %723 = vmatprep.subr.bf16.mxu0 0
      %724 = vmatpush1.bf16.xpose.msra.mxu0 0
      %725 = vmatprep.subr.bf16.mxu0 0
      %726 = vmatpush1.bf16.xpose.msra.mxu0 0
      %727 = vmatprep.subr.bf16.mxu0 0
      %728 = vmatpush1.bf16.xpose.msra.mxu0 0
      %729 = vmatprep.subr.bf16.mxu0 0
      %730 = vmatpush1.bf16.xpose.msra.mxu0 0
      %731 = vmatprep.subr.bf16.mxu0 0
      %732 = vmatpush1.bf16.xpose.msra.mxu0 0
      %733 = vmatprep.subr.bf16.mxu0 0
      %734 = vmatpush1.bf16.xpose.msra.mxu0 0
      %735 = vmatprep.subr.bf16.mxu0 0
      %736 = vmatpush1.bf16.xpose.msra.mxu0 0
      %737 = vmatprep.subr.bf16.mxu0 0
      %738 = vmatpush1.bf16.xpose.msra.mxu0 0
      %739 = vmatprep.mubr.bf16.mxu0 0
      %740 = vmatmul.mubr.bf16.gmra.mrb[0].mxu0 %v702
      %v741 = vpop.f32.mrb[0].mxu0
      %v742 = vadd.f32 %v582, %v741
      %v743 = vpop.f32.mrb[0].mxu0
      %v744 = vpop.f32.mrb[0].mxu0
      %v745 = vpop.f32.mrb[0].mxu0
      %746 = vdwg.mxu0
      %v747 = vadd.f32 %v742, %v580
      %v748 = vsel %vm588, %v747, -inf
      %749 = vmax.xlane.f32.xlu0 %v748
      %v750 = vpop.xlane.xlu0 %749
      %v751 = vsub.f32 %v747, %v750
      %v752 = vmul.f32 %v751, 1.442695
      %v753 = vpow.pop %v752
      %v754 = vsel %vm588, %v753, 0.0
      %755 = vadd.xlane.f32.xlu0 %v754
      %v756 = vpop.xlane.xlu0 %755
      %v757 = vrcp.pop %v756
      %v758 = vmul.f32 %v753, %v757
      %v759 = vpack.c.bf16 %v758, %v758
      %760 = vrot.lane.b32.xlu0 %v574, 56
      %v761 = vpop.permute.xlu0 %760
      %v763 = vsel %vm588, %v759, 0
      %v766 = vsel %vm653, %v761, 0
      %768 = vmatprep.subr.bf16.mxu0 0
      %769 = vmatpush1.bf16.msra.mxu0 %v766
      %770 = vmatprep.subr.bf16.mxu0 0
      %771 = vmatpush1.bf16.msra.mxu0 0
      %772 = vmatprep.subr.bf16.mxu0 0
      %773 = vmatpush1.bf16.msra.mxu0 0
      %774 = vmatprep.subr.bf16.mxu0 0
      %775 = vmatpush1.bf16.msra.mxu0 0
      %776 = vmatprep.subr.bf16.mxu0 0
      %777 = vmatpush1.bf16.msra.mxu0 0
      %778 = vmatprep.subr.bf16.mxu0 0
      %779 = vmatpush1.bf16.msra.mxu0 0
      %780 = vmatprep.subr.bf16.mxu0 0
      %781 = vmatpush1.bf16.msra.mxu0 0
      %782 = vmatprep.subr.bf16.mxu0 0
      %783 = vmatpush1.bf16.msra.mxu0 0
      %784 = vmatprep.subr.bf16.mxu0 0
      %785 = vmatpush1.bf16.msra.mxu0 0
      %786 = vmatprep.subr.bf16.mxu0 0
      %787 = vmatpush1.bf16.msra.mxu0 0
      %788 = vmatprep.subr.bf16.mxu0 0
      %789 = vmatpush1.bf16.msra.mxu0 0
      %790 = vmatprep.subr.bf16.mxu0 0
      %791 = vmatpush1.bf16.msra.mxu0 0
      %792 = vmatprep.subr.bf16.mxu0 0
      %793 = vmatpush1.bf16.msra.mxu0 0
      %794 = vmatprep.subr.bf16.mxu0 0
      %795 = vmatpush1.bf16.msra.mxu0 0
      %796 = vmatprep.subr.bf16.mxu0 0
      %797 = vmatpush1.bf16.msra.mxu0 0
      %798 = vmatprep.subr.bf16.mxu0 0
      %799 = vmatpush1.bf16.msra.mxu0 0
      %800 = vmatprep.mubr.bf16.mxu0 0
      %801 = vmatmul.mubr.bf16.gmra.mrb[0].mxu0 %v763
      %v802 = vpop.f32.mrb[0].mxu0
      %v803 = vadd.f32 0.0, %v802
      %v804 = vpop.f32.mrb[0].mxu0
      %v805 = vpop.f32.mrb[0].mxu0
      %v806 = vpop.f32.mrb[0].mxu0
      %807 = vdwg.mxu0
      %808 = vrot.lane.b32.xlu0 %v574, 112
      %v809 = vpop.permute.xlu0 %808
      %810 = vrot.lane.b32.xlu0 %v574, 80
      %v811 = vpop.permute.xlu0 %810
      %v813 = vsel %vm588, %v809, 0
      %v816 = vsel %vm588, %v811, 0
      %818 = vmatprep.subr.bf16.mxu0 0
      %819 = vmatpush1.bf16.xpose.msra.mxu0 %v816
      %820 = vmatprep.subr.bf16.mxu0 0
      %821 = vmatpush1.bf16.xpose.msra.mxu0 0
      %822 = vmatprep.subr.bf16.mxu0 0
      %823 = vmatpush1.bf16.xpose.msra.mxu0 0
      %824 = vmatprep.subr.bf16.mxu0 0
      %825 = vmatpush1.bf16.xpose.msra.mxu0 0
      %826 = vmatprep.subr.bf16.mxu0 0
      %827 = vmatpush1.bf16.xpose.msra.mxu0 0
      %828 = vmatprep.subr.bf16.mxu0 0
      %829 = vmatpush1.bf16.xpose.msra.mxu0 0
      %830 = vmatprep.subr.bf16.mxu0 0
      %831 = vmatpush1.bf16.xpose.msra.mxu0 0
      %832 = vmatprep.subr.bf16.mxu0 0
      %833 = vmatpush1.bf16.xpose.msra.mxu0 0
      %834 = vmatprep.subr.bf16.mxu0 0
      %835 = vmatpush1.bf16.xpose.msra.mxu0 0
      %836 = vmatprep.subr.bf16.mxu0 0
      %837 = vmatpush1.bf16.xpose.msra.mxu0 0
      %838 = vmatprep.subr.bf16.mxu0 0
      %839 = vmatpush1.bf16.xpose.msra.mxu0 0
      %840 = vmatprep.subr.bf16.mxu0 0
      %841 = vmatpush1.bf16.xpose.msra.mxu0 0
      %842 = vmatprep.subr.bf16.mxu0 0
      %843 = vmatpush1.bf16.xpose.msra.mxu0 0
      %844 = vmatprep.subr.bf16.mxu0 0
      %845 = vmatpush1.bf16.xpose.msra.mxu0 0
      %846 = vmatprep.subr.bf16.mxu0 0
      %847 = vmatpush1.bf16.xpose.msra.mxu0 0
      %848 = vmatprep.subr.bf16.mxu0 0
      %849 = vmatpush1.bf16.xpose.msra.mxu0 0
      %850 = vmatprep.mubr.bf16.mxu0 0
      %851 = vmatmul.mubr.bf16.gmra.mrb[0].mxu0 %v813
      %v852 = vpop.f32.mrb[0].mxu0
      %v853 = vadd.f32 %v583, %v852
      %v854 = vpop.f32.mrb[0].mxu0
      %v855 = vpop.f32.mrb[0].mxu0
      %v856 = vpop.f32.mrb[0].mxu0
      %857 = vdwg.mxu0
      %v858 = vadd.f32 %v853, %v580
      %v859 = vsel %vm588, %v858, -inf
      %860 = vmax.xlane.f32.xlu0 %v859
      %v861 = vpop.xlane.xlu0 %860
      %v862 = vsub.f32 %v858, %v861
      %v863 = vmul.f32 %v862, 1.442695
      %v864 = vpow.pop %v863
      %v865 = vsel %vm588, %v864, 0.0
      %866 = vadd.xlane.f32.xlu0 %v865
      %v867 = vpop.xlane.xlu0 %866
      %v868 = vrcp.pop %v867
      %v869 = vmul.f32 %v864, %v868
      %v870 = vpack.c.bf16 %v869, %v869
      %871 = vrot.lane.b32.xlu0 %v574, 48
      %v872 = vpop.permute.xlu0 %871
      %v874 = vsel %vm588, %v870, 0
      %v877 = vsel %vm653, %v872, 0
      %879 = vmatprep.subr.bf16.mxu0 0
      %880 = vmatpush1.bf16.msra.mxu0 %v877
      %881 = vmatprep.subr.bf16.mxu0 0
      %882 = vmatpush1.bf16.msra.mxu0 0
      %883 = vmatprep.subr.bf16.mxu0 0
      %884 = vmatpush1.bf16.msra.mxu0 0
      %885 = vmatprep.subr.bf16.mxu0 0
      %886 = vmatpush1.bf16.msra.mxu0 0
      %887 = vmatprep.subr.bf16.mxu0 0
      %888 = vmatpush1.bf16.msra.mxu0 0
      %889 = vmatprep.subr.bf16.mxu0 0
      %890 = vmatpush1.bf16.msra.mxu0 0
      %891 = vmatprep.subr.bf16.mxu0 0
      %892 = vmatpush1.bf16.msra.mxu0 0
      %893 = vmatprep.subr.bf16.mxu0 0
      %894 = vmatpush1.bf16.msra.mxu0 0
      %895 = vmatprep.subr.bf16.mxu0 0
      %896 = vmatpush1.bf16.msra.mxu0 0
      %897 = vmatprep.subr.bf16.mxu0 0
      %898 = vmatpush1.bf16.msra.mxu0 0
      %899 = vmatprep.subr.bf16.mxu0 0
      %900 = vmatpush1.bf16.msra.mxu0 0
      %901 = vmatprep.subr.bf16.mxu0 0
      %902 = vmatpush1.bf16.msra.mxu0 0
      %903 = vmatprep.subr.bf16.mxu0 0
      %904 = vmatpush1.bf16.msra.mxu0 0
      %905 = vmatprep.subr.bf16.mxu0 0
      %906 = vmatpush1.bf16.msra.mxu0 0
      %907 = vmatprep.subr.bf16.mxu0 0
      %908 = vmatpush1.bf16.msra.mxu0 0
      %909 = vmatprep.subr.bf16.mxu0 0
      %910 = vmatpush1.bf16.msra.mxu0 0
      %911 = vmatprep.mubr.bf16.mxu0 0
      %912 = vmatmul.mubr.bf16.gmra.mrb[0].mxu0 %v874
      %v913 = vpop.f32.mrb[0].mxu0
      %v914 = vadd.f32 0.0, %v913
      %v915 = vpop.f32.mrb[0].mxu0
      %v916 = vpop.f32.mrb[0].mxu0
      %v917 = vpop.f32.mrb[0].mxu0
      %918 = vdwg.mxu0
      %919 = vrot.lane.b32.xlu0 %v574, 104
      %v920 = vpop.permute.xlu0 %919
      %921 = vrot.lane.b32.xlu0 %v574, 72
      %v922 = vpop.permute.xlu0 %921
      %v924 = vsel %vm588, %v920, 0
      %v927 = vsel %vm588, %v922, 0
      %929 = vmatprep.subr.bf16.mxu0 0
      %930 = vmatpush1.bf16.xpose.msra.mxu0 %v927
      %931 = vmatprep.subr.bf16.mxu0 0
      %932 = vmatpush1.bf16.xpose.msra.mxu0 0
      %933 = vmatprep.subr.bf16.mxu0 0
      %934 = vmatpush1.bf16.xpose.msra.mxu0 0
      %935 = vmatprep.subr.bf16.mxu0 0
      %936 = vmatpush1.bf16.xpose.msra.mxu0 0
      %937 = vmatprep.subr.bf16.mxu0 0
      %938 = vmatpush1.bf16.xpose.msra.mxu0 0
      %939 = vmatprep.subr.bf16.mxu0 0
      %940 = vmatpush1.bf16.xpose.msra.mxu0 0
      %941 = vmatprep.subr.bf16.mxu0 0
      %942 = vmatpush1.bf16.xpose.msra.mxu0 0
      %943 = vmatprep.subr.bf16.mxu0 0
      %944 = vmatpush1.bf16.xpose.msra.mxu0 0
      %945 = vmatprep.subr.bf16.mxu0 0
      %946 = vmatpush1.bf16.xpose.msra.mxu0 0
      %947 = vmatprep.subr.bf16.mxu0 0
      %948 = vmatpush1.bf16.xpose.msra.mxu0 0
      %949 = vmatprep.subr.bf16.mxu0 0
      %950 = vmatpush1.bf16.xpose.msra.mxu0 0
      %951 = vmatprep.subr.bf16.mxu0 0
      %952 = vmatpush1.bf16.xpose.msra.mxu0 0
      %953 = vmatprep.subr.bf16.mxu0 0
      %954 = vmatpush1.bf16.xpose.msra.mxu0 0
      %955 = vmatprep.subr.bf16.mxu0 0
      %956 = vmatpush1.bf16.xpose.msra.mxu0 0
      %957 = vmatprep.subr.bf16.mxu0 0
      %958 = vmatpush1.bf16.xpose.msra.mxu0 0
      %959 = vmatprep.subr.bf16.mxu0 0
      %960 = vmatpush1.bf16.xpose.msra.mxu0 0
      %961 = vmatprep.mubr.bf16.mxu0 0
      %962 = vmatmul.mubr.bf16.gmra.mrb[0].mxu0 %v924
      %v963 = vpop.f32.mrb[0].mxu0
      %v964 = vadd.f32 %v584, %v963
      %v965 = vpop.f32.mrb[0].mxu0
      %v966 = vpop.f32.mrb[0].mxu0
      %v967 = vpop.f32.mrb[0].mxu0
      %968 = vdwg.mxu0
      %v969 = vadd.f32 %v964, %v580
      %v970 = vsel %vm588, %v969, -inf
      %971 = vmax.xlane.f32.xlu0 %v970
      %v972 = vpop.xlane.xlu0 %971
      %v973 = vsub.f32 %v969, %v972
      %v974 = vmul.f32 %v973, 1.442695
      %v975 = vpow.pop %v974
      %v976 = vsel %vm588, %v975, 0.0
      %977 = vadd.xlane.f32.xlu0 %v976
      %v978 = vpop.xlane.xlu0 %977
      %v979 = vrcp.pop %v978
      %v980 = vmul.f32 %v975, %v979
      %v981 = vpack.c.bf16 %v980, %v980
      %982 = vrot.lane.b32.xlu0 %v574, 40
      %v983 = vpop.permute.xlu0 %982
      %v985 = vsel %vm588, %v981, 0
      %v988 = vsel %vm653, %v983, 0
      %990 = vmatprep.subr.bf16.mxu0 0
      %991 = vmatpush1.bf16.msra.mxu0 %v988
      %992 = vmatprep.subr.bf16.mxu0 0
      %993 = vmatpush1.bf16.msra.mxu0 0
      %994 = vmatprep.subr.bf16.mxu0 0
      %995 = vmatpush1.bf16.msra.mxu0 0
      %996 = vmatprep.subr.bf16.mxu0 0
      %997 = vmatpush1.bf16.msra.mxu0 0
      %998 = vmatprep.subr.bf16.mxu0 0
      %999 = vmatpush1.bf16.msra.mxu0 0
      %1000 = vmatprep.subr.bf16.mxu0 0
      %1001 = vmatpush1.bf16.msra.mxu0 0
      %1002 = vmatprep.subr.bf16.mxu0 0
      %1003 = vmatpush1.bf16.msra.mxu0 0
      %1004 = vmatprep.subr.bf16.mxu0 0
      %1005 = vmatpush1.bf16.msra.mxu0 0
      %1006 = vmatprep.subr.bf16.mxu0 0
      %1007 = vmatpush1.bf16.msra.mxu0 0
      %1008 = vmatprep.subr.bf16.mxu0 0
      %1009 = vmatpush1.bf16.msra.mxu0 0
      %1010 = vmatprep.subr.bf16.mxu0 0
      %1011 = vmatpush1.bf16.msra.mxu0 0
      %1012 = vmatprep.subr.bf16.mxu0 0
      %1013 = vmatpush1.bf16.msra.mxu0 0
      %1014 = vmatprep.subr.bf16.mxu0 0
      %1015 = vmatpush1.bf16.msra.mxu0 0
      %1016 = vmatprep.subr.bf16.mxu0 0
      %1017 = vmatpush1.bf16.msra.mxu0 0
      %1018 = vmatprep.subr.bf16.mxu0 0
      %1019 = vmatpush1.bf16.msra.mxu0 0
      %1020 = vmatprep.subr.bf16.mxu0 0
      %1021 = vmatpush1.bf16.msra.mxu0 0
      %1022 = vmatprep.mubr.bf16.mxu0 0
      %1023 = vmatmul.mubr.bf16.gmra.mrb[0].mxu0 %v985
      %v1024 = vpop.f32.mrb[0].mxu0
      %v1025 = vadd.f32 0.0, %v1024
      %v1026 = vpop.f32.mrb[0].mxu0
      %v1027 = vpop.f32.mrb[0].mxu0
      %v1028 = vpop.f32.mrb[0].mxu0
      %1029 = vdwg.mxu0
      %1031 = vrot.lane.b32.xlu0 %v803, 8
      %v1032 = vpop.permute.xlu0 %1031
      %1035 = vrot.lane.b32.xlu0 %v914, 16
      %v1036 = vpop.permute.xlu0 %1035
      %1039 = vrot.lane.b32.xlu0 %v1025, 24
      %v1040 = vpop.permute.xlu0 %1039
      %v1042 = vsel %vm588, %v692, %v1032
      %vm1043 = vcmask 130048
      %v1044 = vsel %vm1043, %v1042, %v1036
      %vm1045 = vcmask 195584
      %v1046 = vsel %vm1045, %v1044, %v1040
      %v1047 = vpack.c.bf16 %v1046, %v1046
      %v1048 = vld [vmem:[%s4] sm:$0xf]
      %v1049 = vld [vmem:[%s4 + $0x4] sm:$0xf]
      %v1050 = vld [vmem:[%s4 + $0x8] sm:$0xf]
      %v1051 = vld [vmem:[%s4 + $0xc] sm:$0xf]
      %v1056 = vunpack.c.l.b16 %v1048
      %v1057 = vunpack.c.l.b16 %v1049
      %v1058 = vunpack.c.l.b16 %v1050
      %v1059 = vunpack.c.l.b16 %v1051
      %v1060 = vpack.c.b16 %v1057, %v1056
      %v1061 = vpack.c.b16 %v1059, %v1058
      %v1065 = vsel %vm498, %v1047, 0
      %1067 = vmatprep.subr.bf16.mxu0 0
      %1068 = vmatpush1.bf16.msra.mxu0 %v1060
      %1069 = vmatprep.subr.bf16.mxu0 0
      %1070 = vmatpush1.bf16.msra.mxu0 %v1061
      %1071 = vmatprep.subr.bf16.mxu0 0
      %1072 = vmatpush1.bf16.msra.mxu0 0
      %1073 = vmatprep.subr.bf16.mxu0 0
      %1074 = vmatpush1.bf16.msra.mxu0 0
      %1075 = vmatprep.subr.bf16.mxu0 0
      %1076 = vmatpush1.bf16.msra.mxu0 0
      %1077 = vmatprep.subr.bf16.mxu0 0
      %1078 = vmatpush1.bf16.msra.mxu0 0
      %1079 = vmatprep.subr.bf16.mxu0 0
      %1080 = vmatpush1.bf16.msra.mxu0 0
      %1081 = vmatprep.subr.bf16.mxu0 0
      %1082 = vmatpush1.bf16.msra.mxu0 0
      %1083 = vmatprep.subr.bf16.mxu0 0
      %1084 = vmatpush1.bf16.msra.mxu0 0
      %1085 = vmatprep.subr.bf16.mxu0 0
      %1086 = vmatpush1.bf16.msra.mxu0 0
      %1087 = vmatprep.subr.bf16.mxu0 0
      %1088 = vmatpush1.bf16.msra.mxu0 0
      %1089 = vmatprep.subr.bf16.mxu0 0
      %1090 = vmatpush1.bf16.msra.mxu0 0
      %1091 = vmatprep.subr.bf16.mxu0 0
      %1092 = vmatpush1.bf16.msra.mxu0 0
      %1093 = vmatprep.subr.bf16.mxu0 0
      %1094 = vmatpush1.bf16.msra.mxu0 0
      %1095 = vmatprep.subr.bf16.mxu0 0
      %1096 = vmatpush1.bf16.msra.mxu0 0
      %1097 = vmatprep.subr.bf16.mxu0 0
      %1098 = vmatpush1.bf16.msra.mxu0 0
      %1099 = vmatprep.mubr.bf16.mxu0 0
      %1100 = vmatmul.mubr.bf16.gmra.mrb[0].mxu0 %v1065
      %v1101 = vpop.f32.mrb[0].mxu0
      %v1102 = vadd.f32 0.0, %v1101
      %v1103 = vpop.f32.mrb[0].mxu0
      %v1104 = vpop.f32.mrb[0].mxu0
      %v1105 = vpop.f32.mrb[0].mxu0
      %1106 = vdwg.mxu0
      %v1107 = vadd.f32 %v495, %v1102
      %v1108 = vld [vmem:[%s6] sm:$0x1]
      %v1109 = vmul.f32 %v1107, %v1107
      %v1110 = vsel %vm498, %v1109, 0.0
      %1111 = vadd.xlane.f32.xlu0 %v1110
      %v1112 = vpop.xlane.xlu0 %1111
      %v1113 = vmul.f32 %v1112, %v502
      %v1114 = vadd.f32 %v1113, 1e-06
      %v1115 = vrsqrt.pop %v1114
      %v1116 = vmul.f32 %v1107, %v1115
      %v1118 = vlaneseq
      %v1119 = vshrl.u32 %v1118, 7
      %v1120 = vsub.s32 0, %v1119
      %v1121 = vrot.slane %v1108, %v1120
      %v1123 = vmul.f32 %v1116, %v1121
      %v1124 = vpack.c.bf16 %v1123, %v1123
      %v1125 = vld [vmem:[%s7] sm:$0xf]
      %v1126 = vld [vmem:[%s7 + $0x4] sm:$0xf]
      %v1127 = vld [vmem:[%s7 + $0x8] sm:$0xf]
      %v1128 = vld [vmem:[%s7 + $0xc] sm:$0xf]
      %v1133 = vunpack.c.l.b16 %v1125
      %v1134 = vunpack.c.l.b16 %v1126
      %v1135 = vunpack.c.l.b16 %v1127
      %v1136 = vunpack.c.l.b16 %v1128
      %v1137 = vpack.c.b16 %v1134, %v1133
      %v1138 = vpack.c.b16 %v1136, %v1135
      %v1142 = vsel %vm498, %v1124, 0
      %1144 = vmatprep.subr.bf16.mxu0 0
      %1145 = vmatpush1.bf16.msra.mxu0 %v1137
      %1146 = vmatprep.subr.bf16.mxu0 0
      %1147 = vmatpush1.bf16.msra.mxu0 %v1138
      %1148 = vmatprep.subr.bf16.mxu0 0
      %1149 = vmatpush1.bf16.msra.mxu0 0
      %1150 = vmatprep.subr.bf16.mxu0 0
      %1151 = vmatpush1.bf16.msra.mxu0 0
      %1152 = vmatprep.subr.bf16.mxu0 0
      %1153 = vmatpush1.bf16.msra.mxu0 0
      %1154 = vmatprep.subr.bf16.mxu0 0
      %1155 = vmatpush1.bf16.msra.mxu0 0
      %1156 = vmatprep.subr.bf16.mxu0 0
      %1157 = vmatpush1.bf16.msra.mxu0 0
      %1158 = vmatprep.subr.bf16.mxu0 0
      %1159 = vmatpush1.bf16.msra.mxu0 0
      %1160 = vmatprep.subr.bf16.mxu0 0
      %1161 = vmatpush1.bf16.msra.mxu0 0
      %1162 = vmatprep.subr.bf16.mxu0 0
      %1163 = vmatpush1.bf16.msra.mxu0 0
      %1164 = vmatprep.subr.bf16.mxu0 0
      %1165 = vmatpush1.bf16.msra.mxu0 0
      %1166 = vmatprep.subr.bf16.mxu0 0
      %1167 = vmatpush1.bf16.msra.mxu0 0
      %1168 = vmatprep.subr.bf16.mxu0 0
      %1169 = vmatpush1.bf16.msra.mxu0 0
      %1170 = vmatprep.subr.bf16.mxu0 0
      %1171 = vmatpush1.bf16.msra.mxu0 0
      %1172 = vmatprep.subr.bf16.mxu0 0
      %1173 = vmatpush1.bf16.msra.mxu0 0
      %1174 = vmatprep.subr.bf16.mxu0 0
      %1175 = vmatpush1.bf16.msra.mxu0 0
      %1176 = vmatprep.mubr.bf16.mxu0 0
      %1177 = vmatmul.mubr.bf16.gmra.mrb[0].mxu0 %v1142
      %v1178 = vpop.f32.mrb[0].mxu0
      %v1179 = vadd.f32 0.0, %v1178
      %v1180 = vpop.f32.mrb[0].mxu0
      %v1181 = vpop.f32.mrb[0].mxu0
      %v1182 = vpop.f32.mrb[0].mxu0
      %1183 = vdwg.mxu0
      %v1184 = vpack.c.bf16 %v1179, %v1179
      %v1185 = vld [vmem:[%s486] sm:$0xff]
      %v1186 = vpack.c.bf16 %v1185, %v1185
      %v1187 = vld [vmem:[%s8] sm:$0xf]
      %v1188 = vld [vmem:[%s8 + $0x4] sm:$0xf]
      %v1189 = vld [vmem:[%s8 + $0x8] sm:$0xf]
      %v1190 = vld [vmem:[%s8 + $0xc] sm:$0xf]
      %v1195 = vunpack.c.l.b16 %v1187
      %v1196 = vunpack.c.l.b16 %v1188
      %v1197 = vunpack.c.l.b16 %v1189
      %v1198 = vunpack.c.l.b16 %v1190
      %v1199 = vpack.c.b16 %v1196, %v1195
      %v1200 = vpack.c.b16 %v1198, %v1197
      %v1204 = vsel %vm498, %v1186, 0
      %1206 = vmatprep.subr.bf16.mxu0 0
      %1207 = vmatpush1.bf16.msra.mxu0 %v1199
      %1208 = vmatprep.subr.bf16.mxu0 0
      %1209 = vmatpush1.bf16.msra.mxu0 %v1200
      %1210 = vmatprep.subr.bf16.mxu0 0
      %1211 = vmatpush1.bf16.msra.mxu0 0
      %1212 = vmatprep.subr.bf16.mxu0 0
      %1213 = vmatpush1.bf16.msra.mxu0 0
      %1214 = vmatprep.subr.bf16.mxu0 0
      %1215 = vmatpush1.bf16.msra.mxu0 0
      %1216 = vmatprep.subr.bf16.mxu0 0
      %1217 = vmatpush1.bf16.msra.mxu0 0
      %1218 = vmatprep.subr.bf16.mxu0 0
      %1219 = vmatpush1.bf16.msra.mxu0 0
      %1220 = vmatprep.subr.bf16.mxu0 0
      %1221 = vmatpush1.bf16.msra.mxu0 0
      %1222 = vmatprep.subr.bf16.mxu0 0
      %1223 = vmatpush1.bf16.msra.mxu0 0
      %1224 = vmatprep.subr.bf16.mxu0 0
      %1225 = vmatpush1.bf16.msra.mxu0 0
      %1226 = vmatprep.subr.bf16.mxu0 0
      %1227 = vmatpush1.bf16.msra.mxu0 0
      %1228 = vmatprep.subr.bf16.mxu0 0
      %1229 = vmatpush1.bf16.msra.mxu0 0
      %1230 = vmatprep.subr.bf16.mxu0 0
      %1231 = vmatpush1.bf16.msra.mxu0 0
      %1232 = vmatprep.subr.bf16.mxu0 0
      %1233 = vmatpush1.bf16.msra.mxu0 0
      %1234 = vmatprep.subr.bf16.mxu0 0
      %1235 = vmatpush1.bf16.msra.mxu0 0
      %1236 = vmatprep.subr.bf16.mxu0 0
      %1237 = vmatpush1.bf16.msra.mxu0 0
      %1238 = vmatprep.mubr.bf16.mxu0 0
      %1239 = vmatmul.mubr.bf16.gmra.mrb[0].mxu0 %v1204
      %v1240 = vpop.f32.mrb[0].mxu0
      %v1241 = vadd.f32 0.0, %v1240
      %v1242 = vpop.f32.mrb[0].mxu0
      %v1243 = vpop.f32.mrb[0].mxu0
      %v1244 = vpop.f32.mrb[0].mxu0
      %1245 = vdwg.mxu0
      %v1246 = vpack.c.bf16 %v1241, %v1241
      %v1247 = vld [vmem:[%s489] sm:$0x1]
      %v1248 = vsub.f32 1.0, %v1247
      %v1249 = vmul.f32 %v1248, -1e+09
      %v1251 = vlaneseq
      %v1252 = vshrl.u32 %v1251, 7
      %v1253 = vsub.s32 0, %v1252
      %v1254 = vrot.slane %v1249, %v1253
      %v1257 = vsel %vm588, %v1184, 0
      %v1260 = vsel %vm588, %v1246, 0
      %1262 = vmatprep.subr.bf16.mxu0 0
      %1263 = vmatpush1.bf16.xpose.msra.mxu0 %v1260
      %1264 = vmatprep.subr.bf16.mxu0 0
      %1265 = vmatpush1.bf16.xpose.msra.mxu0 0
      %1266 = vmatprep.subr.bf16.mxu0 0
      %1267 = vmatpush1.bf16.xpose.msra.mxu0 0
      %1268 = vmatprep.subr.bf16.mxu0 0
      %1269 = vmatpush1.bf16.xpose.msra.mxu0 0
      %1270 = vmatprep.subr.bf16.mxu0 0
      %1271 = vmatpush1.bf16.xpose.msra.mxu0 0
      %1272 = vmatprep.subr.bf16.mxu0 0
      %1273 = vmatpush1.bf16.xpose.msra.mxu0 0
      %1274 = vmatprep.subr.bf16.mxu0 0
      %1275 = vmatpush1.bf16.xpose.msra.mxu0 0
      %1276 = vmatprep.subr.bf16.mxu0 0
      %1277 = vmatpush1.bf16.xpose.msra.mxu0 0
      %1278 = vmatprep.subr.bf16.mxu0 0
      %1279 = vmatpush1.bf16.xpose.msra.mxu0 0
      %1280 = vmatprep.subr.bf16.mxu0 0
      %1281 = vmatpush1.bf16.xpose.msra.mxu0 0
      %1282 = vmatprep.subr.bf16.mxu0 0
      %1283 = vmatpush1.bf16.xpose.msra.mxu0 0
      %1284 = vmatprep.subr.bf16.mxu0 0
      %1285 = vmatpush1.bf16.xpose.msra.mxu0 0
      %1286 = vmatprep.subr.bf16.mxu0 0
      %1287 = vmatpush1.bf16.xpose.msra.mxu0 0
      %1288 = vmatprep.subr.bf16.mxu0 0
      %1289 = vmatpush1.bf16.xpose.msra.mxu0 0
      %1290 = vmatprep.subr.bf16.mxu0 0
      %1291 = vmatpush1.bf16.xpose.msra.mxu0 0
      %1292 = vmatprep.subr.bf16.mxu0 0
      %1293 = vmatpush1.bf16.xpose.msra.mxu0 0
      %1294 = vmatprep.mubr.bf16.mxu0 0
      %1295 = vmatmul.mubr.bf16.gmra.mrb[0].mxu0 %v1257
      %v1296 = vpop.f32.mrb[0].mxu0
      %v1297 = vadd.f32 %v1254, %v1296
      %v1298 = vpop.f32.mrb[0].mxu0
      %v1299 = vpop.f32.mrb[0].mxu0
      %v1300 = vpop.f32.mrb[0].mxu0
      %1301 = vdwg.mxu0
      %v1302 = vsel %vm588, %v1297, -inf
      %1303 = vmax.xlane.f32.xlu0 %v1302
      %v1304 = vpop.xlane.xlu0 %1303
      %v1305 = vsub.f32 %v1297, %v1304
      %v1306 = vmul.f32 %v1305, 1.442695
      %v1307 = vpow.pop %v1306
      %v1308 = vsel %vm588, %v1307, 0.0
      %1309 = vadd.xlane.f32.xlu0 %v1308
      %v1310 = vpop.xlane.xlu0 %1309
      %v1311 = vrcp.pop %v1310
      %v1312 = vmul.f32 %v1307, %v1311
      %v1313 = vpack.c.bf16 %v1312, %v1312
      %1315 = vrot.lane.b32.xlu0 %v1246, 96
      %v1316 = vpop.permute.xlu0 %1315
      %v1318 = vsel %vm588, %v1313, 0
      %v1321 = vsel %vm653, %v1316, 0
      %1323 = vmatprep.subr.bf16.mxu0 0
      %1324 = vmatpush1.bf16.msra.mxu0 %v1321
      %1325 = vmatprep.subr.bf16.mxu0 0
      %1326 = vmatpush1.bf16.msra.mxu0 0
      %1327 = vmatprep.subr.bf16.mxu0 0
      %1328 = vmatpush1.bf16.msra.mxu0 0
      %1329 = vmatprep.subr.bf16.mxu0 0
      %1330 = vmatpush1.bf16.msra.mxu0 0
      %1331 = vmatprep.subr.bf16.mxu0 0
      %1332 = vmatpush1.bf16.msra.mxu0 0
      %1333 = vmatprep.subr.bf16.mxu0 0
      %1334 = vmatpush1.bf16.msra.mxu0 0
      %1335 = vmatprep.subr.bf16.mxu0 0
      %1336 = vmatpush1.bf16.msra.mxu0 0
      %1337 = vmatprep.subr.bf16.mxu0 0
      %1338 = vmatpush1.bf16.msra.mxu0 0
      %1339 = vmatprep.subr.bf16.mxu0 0
      %1340 = vmatpush1.bf16.msra.mxu0 0
      %1341 = vmatprep.subr.bf16.mxu0 0
      %1342 = vmatpush1.bf16.msra.mxu0 0
      %1343 = vmatprep.subr.bf16.mxu0 0
      %1344 = vmatpush1.bf16.msra.mxu0 0
      %1345 = vmatprep.subr.bf16.mxu0 0
      %1346 = vmatpush1.bf16.msra.mxu0 0
      %1347 = vmatprep.subr.bf16.mxu0 0
      %1348 = vmatpush1.bf16.msra.mxu0 0
      %1349 = vmatprep.subr.bf16.mxu0 0
      %1350 = vmatpush1.bf16.msra.mxu0 0
      %1351 = vmatprep.subr.bf16.mxu0 0
      %1352 = vmatpush1.bf16.msra.mxu0 0
      %1353 = vmatprep.subr.bf16.mxu0 0
      %1354 = vmatpush1.bf16.msra.mxu0 0
      %1355 = vmatprep.mubr.bf16.mxu0 0
      %1356 = vmatmul.mubr.bf16.gmra.mrb[0].mxu0 %v1318
      %v1357 = vpop.f32.mrb[0].mxu0
      %v1358 = vadd.f32 0.0, %v1357
      %v1359 = vpop.f32.mrb[0].mxu0
      %v1360 = vpop.f32.mrb[0].mxu0
      %v1361 = vpop.f32.mrb[0].mxu0
      %1362 = vdwg.mxu0
      %1364 = vrot.lane.b32.xlu0 %v1184, 120
      %v1365 = vpop.permute.xlu0 %1364
      %1366 = vrot.lane.b32.xlu0 %v1246, 120
      %v1367 = vpop.permute.xlu0 %1366
      %v1369 = vsel %vm588, %v1365, 0
      %v1372 = vsel %vm588, %v1367, 0
      %1374 = vmatprep.subr.bf16.mxu0 0
      %1375 = vmatpush1.bf16.xpose.msra.mxu0 %v1372
      %1376 = vmatprep.subr.bf16.mxu0 0
      %1377 = vmatpush1.bf16.xpose.msra.mxu0 0
      %1378 = vmatprep.subr.bf16.mxu0 0
      %1379 = vmatpush1.bf16.xpose.msra.mxu0 0
      %1380 = vmatprep.subr.bf16.mxu0 0
      %1381 = vmatpush1.bf16.xpose.msra.mxu0 0
      %1382 = vmatprep.subr.bf16.mxu0 0
      %1383 = vmatpush1.bf16.xpose.msra.mxu0 0
      %1384 = vmatprep.subr.bf16.mxu0 0
      %1385 = vmatpush1.bf16.xpose.msra.mxu0 0
      %1386 = vmatprep.subr.bf16.mxu0 0
      %1387 = vmatpush1.bf16.xpose.msra.mxu0 0
      %1388 = vmatprep.subr.bf16.mxu0 0
      %1389 = vmatpush1.bf16.xpose.msra.mxu0 0
      %1390 = vmatprep.subr.bf16.mxu0 0
      %1391 = vmatpush1.bf16.xpose.msra.mxu0 0
      %1392 = vmatprep.subr.bf16.mxu0 0
      %1393 = vmatpush1.bf16.xpose.msra.mxu0 0
      %1394 = vmatprep.subr.bf16.mxu0 0
      %1395 = vmatpush1.bf16.xpose.msra.mxu0 0
      %1396 = vmatprep.subr.bf16.mxu0 0
      %1397 = vmatpush1.bf16.xpose.msra.mxu0 0
      %1398 = vmatprep.subr.bf16.mxu0 0
      %1399 = vmatpush1.bf16.xpose.msra.mxu0 0
      %1400 = vmatprep.subr.bf16.mxu0 0
      %1401 = vmatpush1.bf16.xpose.msra.mxu0 0
      %1402 = vmatprep.subr.bf16.mxu0 0
      %1403 = vmatpush1.bf16.xpose.msra.mxu0 0
      %1404 = vmatprep.subr.bf16.mxu0 0
      %1405 = vmatpush1.bf16.xpose.msra.mxu0 0
      %1406 = vmatprep.mubr.bf16.mxu0 0
      %1407 = vmatmul.mubr.bf16.gmra.mrb[0].mxu0 %v1369
      %v1408 = vpop.f32.mrb[0].mxu0
      %v1409 = vadd.f32 %v1254, %v1408
      %v1410 = vpop.f32.mrb[0].mxu0
      %v1411 = vpop.f32.mrb[0].mxu0
      %v1412 = vpop.f32.mrb[0].mxu0
      %1413 = vdwg.mxu0
      %v1414 = vsel %vm588, %v1409, -inf
      %1415 = vmax.xlane.f32.xlu0 %v1414
      %v1416 = vpop.xlane.xlu0 %1415
      %v1417 = vsub.f32 %v1409, %v1416
      %v1418 = vmul.f32 %v1417, 1.442695
      %v1419 = vpow.pop %v1418
      %v1420 = vsel %vm588, %v1419, 0.0
      %1421 = vadd.xlane.f32.xlu0 %v1420
      %v1422 = vpop.xlane.xlu0 %1421
      %v1423 = vrcp.pop %v1422
      %v1424 = vmul.f32 %v1419, %v1423
      %v1425 = vpack.c.bf16 %v1424, %v1424
      %1426 = vrot.lane.b32.xlu0 %v1246, 88
      %v1427 = vpop.permute.xlu0 %1426
      %v1429 = vsel %vm588, %v1425, 0
      %v1432 = vsel %vm653, %v1427, 0
      %1434 = vmatprep.subr.bf16.mxu0 0
      %1435 = vmatpush1.bf16.msra.mxu0 %v1432
      %1436 = vmatprep.subr.bf16.mxu0 0
      %1437 = vmatpush1.bf16.msra.mxu0 0
      %1438 = vmatprep.subr.bf16.mxu0 0
      %1439 = vmatpush1.bf16.msra.mxu0 0
      %1440 = vmatprep.subr.bf16.mxu0 0
      %1441 = vmatpush1.bf16.msra.mxu0 0
      %1442 = vmatprep.subr.bf16.mxu0 0
      %1443 = vmatpush1.bf16.msra.mxu0 0
      %1444 = vmatprep.subr.bf16.mxu0 0
      %1445 = vmatpush1.bf16.msra.mxu0 0
      %1446 = vmatprep.subr.bf16.mxu0 0
      %1447 = vmatpush1.bf16.msra.mxu0 0
      %1448 = vmatprep.subr.bf16.mxu0 0
      %1449 = vmatpush1.bf16.msra.mxu0 0
      %1450 = vmatprep.subr.bf16.mxu0 0
      %1451 = vmatpush1.bf16.msra.mxu0 0
      %1452 = vmatprep.subr.bf16.mxu0 0
      %1453 = vmatpush1.bf16.msra.mxu0 0
      %1454 = vmatprep.subr.bf16.mxu0 0
      %1455 = vmatpush1.bf16.msra.mxu0 0
      %1456 = vmatprep.subr.bf16.mxu0 0
      %1457 = vmatpush1.bf16.msra.mxu0 0
      %1458 = vmatprep.subr.bf16.mxu0 0
      %1459 = vmatpush1.bf16.msra.mxu0 0
      %1460 = vmatprep.subr.bf16.mxu0 0
      %1461 = vmatpush1.bf16.msra.mxu0 0
      %1462 = vmatprep.subr.bf16.mxu0 0
      %1463 = vmatpush1.bf16.msra.mxu0 0
      %1464 = vmatprep.subr.bf16.mxu0 0
      %1465 = vmatpush1.bf16.msra.mxu0 0
      %1466 = vmatprep.mubr.bf16.mxu0 0
      %1467 = vmatmul.mubr.bf16.gmra.mrb[0].mxu0 %v1429
      %v1468 = vpop.f32.mrb[0].mxu0
      %v1469 = vadd.f32 0.0, %v1468
      %v1470 = vpop.f32.mrb[0].mxu0
      %v1471 = vpop.f32.mrb[0].mxu0
      %v1472 = vpop.f32.mrb[0].mxu0
      %1473 = vdwg.mxu0
      %1474 = vrot.lane.b32.xlu0 %v1184, 112
      %v1475 = vpop.permute.xlu0 %1474
      %1476 = vrot.lane.b32.xlu0 %v1246, 112
      %v1477 = vpop.permute.xlu0 %1476
      %v1479 = vsel %vm588, %v1475, 0
      %v1482 = vsel %vm588, %v1477, 0
      %1484 = vmatprep.subr.bf16.mxu0 0
      %1485 = vmatpush1.bf16.xpose.msra.mxu0 %v1482
      %1486 = vmatprep.subr.bf16.mxu0 0
      %1487 = vmatpush1.bf16.xpose.msra.mxu0 0
      %1488 = vmatprep.subr.bf16.mxu0 0
      %1489 = vmatpush1.bf16.xpose.msra.mxu0 0
      %1490 = vmatprep.subr.bf16.mxu0 0
      %1491 = vmatpush1.bf16.xpose.msra.mxu0 0
      %1492 = vmatprep.subr.bf16.mxu0 0
      %1493 = vmatpush1.bf16.xpose.msra.mxu0 0
      %1494 = vmatprep.subr.bf16.mxu0 0
      %1495 = vmatpush1.bf16.xpose.msra.mxu0 0
      %1496 = vmatprep.subr.bf16.mxu0 0
      %1497 = vmatpush1.bf16.xpose.msra.mxu0 0
      %1498 = vmatprep.subr.bf16.mxu0 0
      %1499 = vmatpush1.bf16.xpose.msra.mxu0 0
      %1500 = vmatprep.subr.bf16.mxu0 0
      %1501 = vmatpush1.bf16.xpose.msra.mxu0 0
      %1502 = vmatprep.subr.bf16.mxu0 0
      %1503 = vmatpush1.bf16.xpose.msra.mxu0 0
      %1504 = vmatprep.subr.bf16.mxu0 0
      %1505 = vmatpush1.bf16.xpose.msra.mxu0 0
      %1506 = vmatprep.subr.bf16.mxu0 0
      %1507 = vmatpush1.bf16.xpose.msra.mxu0 0
      %1508 = vmatprep.subr.bf16.mxu0 0
      %1509 = vmatpush1.bf16.xpose.msra.mxu0 0
      %1510 = vmatprep.subr.bf16.mxu0 0
      %1511 = vmatpush1.bf16.xpose.msra.mxu0 0
      %1512 = vmatprep.subr.bf16.mxu0 0
      %1513 = vmatpush1.bf16.xpose.msra.mxu0 0
      %1514 = vmatprep.subr.bf16.mxu0 0
      %1515 = vmatpush1.bf16.xpose.msra.mxu0 0
      %1516 = vmatprep.mubr.bf16.mxu0 0
      %1517 = vmatmul.mubr.bf16.gmra.mrb[0].mxu0 %v1479
      %v1518 = vpop.f32.mrb[0].mxu0
      %v1519 = vadd.f32 %v1254, %v1518
      %v1520 = vpop.f32.mrb[0].mxu0
      %v1521 = vpop.f32.mrb[0].mxu0
      %v1522 = vpop.f32.mrb[0].mxu0
      %1523 = vdwg.mxu0
      %v1524 = vsel %vm588, %v1519, -inf
      %1525 = vmax.xlane.f32.xlu0 %v1524
      %v1526 = vpop.xlane.xlu0 %1525
      %v1527 = vsub.f32 %v1519, %v1526
      %v1528 = vmul.f32 %v1527, 1.442695
      %v1529 = vpow.pop %v1528
      %v1530 = vsel %vm588, %v1529, 0.0
      %1531 = vadd.xlane.f32.xlu0 %v1530
      %v1532 = vpop.xlane.xlu0 %1531
      %v1533 = vrcp.pop %v1532
      %v1534 = vmul.f32 %v1529, %v1533
      %v1535 = vpack.c.bf16 %v1534, %v1534
      %1536 = vrot.lane.b32.xlu0 %v1246, 80
      %v1537 = vpop.permute.xlu0 %1536
      %v1539 = vsel %vm588, %v1535, 0
      %v1542 = vsel %vm653, %v1537, 0
      %1544 = vmatprep.subr.bf16.mxu0 0
      %1545 = vmatpush1.bf16.msra.mxu0 %v1542
      %1546 = vmatprep.subr.bf16.mxu0 0
      %1547 = vmatpush1.bf16.msra.mxu0 0
      %1548 = vmatprep.subr.bf16.mxu0 0
      %1549 = vmatpush1.bf16.msra.mxu0 0
      %1550 = vmatprep.subr.bf16.mxu0 0
      %1551 = vmatpush1.bf16.msra.mxu0 0
      %1552 = vmatprep.subr.bf16.mxu0 0
      %1553 = vmatpush1.bf16.msra.mxu0 0
      %1554 = vmatprep.subr.bf16.mxu0 0
      %1555 = vmatpush1.bf16.msra.mxu0 0
      %1556 = vmatprep.subr.bf16.mxu0 0
      %1557 = vmatpush1.bf16.msra.mxu0 0
      %1558 = vmatprep.subr.bf16.mxu0 0
      %1559 = vmatpush1.bf16.msra.mxu0 0
      %1560 = vmatprep.subr.bf16.mxu0 0
      %1561 = vmatpush1.bf16.msra.mxu0 0
      %1562 = vmatprep.subr.bf16.mxu0 0
      %1563 = vmatpush1.bf16.msra.mxu0 0
      %1564 = vmatprep.subr.bf16.mxu0 0
      %1565 = vmatpush1.bf16.msra.mxu0 0
      %1566 = vmatprep.subr.bf16.mxu0 0
      %1567 = vmatpush1.bf16.msra.mxu0 0
      %1568 = vmatprep.subr.bf16.mxu0 0
      %1569 = vmatpush1.bf16.msra.mxu0 0
      %1570 = vmatprep.subr.bf16.mxu0 0
      %1571 = vmatpush1.bf16.msra.mxu0 0
      %1572 = vmatprep.subr.bf16.mxu0 0
      %1573 = vmatpush1.bf16.msra.mxu0 0
      %1574 = vmatprep.subr.bf16.mxu0 0
      %1575 = vmatpush1.bf16.msra.mxu0 0
      %1576 = vmatprep.mubr.bf16.mxu0 0
      %1577 = vmatmul.mubr.bf16.gmra.mrb[0].mxu0 %v1539
      %v1578 = vpop.f32.mrb[0].mxu0
      %v1579 = vadd.f32 0.0, %v1578
      %v1580 = vpop.f32.mrb[0].mxu0
      %v1581 = vpop.f32.mrb[0].mxu0
      %v1582 = vpop.f32.mrb[0].mxu0
      %1583 = vdwg.mxu0
      %1584 = vrot.lane.b32.xlu0 %v1184, 104
      %v1585 = vpop.permute.xlu0 %1584
      %1586 = vrot.lane.b32.xlu0 %v1246, 104
      %v1587 = vpop.permute.xlu0 %1586
      %v1589 = vsel %vm588, %v1585, 0
      %v1592 = vsel %vm588, %v1587, 0
      %1594 = vmatprep.subr.bf16.mxu0 0
      %1595 = vmatpush1.bf16.xpose.msra.mxu0 %v1592
      %1596 = vmatprep.subr.bf16.mxu0 0
      %1597 = vmatpush1.bf16.xpose.msra.mxu0 0
      %1598 = vmatprep.subr.bf16.mxu0 0
      %1599 = vmatpush1.bf16.xpose.msra.mxu0 0
      %1600 = vmatprep.subr.bf16.mxu0 0
      %1601 = vmatpush1.bf16.xpose.msra.mxu0 0
      %1602 = vmatprep.subr.bf16.mxu0 0
      %1603 = vmatpush1.bf16.xpose.msra.mxu0 0
      %1604 = vmatprep.subr.bf16.mxu0 0
      %1605 = vmatpush1.bf16.xpose.msra.mxu0 0
      %1606 = vmatprep.subr.bf16.mxu0 0
      %1607 = vmatpush1.bf16.xpose.msra.mxu0 0
      %1608 = vmatprep.subr.bf16.mxu0 0
      %1609 = vmatpush1.bf16.xpose.msra.mxu0 0
      %1610 = vmatprep.subr.bf16.mxu0 0
      %1611 = vmatpush1.bf16.xpose.msra.mxu0 0
      %1612 = vmatprep.subr.bf16.mxu0 0
      %1613 = vmatpush1.bf16.xpose.msra.mxu0 0
      %1614 = vmatprep.subr.bf16.mxu0 0
      %1615 = vmatpush1.bf16.xpose.msra.mxu0 0
      %1616 = vmatprep.subr.bf16.mxu0 0
      %1617 = vmatpush1.bf16.xpose.msra.mxu0 0
      %1618 = vmatprep.subr.bf16.mxu0 0
      %1619 = vmatpush1.bf16.xpose.msra.mxu0 0
      %1620 = vmatprep.subr.bf16.mxu0 0
      %1621 = vmatpush1.bf16.xpose.msra.mxu0 0
      %1622 = vmatprep.subr.bf16.mxu0 0
      %1623 = vmatpush1.bf16.xpose.msra.mxu0 0
      %1624 = vmatprep.subr.bf16.mxu0 0
      %1625 = vmatpush1.bf16.xpose.msra.mxu0 0
      %1626 = vmatprep.mubr.bf16.mxu0 0
      %1627 = vmatmul.mubr.bf16.gmra.mrb[0].mxu0 %v1589
      %v1628 = vpop.f32.mrb[0].mxu0
      %v1629 = vadd.f32 %v1254, %v1628
      %v1630 = vpop.f32.mrb[0].mxu0
      %v1631 = vpop.f32.mrb[0].mxu0
      %v1632 = vpop.f32.mrb[0].mxu0
      %1633 = vdwg.mxu0
      %v1634 = vsel %vm588, %v1629, -inf
      %1635 = vmax.xlane.f32.xlu0 %v1634
      %v1636 = vpop.xlane.xlu0 %1635
      %v1637 = vsub.f32 %v1629, %v1636
      %v1638 = vmul.f32 %v1637, 1.442695
      %v1639 = vpow.pop %v1638
      %v1640 = vsel %vm588, %v1639, 0.0
      %1641 = vadd.xlane.f32.xlu0 %v1640
      %v1642 = vpop.xlane.xlu0 %1641
      %v1643 = vrcp.pop %v1642
      %v1644 = vmul.f32 %v1639, %v1643
      %v1645 = vpack.c.bf16 %v1644, %v1644
      %1646 = vrot.lane.b32.xlu0 %v1246, 72
      %v1647 = vpop.permute.xlu0 %1646
      %v1649 = vsel %vm588, %v1645, 0
      %v1652 = vsel %vm653, %v1647, 0
      %1654 = vmatprep.subr.bf16.mxu0 0
      %1655 = vmatpush1.bf16.msra.mxu0 %v1652
      %1656 = vmatprep.subr.bf16.mxu0 0
      %1657 = vmatpush1.bf16.msra.mxu0 0
      %1658 = vmatprep.subr.bf16.mxu0 0
      %1659 = vmatpush1.bf16.msra.mxu0 0
      %1660 = vmatprep.subr.bf16.mxu0 0
      %1661 = vmatpush1.bf16.msra.mxu0 0
      %1662 = vmatprep.subr.bf16.mxu0 0
      %1663 = vmatpush1.bf16.msra.mxu0 0
      %1664 = vmatprep.subr.bf16.mxu0 0
      %1665 = vmatpush1.bf16.msra.mxu0 0
      %1666 = vmatprep.subr.bf16.mxu0 0
      %1667 = vmatpush1.bf16.msra.mxu0 0
      %1668 = vmatprep.subr.bf16.mxu0 0
      %1669 = vmatpush1.bf16.msra.mxu0 0
      %1670 = vmatprep.subr.bf16.mxu0 0
      %1671 = vmatpush1.bf16.msra.mxu0 0
      %1672 = vmatprep.subr.bf16.mxu0 0
      %1673 = vmatpush1.bf16.msra.mxu0 0
      %1674 = vmatprep.subr.bf16.mxu0 0
      %1675 = vmatpush1.bf16.msra.mxu0 0
      %1676 = vmatprep.subr.bf16.mxu0 0
      %1677 = vmatpush1.bf16.msra.mxu0 0
      %1678 = vmatprep.subr.bf16.mxu0 0
      %1679 = vmatpush1.bf16.msra.mxu0 0
      %1680 = vmatprep.subr.bf16.mxu0 0
      %1681 = vmatpush1.bf16.msra.mxu0 0
      %1682 = vmatprep.subr.bf16.mxu0 0
      %1683 = vmatpush1.bf16.msra.mxu0 0
      %1684 = vmatprep.subr.bf16.mxu0 0
      %1685 = vmatpush1.bf16.msra.mxu0 0
      %1686 = vmatprep.mubr.bf16.mxu0 0
      %1687 = vmatmul.mubr.bf16.gmra.mrb[0].mxu0 %v1649
      %v1688 = vpop.f32.mrb[0].mxu0
      %v1689 = vadd.f32 0.0, %v1688
      %v1690 = vpop.f32.mrb[0].mxu0
      %v1691 = vpop.f32.mrb[0].mxu0
      %v1692 = vpop.f32.mrb[0].mxu0
      %1693 = vdwg.mxu0
      %1695 = vrot.lane.b32.xlu0 %v1469, 8
      %v1696 = vpop.permute.xlu0 %1695
      %1699 = vrot.lane.b32.xlu0 %v1579, 16
      %v1700 = vpop.permute.xlu0 %1699
      %1703 = vrot.lane.b32.xlu0 %v1689, 24
      %v1704 = vpop.permute.xlu0 %1703
      %v1706 = vsel %vm588, %v1358, %v1696
      %v1707 = vsel %vm1043, %v1706, %v1700
      %v1708 = vsel %vm1045, %v1707, %v1704
      %v1709 = vpack.c.bf16 %v1708, %v1708
      %v1710 = vld [vmem:[%s9] sm:$0xf]
      %v1711 = vld [vmem:[%s9 + $0x4] sm:$0xf]
      %v1712 = vld [vmem:[%s9 + $0x8] sm:$0xf]
      %v1713 = vld [vmem:[%s9 + $0xc] sm:$0xf]
      %v1718 = vunpack.c.l.b16 %v1710
      %v1719 = vunpack.c.l.b16 %v1711
      %v1720 = vunpack.c.l.b16 %v1712
      %v1721 = vunpack.c.l.b16 %v1713
      %v1722 = vpack.c.b16 %v1719, %v1718
      %v1723 = vpack.c.b16 %v1721, %v1720
      %v1727 = vsel %vm498, %v1709, 0
      %1729 = vmatprep.subr.bf16.mxu0 0
      %1730 = vmatpush1.bf16.msra.mxu0 %v1722
      %1731 = vmatprep.subr.bf16.mxu0 0
      %1732 = vmatpush1.bf16.msra.mxu0 %v1723
      %1733 = vmatprep.subr.bf16.mxu0 0
      %1734 = vmatpush1.bf16.msra.mxu0 0
      %1735 = vmatprep.subr.bf16.mxu0 0
      %1736 = vmatpush1.bf16.msra.mxu0 0
      %1737 = vmatprep.subr.bf16.mxu0 0
      %1738 = vmatpush1.bf16.msra.mxu0 0
      %1739 = vmatprep.subr.bf16.mxu0 0
      %1740 = vmatpush1.bf16.msra.mxu0 0
      %1741 = vmatprep.subr.bf16.mxu0 0
      %1742 = vmatpush1.bf16.msra.mxu0 0
      %1743 = vmatprep.subr.bf16.mxu0 0
      %1744 = vmatpush1.bf16.msra.mxu0 0
      %1745 = vmatprep.subr.bf16.mxu0 0
      %1746 = vmatpush1.bf16.msra.mxu0 0
      %1747 = vmatprep.subr.bf16.mxu0 0
      %1748 = vmatpush1.bf16.msra.mxu0 0
      %1749 = vmatprep.subr.bf16.mxu0 0
      %1750 = vmatpush1.bf16.msra.mxu0 0
      %1751 = vmatprep.subr.bf16.mxu0 0
      %1752 = vmatpush1.bf16.msra.mxu0 0
      %1753 = vmatprep.subr.bf16.mxu0 0
      %1754 = vmatpush1.bf16.msra.mxu0 0
      %1755 = vmatprep.subr.bf16.mxu0 0
      %1756 = vmatpush1.bf16.msra.mxu0 0
      %1757 = vmatprep.subr.bf16.mxu0 0
      %1758 = vmatpush1.bf16.msra.mxu0 0
      %1759 = vmatprep.subr.bf16.mxu0 0
      %1760 = vmatpush1.bf16.msra.mxu0 0
      %1761 = vmatprep.mubr.bf16.mxu0 0
      %1762 = vmatmul.mubr.bf16.gmra.mrb[0].mxu0 %v1727
      %v1763 = vpop.f32.mrb[0].mxu0
      %v1764 = vadd.f32 0.0, %v1763
      %v1765 = vpop.f32.mrb[0].mxu0
      %v1766 = vpop.f32.mrb[0].mxu0
      %v1767 = vpop.f32.mrb[0].mxu0
      %1768 = vdwg.mxu0
      %v1769 = vadd.f32 %v1107, %v1764
      %v1770 = vld [vmem:[%s11] sm:$0x1]
      %v1771 = vmul.f32 %v1769, %v1769
      %v1772 = vsel %vm498, %v1771, 0.0
      %1773 = vadd.xlane.f32.xlu0 %v1772
      %v1774 = vpop.xlane.xlu0 %1773
      %v1775 = vmul.f32 %v1774, %v502
      %v1776 = vadd.f32 %v1775, 1e-06
      %v1777 = vrsqrt.pop %v1776
      %v1778 = vmul.f32 %v1769, %v1777
      %v1780 = vlaneseq
      %v1781 = vshrl.u32 %v1780, 7
      %v1782 = vsub.s32 0, %v1781
      %v1783 = vrot.slane %v1770, %v1782
      %v1785 = vmul.f32 %v1778, %v1783
      %v1786 = vpack.c.bf16 %v1785, %v1785
      %v1787 = vld [vmem:[%s12] sm:$0xf]
      %v1788 = vld [vmem:[%s12 + $0x4] sm:$0xf]
      %v1789 = vld [vmem:[%s12 + $0x8] sm:$0xf]
      %v1790 = vld [vmem:[%s12 + $0xc] sm:$0xf]
      %v1795 = vunpack.c.l.b16 %v1787
      %v1796 = vunpack.c.l.b16 %v1788
      %v1797 = vunpack.c.l.b16 %v1789
      %v1798 = vunpack.c.l.b16 %v1790
      %v1799 = vpack.c.b16 %v1796, %v1795
      %v1800 = vpack.c.b16 %v1798, %v1797
      %v1804 = vsel %vm498, %v1786, 0
      %1806 = vmatprep.subr.bf16.mxu0 0
      %1807 = vmatpush1.bf16.msra.mxu0 %v1799
      %1808 = vmatprep.subr.bf16.mxu0 0
      %1809 = vmatpush1.bf16.msra.mxu0 %v1800
      %1810 = vmatprep.subr.bf16.mxu0 0
      %1811 = vmatpush1.bf16.msra.mxu0 0
      %1812 = vmatprep.subr.bf16.mxu0 0
      %1813 = vmatpush1.bf16.msra.mxu0 0
      %1814 = vmatprep.subr.bf16.mxu0 0
      %1815 = vmatpush1.bf16.msra.mxu0 0
      %1816 = vmatprep.subr.bf16.mxu0 0
      %1817 = vmatpush1.bf16.msra.mxu0 0
      %1818 = vmatprep.subr.bf16.mxu0 0
      %1819 = vmatpush1.bf16.msra.mxu0 0
      %1820 = vmatprep.subr.bf16.mxu0 0
      %1821 = vmatpush1.bf16.msra.mxu0 0
      %1822 = vmatprep.subr.bf16.mxu0 0
      %1823 = vmatpush1.bf16.msra.mxu0 0
      %1824 = vmatprep.subr.bf16.mxu0 0
      %1825 = vmatpush1.bf16.msra.mxu0 0
      %1826 = vmatprep.subr.bf16.mxu0 0
      %1827 = vmatpush1.bf16.msra.mxu0 0
      %1828 = vmatprep.subr.bf16.mxu0 0
      %1829 = vmatpush1.bf16.msra.mxu0 0
      %1830 = vmatprep.subr.bf16.mxu0 0
      %1831 = vmatpush1.bf16.msra.mxu0 0
      %1832 = vmatprep.subr.bf16.mxu0 0
      %1833 = vmatpush1.bf16.msra.mxu0 0
      %1834 = vmatprep.subr.bf16.mxu0 0
      %1835 = vmatpush1.bf16.msra.mxu0 0
      %1836 = vmatprep.subr.bf16.mxu0 0
      %1837 = vmatpush1.bf16.msra.mxu0 0
      %1838 = vmatprep.mubr.bf16.mxu0 0
      %1839 = vmatmul.mubr.bf16.gmra.mrb[0].mxu0 %v1804
      %v1840 = vpop.f32.mrb[0].mxu0
      %v1841 = vadd.f32 0.0, %v1840
      %v1842 = vpop.f32.mrb[0].mxu0
      %v1843 = vpop.f32.mrb[0].mxu0
      %v1844 = vpop.f32.mrb[0].mxu0
      %1845 = vdwg.mxu0
      %v1846 = vmax.f32 %v1841, 0.0
      %v1847 = vpack.c.bf16 %v1846, %v1846
      %v1848 = vld [vmem:[%s13] sm:$0xf]
      %v1849 = vld [vmem:[%s13 + $0x4] sm:$0xf]
      %v1850 = vld [vmem:[%s13 + $0x8] sm:$0xf]
      %v1851 = vld [vmem:[%s13 + $0xc] sm:$0xf]
      %v1852 = vld [vmem:[%s13 + $0x10] sm:$0xf]
      %v1853 = vld [vmem:[%s13 + $0x14] sm:$0xf]
      %v1854 = vld [vmem:[%s13 + $0x18] sm:$0xf]
      %v1855 = vld [vmem:[%s13 + $0x1c] sm:$0xf]
      %v1864 = vunpack.c.l.b16 %v1848
      %v1865 = vunpack.c.l.b16 %v1849
      %v1866 = vunpack.c.l.b16 %v1850
      %v1867 = vunpack.c.l.b16 %v1851
      %v1868 = vunpack.c.l.b16 %v1852
      %v1869 = vunpack.c.l.b16 %v1853
      %v1870 = vunpack.c.l.b16 %v1854
      %v1871 = vunpack.c.l.b16 %v1855
      %v1872 = vpack.c.b16 %v1865, %v1864
      %v1873 = vpack.c.b16 %v1867, %v1866
      %v1874 = vpack.c.b16 %v1869, %v1868
      %v1875 = vpack.c.b16 %v1871, %v1870
      %vm1880 = vcmask 523264
      %v1882 = vsel %vm1880, %v1847, 0
      %1884 = vmatprep.subr.bf16.mxu0 0
      %1885 = vmatpush1.bf16.msra.mxu0 %v1872
      %1886 = vmatprep.subr.bf16.mxu0 0
      %1887 = vmatpush1.bf16.msra.mxu0 %v1873
      %1888 = vmatprep.subr.bf16.mxu0 0
      %1889 = vmatpush1.bf16.msra.mxu0 %v1874
      %1890 = vmatprep.subr.bf16.mxu0 0
      %1891 = vmatpush1.bf16.msra.mxu0 %v1875
      %1892 = vmatprep.subr.bf16.mxu0 0
      %1893 = vmatpush1.bf16.msra.mxu0 0
      %1894 = vmatprep.subr.bf16.mxu0 0
      %1895 = vmatpush1.bf16.msra.mxu0 0
      %1896 = vmatprep.subr.bf16.mxu0 0
      %1897 = vmatpush1.bf16.msra.mxu0 0
      %1898 = vmatprep.subr.bf16.mxu0 0
      %1899 = vmatpush1.bf16.msra.mxu0 0
      %1900 = vmatprep.subr.bf16.mxu0 0
      %1901 = vmatpush1.bf16.msra.mxu0 0
      %1902 = vmatprep.subr.bf16.mxu0 0
      %1903 = vmatpush1.bf16.msra.mxu0 0
      %1904 = vmatprep.subr.bf16.mxu0 0
      %1905 = vmatpush1.bf16.msra.mxu0 0
      %1906 = vmatprep.subr.bf16.mxu0 0
      %1907 = vmatpush1.bf16.msra.mxu0 0
      %1908 = vmatprep.subr.bf16.mxu0 0
      %1909 = vmatpush1.bf16.msra.mxu0 0
      %1910 = vmatprep.subr.bf16.mxu0 0
      %1911 = vmatpush1.bf16.msra.mxu0 0
      %1912 = vmatprep.subr.bf16.mxu0 0
      %1913 = vmatpush1.bf16.msra.mxu0 0
      %1914 = vmatprep.subr.bf16.mxu0 0
      %1915 = vmatpush1.bf16.msra.mxu0 0
      %1916 = vmatprep.mubr.bf16.mxu0 0
      %1917 = vmatmul.mubr.bf16.gmra.mrb[0].mxu0 %v1882
      %v1918 = vpop.f32.mrb[0].mxu0
      %v1919 = vadd.f32 0.0, %v1918
      %v1920 = vpop.f32.mrb[0].mxu0
      %v1921 = vpop.f32.mrb[0].mxu0
      %v1922 = vpop.f32.mrb[0].mxu0
      %1923 = vdwg.mxu0
      %v1924 = vadd.f32 %v1769, %v1919
      %1925 = vst.msk [vmem:[%s493] sm:$0xff] %vm498, %v1924
      %p1926 = scmp.lt.s32.totalorder %s25, 1
      %s1927 = scalar_select %p1926, %s25, 1
      %s1928 = smul.addr %s1927, 8
      %s1929 = scalar_lea.vmem %s14, %s1928
      // Predicated region
      $region77: #{forward_jit.4} parent=75 // pred_check
        %p1930 = pneg %p352
      $region78: #{forward_jit.4} parent=75 // pred_check_branch
        %1932 = sbr.rel (%p1930) target = $region80
      $region79: #{forward_jit.4} parent=75 // pred_region
        _
      $region80: #{forward_jit.4} parent=75 // pred_fallthru
        _
    $region76: #{forward_jit.4} parent=5 // pred_fallthru
      _
    %p1933 = scmp.le.s32.totalorder 2, %s20
    // Predicated region
    $region81: #{forward_jit.4} parent=5 // pred_check
      %p1934 = pneg %p1933
    $region82: #{forward_jit.4} parent=5 // pred_check_branch
      %1936 = sbr.rel (%p1934) target = $region84
    $region83: #{forward_jit.4} parent=5 // pred_region
      %s1937 = ssub.s32 %s20, 2
      // Predicated region
      $region85: #{forward_jit.4} parent=83 // pred_check
        %p1938 = pneg %p358
      $region86: #{forward_jit.4} parent=83 // pred_check_branch
        %1940 = sbr.rel (%p1938) target = $region88
      $region87: #{forward_jit.4} parent=83 // pred_region
        %p1941 = scmp.lt.s32.totalorder %s26, 1
        %s1942 = scalar_select %p1941, %s26, 1
        %s1943 = smul.addr %s1942, 8
        %s1944 = scalar_lea.vmem %s14, %s1943
      $region88: #{forward_jit.4} parent=83 // pred_fallthru
        _
    $region84: #{forward_jit.4} parent=5 // pred_fallthru
      _
  $region6: #{forward_jit.4} parent=0 // loop_footer
    %s24 = sadd.s32 1, %s20
  $region7: #{forward_jit.4} parent=0 // loop_footer_branch
    %19 = sbr.rel target = $region3
  $region8: #{forward_jit.4} parent=0 // loop_exit
    _

</llo_original>
